<compile_context>
chip_gen: v7x
topology: tpu7x:2x2x1
jax: 0.10.0
libtpu: 0.0.40
codegen_flags: <defaults>
</compile_context>

<pallas_src>
import functools

import jax
import jax.numpy as jnp
from jax.experimental import pallas as pl

# ----------------------- mini BERT config (synthetic) -----------------------
VOCAB = 64
TYPE_VOCAB = 2
MAX_POS = 32
HIDDEN = 32
LAYERS = 2
HEADS = 4
HEAD_DIM = HIDDEN // HEADS
FFN = 64
LN_EPS = 1e-12
ATT_SCALE = 1.0 / float(HEAD_DIM) ** 0.5

POOLING_MODES = ("cls", "pooler", "last-avg", "first-last-avg")


# ----------------------------- in-kernel helpers -----------------------------
def _gelu(x):
    # TODO(synk): HF BERT uses exact erf GELU; tanh approximation drifts slightly.
    return 0.5 * x * (1.0 + jnp.tanh(0.7978845608028654 * (x + 0.044715 * x * x * x)))


def _layernorm(x, g, b):
    mu = jnp.mean(x, axis=-1, keepdims=True)
    var = jnp.mean(jnp.square(x - mu), axis=-1, keepdims=True)
    return (x - mu) * jax.lax.rsqrt(var + LN_EPS) * g + b


def _dense(x, w, b, activation=None):
    # bf16 MXU operands, f32 accumulation; bias add / activation in f32.
    y = jnp.dot(x.astype(jnp.bfloat16), w.astype(jnp.bfloat16),
                preferred_element_type=jnp.float32) + b
    if activation == "gelu":
        y = _gelu(y)
    elif activation == "tanh":
        y = jnp.tanh(y)
    return y


# --------------------------- fused SimCSE/BERT kernel ------------------------
def bert_simcse_kernel(emb_ref, mask_ref,
                       emb_ln_g_ref, emb_ln_b_ref,
                       wqkv_ref, bqkv_ref, wo_ref, bo_ref,
                       ln1_g_ref, ln1_b_ref,
                       w1_ref, b1_ref, w2_ref, b2_ref,
                       ln2_g_ref, ln2_b_ref,
                       pooler_w_ref, pooler_b_ref,
                       out_ref, *, batch, seq, pooling):
    # additive attention mask: (B, 1, S) of {0, -1e9}, kept in f32.
    add_mask = mask_ref[...][:, None, :]

    # embedding LayerNorm (embedding gather itself happens outside, plain JAX).
    x = _layernorm(emb_ref[...], emb_ln_g_ref[...], emb_ln_b_ref[...])
    # TODO(synk): attention/hidden dropout (p=0.3) is identity in eval mode.

    first_hidden = None  # == hidden_states[1] (output of first encoder layer)
    for l in range(LAYERS):
        # ---- fused Q|K|V projection: one (B*S, H) x (H, 3H) matmul ----
        qkv = _dense(x, wqkv_ref[l], bqkv_ref[l])           # (B*S, 3H) f32
        wo = wo_ref[l]                                       # (H, H)

        # ---- multi-head attention; head merge folded into output proj ----
        attn_out = bo_ref[l]                                 # (1, H) broadcasts
        for h in range(HEADS):
            lo = h * HEAD_DIM
            qh = qkv[:, lo:lo + HEAD_DIM].reshape(batch, seq, HEAD_DIM)
            kh = qkv[:, HIDDEN + lo:HIDDEN + lo + HEAD_DIM].reshape(
                batch, seq, HEAD_DIM)
            vh = qkv[:, 2 * HIDDEN + lo:2 * HIDDEN + lo + HEAD_DIM].reshape(
                batch, seq, HEAD_DIM)

            # scores (B, S, S): bf16 operands, f32 accumulation.
            s = jax.lax.dot_general(
                qh.astype(jnp.bfloat16), kh.astype(jnp.bfloat16),
                (((2,), (2,)), ((0,), (0,))),
                preferred_element_type=jnp.float32) * ATT_SCALE
            s = s + add_mask                                  # f32 mask add
            s = s - jnp.max(s, axis=-1, keepdims=True)
            p = jnp.exp(s)
            p = p * pl.reciprocal(jnp.sum(p, axis=-1, keepdims=True), approx=True)

            ctx = jax.lax.dot_general(                        # (B, S, D)
                p.astype(jnp.bfloat16), vh.astype(jnp.bfloat16),
                (((2,), (1,)), ((0,), (0,))),
                preferred_element_type=jnp.float32)
            ctx = ctx.reshape(batch * seq, HEAD_DIM)

            # per-head slice of the output projection accumulates directly,
            # so the heads never need to be re-concatenated / transposed.
            attn_out = attn_out + jnp.dot(
                ctx.astype(jnp.bfloat16),
                wo[lo:lo + HEAD_DIM, :].astype(jnp.bfloat16),
                preferred_element_type=jnp.float32)

        # ---- residual + LN, FFN, residual + LN ----
        x = _layernorm(x + attn_out, ln1_g_ref[l], ln1_b_ref[l])
        hmid = _dense(x, w1_ref[l], b1_ref[l], activation="gelu")
        ffn_out = _dense(hmid, w2_ref[l], b2_ref[l])
        x = _layernorm(x + ffn_out, ln2_g_ref[l], ln2_b_ref[l])

        if l == 0:
            first_hidden = x

    # ---- fused SimCSE pooling epilogue ----
    last = x.reshape(batch, seq, HIDDEN)
    if pooling == "cls":
        out_ref[...] = last[:, 0, :]
    elif pooling == "pooler":
        cls = last[:, 0, :]
        out_ref[...] = _dense(cls, pooler_w_ref[...], pooler_b_ref[...],
                              activation="tanh")
    elif pooling == "last-avg":
        # torch.avg_pool1d(last.transpose(1,2), kernel_size=S) == mean over seq
        out_ref[...] = jnp.mean(last, axis=1)
    else:  # "first-last-avg"
        first = first_hidden.reshape(batch, seq, HIDDEN)
        out_ref[...] = 0.5 * (jnp.mean(first, axis=1) + jnp.mean(last, axis=1))


# ------------------------------ parameter init -------------------------------
def init_params(key):
    k_word, k_pos, k_type, k_pool, k_layers = jax.random.split(key, 5)

    def nrm(k, shape):
        return 0.02 * jax.random.normal(k, shape, jnp.float32)

    lkeys = jax.random.split(k_layers, LAYERS * 6)
    wqkv, wo, w1, w2 = [], [], [], []
    for l in range(LAYERS):
        kq, kk, kv, ko, k1, k2 = (lkeys[l * 6 + j] for j in range(6))
        wqkv.append(jnp.concatenate(
            [nrm(kq, (HIDDEN, HIDDEN)),
             nrm(kk, (HIDDEN, HIDDEN)),
             nrm(kv, (HIDDEN, HIDDEN))], axis=1))          # (H, 3H)
        wo.append(nrm(ko, (HIDDEN, HIDDEN)))
        w1.append(nrm(k1, (HIDDEN, FFN)))
        w2.append(nrm(k2, (FFN, HIDDEN)))

    return {
        "word_emb": nrm(k_word, (VOCAB, HIDDEN)),
        "pos_emb": nrm(k_pos, (MAX_POS, HIDDEN)),
        "type_emb": nrm(k_type, (TYPE_VOCAB, HIDDEN)),
        "emb_ln_g": jnp.ones((1, HIDDEN), jnp.float32),
        "emb_ln_b": jnp.zeros((1, HIDDEN), jnp.float32),
        "wqkv": jnp.stack(wqkv),                            # (L, H, 3H)
        "bqkv": jnp.zeros((LAYERS, 1, 3 * HIDDEN), jnp.float32),
        "wo": jnp.stack(wo),                                # (L, H, H)
        "bo": jnp.zeros((LAYERS, 1, HIDDEN), jnp.float32),
        "ln1_g": jnp.ones((LAYERS, 1, HIDDEN), jnp.float32),
        "ln1_b": jnp.zeros((LAYERS, 1, HIDDEN), jnp.float32),
        "w1": jnp.stack(w1),                                # (L, H, FFN)
        "b1": jnp.zeros((LAYERS, 1, FFN), jnp.float32),
        "w2": jnp.stack(w2),                                # (L, FFN, H)
        "b2": jnp.zeros((LAYERS, 1, HIDDEN), jnp.float32),
        "ln2_g": jnp.ones((LAYERS, 1, HIDDEN), jnp.float32),
        "ln2_b": jnp.zeros((LAYERS, 1, HIDDEN), jnp.float32),
        "pooler_w": nrm(k_pool, (HIDDEN, HIDDEN)),
        "pooler_b": jnp.zeros((1, HIDDEN), jnp.float32),
    }


# ---------------------------- SimcseModel.forward ----------------------------
@functools.partial(jax.jit, static_argnames=("pooling",))
def simcse_forward(params, input_ids, attention_mask, token_type_ids, *, pooling):
    if pooling not in POOLING_MODES:
        raise ValueError(f"unknown pooling: {pooling}")

    sql_len = input_ids.shape[-1]
    input_ids = input_ids.reshape(-1, sql_len)
    attention_mask = attention_mask.reshape(-1, sql_len)
    token_type_ids = token_type_ids.reshape(-1, sql_len)
    B, S = input_ids.shape

    # embeddings (gathers are glue, plain JAX)
    pos_ids = jnp.arange(S)
    emb = (jnp.take(params["word_emb"], input_ids, axis=0)
           + jnp.take(params["type_emb"], token_type_ids, axis=0)
           + params["pos_emb"][pos_ids][None, :, :])
    emb2d = emb.reshape(B * S, HIDDEN)
    add_mask = (1.0 - attention_mask.astype(jnp.float32)) * -1e9  # (B, S)

    kernel = functools.partial(bert_simcse_kernel, batch=B, seq=S, pooling=pooling)
    # Single fused pallas_call: no grid, every operand is a whole-array VMEM
    # block (total footprint well under 1 MiB, fits v5e/v6e/v7x VMEM easily).
    return pl.pallas_call(
        kernel,
        out_shape=jax.ShapeDtypeStruct((B, HIDDEN), jnp.float32),
    )(emb2d, add_mask,
      params["emb_ln_g"], params["emb_ln_b"],
      params["wqkv"], params["bqkv"], params["wo"], params["bo"],
      params["ln1_g"], params["ln1_b"],
      params["w1"], params["b1"], params["w2"], params["b2"],
      params["ln2_g"], params["ln2_b"],
      params["pooler_w"], params["pooler_b"])


if __name__ == "__main__":
    key = jax.random.PRNGKey(0)
    pkey, ikey = jax.random.split(key)
    params = init_params(pkey)

    B, NSENT, S = 2, 2, 8  # SimCSE-style (batch, num_views, seq) input, flattened inside
    input_ids = jax.random.randint(ikey, (B, NSENT, S), 0, VOCAB, dtype=jnp.int32)
    attention_mask = jnp.ones((B, NSENT, S), jnp.int32)
    token_type_ids = jnp.zeros((B, NSENT, S), jnp.int32)

    for pooling in POOLING_MODES:
        out = simcse_forward(params, input_ids, attention_mask, token_type_ids,
                             pooling=pooling)
        out = jax.block_until_ready(out)
        assert out.shape == (B * NSENT, HIDDEN), (pooling, out.shape)
        assert jnp.all(jnp.isfinite(out))

    print("KERNEL_OK")
</pallas_src>

<mosaic_0001>
module attributes {stable_mosaic.version = 11 : i64} {
  func.func @bert_simcse_kernel(%arg0: memref<32x32xf32, #tpu.memory_space<vmem>>, %arg1: memref<4x8xf32, #tpu.memory_space<vmem>>, %arg2: memref<1x32xf32, #tpu.memory_space<vmem>>, %arg3: memref<1x32xf32, #tpu.memory_space<vmem>>, %arg4: memref<2x32x96xf32, #tpu.memory_space<vmem>>, %arg5: memref<2x1x96xf32, #tpu.memory_space<vmem>>, %arg6: memref<2x32x32xf32, #tpu.memory_space<vmem>>, %arg7: memref<2x1x32xf32, #tpu.memory_space<vmem>>, %arg8: memref<2x1x32xf32, #tpu.memory_space<vmem>>, %arg9: memref<2x1x32xf32, #tpu.memory_space<vmem>>, %arg10: memref<2x32x64xf32, #tpu.memory_space<vmem>>, %arg11: memref<2x1x64xf32, #tpu.memory_space<vmem>>, %arg12: memref<2x64x32xf32, #tpu.memory_space<vmem>>, %arg13: memref<2x1x32xf32, #tpu.memory_space<vmem>>, %arg14: memref<2x1x32xf32, #tpu.memory_space<vmem>>, %arg15: memref<2x1x32xf32, #tpu.memory_space<vmem>>, %arg16: memref<32x32xf32, #tpu.memory_space<vmem>>, %arg17: memref<1x32xf32, #tpu.memory_space<vmem>>, %arg18: memref<4x32xf32, #tpu.memory_space<vmem>>) attributes {dimension_semantics = [], scalar_prefetch = 0 : i64, scratch_operands = 0 : i64, tpu.core_type = #tpu.core_type<tc>} {
    %c0 = arith.constant 0 : index
    %c0_0 = arith.constant 0 : index
    %0 = vector.load %arg1[%c0, %c0_0] : memref<4x8xf32, #tpu.memory_space<vmem>>, vector<4x8xf32>
    %1 = vector.shape_cast %0 : vector<4x8xf32> to vector<4x1x8xf32>
    %c0_1 = arith.constant 0 : index
    %c0_2 = arith.constant 0 : index
    %2 = vector.load %arg0[%c0_1, %c0_2] : memref<32x32xf32, #tpu.memory_space<vmem>>, vector<32x32xf32>
    %c0_3 = arith.constant 0 : index
    %c0_4 = arith.constant 0 : index
    %3 = vector.load %arg2[%c0_3, %c0_4] : memref<1x32xf32, #tpu.memory_space<vmem>>, vector<1x32xf32>
    %c0_5 = arith.constant 0 : index
    %c0_6 = arith.constant 0 : index
    %4 = vector.load %arg3[%c0_5, %c0_6] : memref<1x32xf32, #tpu.memory_space<vmem>>, vector<1x32xf32>
    %cst = arith.constant dense<0.000000e+00> : vector<32xf32>
    %5 = vector.multi_reduction <add>, %2, %cst [1] : vector<32x32xf32> to vector<32xf32>
    %6 = vector.shape_cast %5 : vector<32xf32> to vector<32x1xf32>
    %cst_7 = arith.constant 3.200000e+01 : f32
    %7 = vector.broadcast %cst_7 : f32 to vector<32x1xf32>
    %8 = arith.divf %6, %7 : vector<32x1xf32>
    %9 = vector.broadcast %8 : vector<32x1xf32> to vector<32x32xf32>
    %10 = arith.subf %2, %9 : vector<32x32xf32>
    %11 = arith.mulf %10, %10 : vector<32x32xf32>
    %cst_8 = arith.constant dense<0.000000e+00> : vector<32xf32>
    %12 = vector.multi_reduction <add>, %11, %cst_8 [1] : vector<32x32xf32> to vector<32xf32>
    %13 = vector.shape_cast %12 : vector<32xf32> to vector<32x1xf32>
    %cst_9 = arith.constant 3.200000e+01 : f32
    %14 = vector.broadcast %cst_9 : f32 to vector<32x1xf32>
    %15 = arith.divf %13, %14 : vector<32x1xf32>
    %16 = vector.broadcast %8 : vector<32x1xf32> to vector<32x32xf32>
    %17 = arith.subf %2, %16 : vector<32x32xf32>
    %cst_10 = arith.constant 9.99999996E-13 : f32
    %18 = vector.broadcast %cst_10 : f32 to vector<32x1xf32>
    %19 = arith.addf %15, %18 : vector<32x1xf32>
    %20 = math.rsqrt %19 : vector<32x1xf32>
    %21 = vector.broadcast %20 : vector<32x1xf32> to vector<32x32xf32>
    %22 = arith.mulf %17, %21 : vector<32x32xf32>
    %23 = vector.broadcast %3 : vector<1x32xf32> to vector<32x32xf32>
    %24 = arith.mulf %22, %23 : vector<32x32xf32>
    %25 = vector.broadcast %4 : vector<1x32xf32> to vector<32x32xf32>
    %26 = arith.addf %24, %25 : vector<32x32xf32>
    %c0_11 = arith.constant 0 : index
    %c0_12 = arith.constant 0 : index
    %c0_13 = arith.constant 0 : index
    %27 = vector.load %arg4[%c0_11, %c0_12, %c0_13] : memref<2x32x96xf32, #tpu.memory_space<vmem>>, vector<1x32x96xf32>
    %28 = vector.shape_cast %27 : vector<1x32x96xf32> to vector<32x96xf32>
    %c0_14 = arith.constant 0 : index
    %c0_15 = arith.constant 0 : index
    %c0_16 = arith.constant 0 : index
    %29 = vector.load %arg5[%c0_14, %c0_15, %c0_16] : memref<2x1x96xf32, #tpu.memory_space<vmem>>, vector<1x1x96xf32>
    %30 = vector.shape_cast %29 : vector<1x1x96xf32> to vector<1x96xf32>
    %31 = arith.truncf %26 : vector<32x32xf32> to vector<32x32xbf16>
    %32 = arith.truncf %28 : vector<32x96xf32> to vector<32x96xbf16>
    %cst_17 = arith.constant dense<0.000000e+00> : vector<32x96xf32>
    %33 = tpu.matmul %31, %32, %cst_17 {dimension_numbers = #tpu.dot_dimension_numbers<[1], [0], [0], [1], [0, 0, 1, 1], [], []>} : vector<32x32xbf16>, vector<32x96xbf16>, vector<32x96xf32> -> vector<32x96xf32>
    %34 = vector.broadcast %30 : vector<1x96xf32> to vector<32x96xf32>
    %35 = arith.addf %33, %34 : vector<32x96xf32>
    %c0_18 = arith.constant 0 : index
    %c0_19 = arith.constant 0 : index
    %c0_20 = arith.constant 0 : index
    %36 = vector.load %arg6[%c0_18, %c0_19, %c0_20] : memref<2x32x32xf32, #tpu.memory_space<vmem>>, vector<1x32x32xf32>
    %37 = vector.shape_cast %36 : vector<1x32x32xf32> to vector<32x32xf32>
    %c0_21 = arith.constant 0 : index
    %c0_22 = arith.constant 0 : index
    %c0_23 = arith.constant 0 : index
    %38 = vector.load %arg7[%c0_21, %c0_22, %c0_23] : memref<2x1x32xf32, #tpu.memory_space<vmem>>, vector<1x1x32xf32>
    %39 = vector.shape_cast %38 : vector<1x1x32xf32> to vector<1x32xf32>
    %40 = vector.extract_strided_slice %35 {offsets = [0, 0], sizes = [32, 8], strides = [1, 1]} : vector<32x96xf32> to vector<32x8xf32>
    %41 = vector.shape_cast %40 : vector<32x8xf32> to vector<4x8x8xf32>
    %42 = vector.extract_strided_slice %35 {offsets = [0, 32], sizes = [32, 8], strides = [1, 1]} : vector<32x96xf32> to vector<32x8xf32>
    %43 = vector.shape_cast %42 : vector<32x8xf32> to vector<4x8x8xf32>
    %44 = vector.extract_strided_slice %35 {offsets = [0, 64], sizes = [32, 8], strides = [1, 1]} : vector<32x96xf32> to vector<32x8xf32>
    %45 = vector.shape_cast %44 : vector<32x8xf32> to vector<4x8x8xf32>
    %46 = arith.truncf %41 : vector<4x8x8xf32> to vector<4x8x8xbf16>
    %47 = arith.truncf %43 : vector<4x8x8xf32> to vector<4x8x8xbf16>
    %cst_24 = arith.constant dense<0.000000e+00> : vector<4x8x8xf32>
    %48 = tpu.matmul %46, %47, %cst_24 {dimension_numbers = #tpu.dot_dimension_numbers<[2], [2], [1], [1], [0, 0, 0, 1, 1, 1], [0], [0]>} : vector<4x8x8xbf16>, vector<4x8x8xbf16>, vector<4x8x8xf32> -> vector<4x8x8xf32>
    %cst_25 = arith.constant 0.353553385 : f32
    %49 = vector.broadcast %cst_25 : f32 to vector<4x8x8xf32>
    %50 = arith.mulf %48, %49 : vector<4x8x8xf32>
    %51 = vector.broadcast %1 : vector<4x1x8xf32> to vector<4x8x8xf32>
    %52 = arith.addf %50, %51 : vector<4x8x8xf32>
    %cst_26 = arith.constant dense<0xFF800000> : vector<4x8xf32>
    %53 = vector.multi_reduction <maximumf>, %52, %cst_26 [2] : vector<4x8x8xf32> to vector<4x8xf32>
    %54 = vector.shape_cast %53 : vector<4x8xf32> to vector<4x8x1xf32>
    %55 = vector.broadcast %54 : vector<4x8x1xf32> to vector<4x8x8xf32>
    %56 = arith.subf %52, %55 : vector<4x8x8xf32>
    %57 = math.exp %56 : vector<4x8x8xf32>
    %cst_27 = arith.constant dense<0.000000e+00> : vector<4x8xf32>
    %58 = vector.multi_reduction <add>, %57, %cst_27 [2] : vector<4x8x8xf32> to vector<4x8xf32>
    %59 = vector.shape_cast %58 : vector<4x8xf32> to vector<4x8x1xf32>
    %60 = tpu.reciprocal %59 {approx = true} : vector<4x8x1xf32> -> vector<4x8x1xf32>
    %61 = vector.broadcast %60 : vector<4x8x1xf32> to vector<4x8x8xf32>
    %62 = arith.mulf %57, %61 : vector<4x8x8xf32>
    %63 = arith.truncf %62 : vector<4x8x8xf32> to vector<4x8x8xbf16>
    %64 = arith.truncf %45 : vector<4x8x8xf32> to vector<4x8x8xbf16>
    %cst_28 = arith.constant dense<0.000000e+00> : vector<4x8x8xf32>
    %65 = tpu.matmul %63, %64, %cst_28 {dimension_numbers = #tpu.dot_dimension_numbers<[2], [1], [1], [2], [0, 0, 0, 1, 1, 2], [0], [0]>} : vector<4x8x8xbf16>, vector<4x8x8xbf16>, vector<4x8x8xf32> -> vector<4x8x8xf32>
    %66 = vector.shape_cast %65 : vector<4x8x8xf32> to vector<32x8xf32>
    %67 = arith.truncf %66 : vector<32x8xf32> to vector<32x8xbf16>
    %68 = vector.extract_strided_slice %37 {offsets = [0, 0], sizes = [8, 32], strides = [1, 1]} : vector<32x32xf32> to vector<8x32xf32>
    %69 = arith.truncf %68 : vector<8x32xf32> to vector<8x32xbf16>
    %cst_29 = arith.constant dense<0.000000e+00> : vector<32x32xf32>
    %70 = tpu.matmul %67, %69, %cst_29 {dimension_numbers = #tpu.dot_dimension_numbers<[1], [0], [0], [1], [0, 0, 1, 1], [], []>} : vector<32x8xbf16>, vector<8x32xbf16>, vector<32x32xf32> -> vector<32x32xf32>
    %71 = vector.broadcast %39 : vector<1x32xf32> to vector<32x32xf32>
    %72 = arith.addf %71, %70 : vector<32x32xf32>
    %73 = vector.extract_strided_slice %35 {offsets = [0, 8], sizes = [32, 8], strides = [1, 1]} : vector<32x96xf32> to vector<32x8xf32>
    %74 = vector.shape_cast %73 : vector<32x8xf32> to vector<4x8x8xf32>
    %75 = vector.extract_strided_slice %35 {offsets = [0, 40], sizes = [32, 8], strides = [1, 1]} : vector<32x96xf32> to vector<32x8xf32>
    %76 = vector.shape_cast %75 : vector<32x8xf32> to vector<4x8x8xf32>
    %77 = vector.extract_strided_slice %35 {offsets = [0, 72], sizes = [32, 8], strides = [1, 1]} : vector<32x96xf32> to vector<32x8xf32>
    %78 = vector.shape_cast %77 : vector<32x8xf32> to vector<4x8x8xf32>
    %79 = arith.truncf %74 : vector<4x8x8xf32> to vector<4x8x8xbf16>
    %80 = arith.truncf %76 : vector<4x8x8xf32> to vector<4x8x8xbf16>
    %cst_30 = arith.constant dense<0.000000e+00> : vector<4x8x8xf32>
    %81 = tpu.matmul %79, %80, %cst_30 {dimension_numbers = #tpu.dot_dimension_numbers<[2], [2], [1], [1], [0, 0, 0, 1, 1, 1], [0], [0]>} : vector<4x8x8xbf16>, vector<4x8x8xbf16>, vector<4x8x8xf32> -> vector<4x8x8xf32>
    %cst_31 = arith.constant 0.353553385 : f32
    %82 = vector.broadcast %cst_31 : f32 to vector<4x8x8xf32>
    %83 = arith.mulf %81, %82 : vector<4x8x8xf32>
    %84 = vector.broadcast %1 : vector<4x1x8xf32> to vector<4x8x8xf32>
    %85 = arith.addf %83, %84 : vector<4x8x8xf32>
    %cst_32 = arith.constant dense<0xFF800000> : vector<4x8xf32>
    %86 = vector.multi_reduction <maximumf>, %85, %cst_32 [2] : vector<4x8x8xf32> to vector<4x8xf32>
    %87 = vector.shape_cast %86 : vector<4x8xf32> to vector<4x8x1xf32>
    %88 = vector.broadcast %87 : vector<4x8x1xf32> to vector<4x8x8xf32>
    %89 = arith.subf %85, %88 : vector<4x8x8xf32>
    %90 = math.exp %89 : vector<4x8x8xf32>
    %cst_33 = arith.constant dense<0.000000e+00> : vector<4x8xf32>
    %91 = vector.multi_reduction <add>, %90, %cst_33 [2] : vector<4x8x8xf32> to vector<4x8xf32>
    %92 = vector.shape_cast %91 : vector<4x8xf32> to vector<4x8x1xf32>
    %93 = tpu.reciprocal %92 {approx = true} : vector<4x8x1xf32> -> vector<4x8x1xf32>
    %94 = vector.broadcast %93 : vector<4x8x1xf32> to vector<4x8x8xf32>
    %95 = arith.mulf %90, %94 : vector<4x8x8xf32>
    %96 = arith.truncf %95 : vector<4x8x8xf32> to vector<4x8x8xbf16>
    %97 = arith.truncf %78 : vector<4x8x8xf32> to vector<4x8x8xbf16>
    %cst_34 = arith.constant dense<0.000000e+00> : vector<4x8x8xf32>
    %98 = tpu.matmul %96, %97, %cst_34 {dimension_numbers = #tpu.dot_dimension_numbers<[2], [1], [1], [2], [0, 0, 0, 1, 1, 2], [0], [0]>} : vector<4x8x8xbf16>, vector<4x8x8xbf16>, vector<4x8x8xf32> -> vector<4x8x8xf32>
    %99 = vector.shape_cast %98 : vector<4x8x8xf32> to vector<32x8xf32>
    %100 = arith.truncf %99 : vector<32x8xf32> to vector<32x8xbf16>
    %101 = vector.extract_strided_slice %37 {offsets = [8, 0], sizes = [8, 32], strides = [1, 1]} : vector<32x32xf32> to vector<8x32xf32>
    %102 = arith.truncf %101 : vector<8x32xf32> to vector<8x32xbf16>
    %cst_35 = arith.constant dense<0.000000e+00> : vector<32x32xf32>
    %103 = tpu.matmul %100, %102, %cst_35 {dimension_numbers = #tpu.dot_dimension_numbers<[1], [0], [0], [1], [0, 0, 1, 1], [], []>} : vector<32x8xbf16>, vector<8x32xbf16>, vector<32x32xf32> -> vector<32x32xf32>
    %104 = arith.addf %72, %103 : vector<32x32xf32>
    %105 = vector.extract_strided_slice %35 {offsets = [0, 16], sizes = [32, 8], strides = [1, 1]} : vector<32x96xf32> to vector<32x8xf32>
    %106 = vector.shape_cast %105 : vector<32x8xf32> to vector<4x8x8xf32>
    %107 = vector.extract_strided_slice %35 {offsets = [0, 48], sizes = [32, 8], strides = [1, 1]} : vector<32x96xf32> to vector<32x8xf32>
    %108 = vector.shape_cast %107 : vector<32x8xf32> to vector<4x8x8xf32>
    %109 = vector.extract_strided_slice %35 {offsets = [0, 80], sizes = [32, 8], strides = [1, 1]} : vector<32x96xf32> to vector<32x8xf32>
    %110 = vector.shape_cast %109 : vector<32x8xf32> to vector<4x8x8xf32>
    %111 = arith.truncf %106 : vector<4x8x8xf32> to vector<4x8x8xbf16>
    %112 = arith.truncf %108 : vector<4x8x8xf32> to vector<4x8x8xbf16>
    %cst_36 = arith.constant dense<0.000000e+00> : vector<4x8x8xf32>
    %113 = tpu.matmul %111, %112, %cst_36 {dimension_numbers = #tpu.dot_dimension_numbers<[2], [2], [1], [1], [0, 0, 0, 1, 1, 1], [0], [0]>} : vector<4x8x8xbf16>, vector<4x8x8xbf16>, vector<4x8x8xf32> -> vector<4x8x8xf32>
    %cst_37 = arith.constant 0.353553385 : f32
    %114 = vector.broadcast %cst_37 : f32 to vector<4x8x8xf32>
    %115 = arith.mulf %113, %114 : vector<4x8x8xf32>
    %116 = vector.broadcast %1 : vector<4x1x8xf32> to vector<4x8x8xf32>
    %117 = arith.addf %115, %116 : vector<4x8x8xf32>
    %cst_38 = arith.constant dense<0xFF800000> : vector<4x8xf32>
    %118 = vector.multi_reduction <maximumf>, %117, %cst_38 [2] : vector<4x8x8xf32> to vector<4x8xf32>
    %119 = vector.shape_cast %118 : vector<4x8xf32> to vector<4x8x1xf32>
    %120 = vector.broadcast %119 : vector<4x8x1xf32> to vector<4x8x8xf32>
    %121 = arith.subf %117, %120 : vector<4x8x8xf32>
    %122 = math.exp %121 : vector<4x8x8xf32>
    %cst_39 = arith.constant dense<0.000000e+00> : vector<4x8xf32>
    %123 = vector.multi_reduction <add>, %122, %cst_39 [2] : vector<4x8x8xf32> to vector<4x8xf32>
    %124 = vector.shape_cast %123 : vector<4x8xf32> to vector<4x8x1xf32>
    %125 = tpu.reciprocal %124 {approx = true} : vector<4x8x1xf32> -> vector<4x8x1xf32>
    %126 = vector.broadcast %125 : vector<4x8x1xf32> to vector<4x8x8xf32>
    %127 = arith.mulf %122, %126 : vector<4x8x8xf32>
    %128 = arith.truncf %127 : vector<4x8x8xf32> to vector<4x8x8xbf16>
    %129 = arith.truncf %110 : vector<4x8x8xf32> to vector<4x8x8xbf16>
    %cst_40 = arith.constant dense<0.000000e+00> : vector<4x8x8xf32>
    %130 = tpu.matmul %128, %129, %cst_40 {dimension_numbers = #tpu.dot_dimension_numbers<[2], [1], [1], [2], [0, 0, 0, 1, 1, 2], [0], [0]>} : vector<4x8x8xbf16>, vector<4x8x8xbf16>, vector<4x8x8xf32> -> vector<4x8x8xf32>
    %131 = vector.shape_cast %130 : vector<4x8x8xf32> to vector<32x8xf32>
    %132 = arith.truncf %131 : vector<32x8xf32> to vector<32x8xbf16>
    %133 = vector.extract_strided_slice %37 {offsets = [16, 0], sizes = [8, 32], strides = [1, 1]} : vector<32x32xf32> to vector<8x32xf32>
    %134 = arith.truncf %133 : vector<8x32xf32> to vector<8x32xbf16>
    %cst_41 = arith.constant dense<0.000000e+00> : vector<32x32xf32>
    %135 = tpu.matmul %132, %134, %cst_41 {dimension_numbers = #tpu.dot_dimension_numbers<[1], [0], [0], [1], [0, 0, 1, 1], [], []>} : vector<32x8xbf16>, vector<8x32xbf16>, vector<32x32xf32> -> vector<32x32xf32>
    %136 = arith.addf %104, %135 : vector<32x32xf32>
    %137 = vector.extract_strided_slice %35 {offsets = [0, 24], sizes = [32, 8], strides = [1, 1]} : vector<32x96xf32> to vector<32x8xf32>
    %138 = vector.shape_cast %137 : vector<32x8xf32> to vector<4x8x8xf32>
    %139 = vector.extract_strided_slice %35 {offsets = [0, 56], sizes = [32, 8], strides = [1, 1]} : vector<32x96xf32> to vector<32x8xf32>
    %140 = vector.shape_cast %139 : vector<32x8xf32> to vector<4x8x8xf32>
    %141 = vector.extract_strided_slice %35 {offsets = [0, 88], sizes = [32, 8], strides = [1, 1]} : vector<32x96xf32> to vector<32x8xf32>
    %142 = vector.shape_cast %141 : vector<32x8xf32> to vector<4x8x8xf32>
    %143 = arith.truncf %138 : vector<4x8x8xf32> to vector<4x8x8xbf16>
    %144 = arith.truncf %140 : vector<4x8x8xf32> to vector<4x8x8xbf16>
    %cst_42 = arith.constant dense<0.000000e+00> : vector<4x8x8xf32>
    %145 = tpu.matmul %143, %144, %cst_42 {dimension_numbers = #tpu.dot_dimension_numbers<[2], [2], [1], [1], [0, 0, 0, 1, 1, 1], [0], [0]>} : vector<4x8x8xbf16>, vector<4x8x8xbf16>, vector<4x8x8xf32> -> vector<4x8x8xf32>
    %cst_43 = arith.constant 0.353553385 : f32
    %146 = vector.broadcast %cst_43 : f32 to vector<4x8x8xf32>
    %147 = arith.mulf %145, %146 : vector<4x8x8xf32>
    %148 = vector.broadcast %1 : vector<4x1x8xf32> to vector<4x8x8xf32>
    %149 = arith.addf %147, %148 : vector<4x8x8xf32>
    %cst_44 = arith.constant dense<0xFF800000> : vector<4x8xf32>
    %150 = vector.multi_reduction <maximumf>, %149, %cst_44 [2] : vector<4x8x8xf32> to vector<4x8xf32>
    %151 = vector.shape_cast %150 : vector<4x8xf32> to vector<4x8x1xf32>
    %152 = vector.broadcast %151 : vector<4x8x1xf32> to vector<4x8x8xf32>
    %153 = arith.subf %149, %152 : vector<4x8x8xf32>
    %154 = math.exp %153 : vector<4x8x8xf32>
    %cst_45 = arith.constant dense<0.000000e+00> : vector<4x8xf32>
    %155 = vector.multi_reduction <add>, %154, %cst_45 [2] : vector<4x8x8xf32> to vector<4x8xf32>
    %156 = vector.shape_cast %155 : vector<4x8xf32> to vector<4x8x1xf32>
    %157 = tpu.reciprocal %156 {approx = true} : vector<4x8x1xf32> -> vector<4x8x1xf32>
    %158 = vector.broadcast %157 : vector<4x8x1xf32> to vector<4x8x8xf32>
    %159 = arith.mulf %154, %158 : vector<4x8x8xf32>
    %160 = arith.truncf %159 : vector<4x8x8xf32> to vector<4x8x8xbf16>
    %161 = arith.truncf %142 : vector<4x8x8xf32> to vector<4x8x8xbf16>
    %cst_46 = arith.constant dense<0.000000e+00> : vector<4x8x8xf32>
    %162 = tpu.matmul %160, %161, %cst_46 {dimension_numbers = #tpu.dot_dimension_numbers<[2], [1], [1], [2], [0, 0, 0, 1, 1, 2], [0], [0]>} : vector<4x8x8xbf16>, vector<4x8x8xbf16>, vector<4x8x8xf32> -> vector<4x8x8xf32>
    %163 = vector.shape_cast %162 : vector<4x8x8xf32> to vector<32x8xf32>
    %164 = arith.truncf %163 : vector<32x8xf32> to vector<32x8xbf16>
    %165 = vector.extract_strided_slice %37 {offsets = [24, 0], sizes = [8, 32], strides = [1, 1]} : vector<32x32xf32> to vector<8x32xf32>
    %166 = arith.truncf %165 : vector<8x32xf32> to vector<8x32xbf16>
    %cst_47 = arith.constant dense<0.000000e+00> : vector<32x32xf32>
    %167 = tpu.matmul %164, %166, %cst_47 {dimension_numbers = #tpu.dot_dimension_numbers<[1], [0], [0], [1], [0, 0, 1, 1], [], []>} : vector<32x8xbf16>, vector<8x32xbf16>, vector<32x32xf32> -> vector<32x32xf32>
    %168 = arith.addf %136, %167 : vector<32x32xf32>
    %169 = arith.addf %26, %168 : vector<32x32xf32>
    %c0_48 = arith.constant 0 : index
    %c0_49 = arith.constant 0 : index
    %c0_50 = arith.constant 0 : index
    %170 = vector.load %arg8[%c0_48, %c0_49, %c0_50] : memref<2x1x32xf32, #tpu.memory_space<vmem>>, vector<1x1x32xf32>
    %171 = vector.shape_cast %170 : vector<1x1x32xf32> to vector<1x32xf32>
    %c0_51 = arith.constant 0 : index
    %c0_52 = arith.constant 0 : index
    %c0_53 = arith.constant 0 : index
    %172 = vector.load %arg9[%c0_51, %c0_52, %c0_53] : memref<2x1x32xf32, #tpu.memory_space<vmem>>, vector<1x1x32xf32>
    %173 = vector.shape_cast %172 : vector<1x1x32xf32> to vector<1x32xf32>
    %cst_54 = arith.constant dense<0.000000e+00> : vector<32xf32>
    %174 = vector.multi_reduction <add>, %169, %cst_54 [1] : vector<32x32xf32> to vector<32xf32>
    %175 = vector.shape_cast %174 : vector<32xf32> to vector<32x1xf32>
    %cst_55 = arith.constant 3.200000e+01 : f32
    %176 = vector.broadcast %cst_55 : f32 to vector<32x1xf32>
    %177 = arith.divf %175, %176 : vector<32x1xf32>
    %178 = vector.broadcast %177 : vector<32x1xf32> to vector<32x32xf32>
    %179 = arith.subf %169, %178 : vector<32x32xf32>
    %180 = arith.mulf %179, %179 : vector<32x32xf32>
    %cst_56 = arith.constant dense<0.000000e+00> : vector<32xf32>
    %181 = vector.multi_reduction <add>, %180, %cst_56 [1] : vector<32x32xf32> to vector<32xf32>
    %182 = vector.shape_cast %181 : vector<32xf32> to vector<32x1xf32>
    %cst_57 = arith.constant 3.200000e+01 : f32
    %183 = vector.broadcast %cst_57 : f32 to vector<32x1xf32>
    %184 = arith.divf %182, %183 : vector<32x1xf32>
    %185 = vector.broadcast %177 : vector<32x1xf32> to vector<32x32xf32>
    %186 = arith.subf %169, %185 : vector<32x32xf32>
    %cst_58 = arith.constant 9.99999996E-13 : f32
    %187 = vector.broadcast %cst_58 : f32 to vector<32x1xf32>
    %188 = arith.addf %184, %187 : vector<32x1xf32>
    %189 = math.rsqrt %188 : vector<32x1xf32>
    %190 = vector.broadcast %189 : vector<32x1xf32> to vector<32x32xf32>
    %191 = arith.mulf %186, %190 : vector<32x32xf32>
    %192 = vector.broadcast %171 : vector<1x32xf32> to vector<32x32xf32>
    %193 = arith.mulf %191, %192 : vector<32x32xf32>
    %194 = vector.broadcast %173 : vector<1x32xf32> to vector<32x32xf32>
    %195 = arith.addf %193, %194 : vector<32x32xf32>
    %c0_59 = arith.constant 0 : index
    %c0_60 = arith.constant 0 : index
    %c0_61 = arith.constant 0 : index
    %196 = vector.load %arg10[%c0_59, %c0_60, %c0_61] : memref<2x32x64xf32, #tpu.memory_space<vmem>>, vector<1x32x64xf32>
    %197 = vector.shape_cast %196 : vector<1x32x64xf32> to vector<32x64xf32>
    %c0_62 = arith.constant 0 : index
    %c0_63 = arith.constant 0 : index
    %c0_64 = arith.constant 0 : index
    %198 = vector.load %arg11[%c0_62, %c0_63, %c0_64] : memref<2x1x64xf32, #tpu.memory_space<vmem>>, vector<1x1x64xf32>
    %199 = vector.shape_cast %198 : vector<1x1x64xf32> to vector<1x64xf32>
    %200 = arith.truncf %195 : vector<32x32xf32> to vector<32x32xbf16>
    %201 = arith.truncf %197 : vector<32x64xf32> to vector<32x64xbf16>
    %cst_65 = arith.constant dense<0.000000e+00> : vector<32x64xf32>
    %202 = tpu.matmul %200, %201, %cst_65 {dimension_numbers = #tpu.dot_dimension_numbers<[1], [0], [0], [1], [0, 0, 1, 1], [], []>} : vector<32x32xbf16>, vector<32x64xbf16>, vector<32x64xf32> -> vector<32x64xf32>
    %203 = vector.broadcast %199 : vector<1x64xf32> to vector<32x64xf32>
    %204 = arith.addf %202, %203 : vector<32x64xf32>
    %cst_66 = arith.constant 5.000000e-01 : f32
    %205 = vector.broadcast %cst_66 : f32 to vector<32x64xf32>
    %206 = arith.mulf %205, %204 : vector<32x64xf32>
    %cst_67 = arith.constant 4.471500e-02 : f32
    %207 = vector.broadcast %cst_67 : f32 to vector<32x64xf32>
    %208 = arith.mulf %207, %204 : vector<32x64xf32>
    %209 = arith.mulf %208, %204 : vector<32x64xf32>
    %210 = arith.mulf %209, %204 : vector<32x64xf32>
    %211 = arith.addf %204, %210 : vector<32x64xf32>
    %cst_68 = arith.constant 0.797884583 : f32
    %212 = vector.broadcast %cst_68 : f32 to vector<32x64xf32>
    %213 = arith.mulf %212, %211 : vector<32x64xf32>
    %214 = math.tanh %213 : vector<32x64xf32>
    %cst_69 = arith.constant 1.000000e+00 : f32
    %215 = vector.broadcast %cst_69 : f32 to vector<32x64xf32>
    %216 = arith.addf %215, %214 : vector<32x64xf32>
    %217 = arith.mulf %206, %216 : vector<32x64xf32>
    %c0_70 = arith.constant 0 : index
    %c0_71 = arith.constant 0 : index
    %c0_72 = arith.constant 0 : index
    %218 = vector.load %arg12[%c0_70, %c0_71, %c0_72] : memref<2x64x32xf32, #tpu.memory_space<vmem>>, vector<1x64x32xf32>
    %219 = vector.shape_cast %218 : vector<1x64x32xf32> to vector<64x32xf32>
    %c0_73 = arith.constant 0 : index
    %c0_74 = arith.constant 0 : index
    %c0_75 = arith.constant 0 : index
    %220 = vector.load %arg13[%c0_73, %c0_74, %c0_75] : memref<2x1x32xf32, #tpu.memory_space<vmem>>, vector<1x1x32xf32>
    %221 = vector.shape_cast %220 : vector<1x1x32xf32> to vector<1x32xf32>
    %222 = arith.truncf %217 : vector<32x64xf32> to vector<32x64xbf16>
    %223 = arith.truncf %219 : vector<64x32xf32> to vector<64x32xbf16>
    %cst_76 = arith.constant dense<0.000000e+00> : vector<32x32xf32>
    %224 = tpu.matmul %222, %223, %cst_76 {dimension_numbers = #tpu.dot_dimension_numbers<[1], [0], [0], [1], [0, 0, 1, 1], [], []>} : vector<32x64xbf16>, vector<64x32xbf16>, vector<32x32xf32> -> vector<32x32xf32>
    %225 = vector.broadcast %221 : vector<1x32xf32> to vector<32x32xf32>
    %226 = arith.addf %224, %225 : vector<32x32xf32>
    %227 = arith.addf %195, %226 : vector<32x32xf32>
    %c0_77 = arith.constant 0 : index
    %c0_78 = arith.constant 0 : index
    %c0_79 = arith.constant 0 : index
    %228 = vector.load %arg14[%c0_77, %c0_78, %c0_79] : memref<2x1x32xf32, #tpu.memory_space<vmem>>, vector<1x1x32xf32>
    %229 = vector.shape_cast %228 : vector<1x1x32xf32> to vector<1x32xf32>
    %c0_80 = arith.constant 0 : index
    %c0_81 = arith.constant 0 : index
    %c0_82 = arith.constant 0 : index
    %230 = vector.load %arg15[%c0_80, %c0_81, %c0_82] : memref<2x1x32xf32, #tpu.memory_space<vmem>>, vector<1x1x32xf32>
    %231 = vector.shape_cast %230 : vector<1x1x32xf32> to vector<1x32xf32>
    %cst_83 = arith.constant dense<0.000000e+00> : vector<32xf32>
    %232 = vector.multi_reduction <add>, %227, %cst_83 [1] : vector<32x32xf32> to vector<32xf32>
    %233 = vector.shape_cast %232 : vector<32xf32> to vector<32x1xf32>
    %cst_84 = arith.constant 3.200000e+01 : f32
    %234 = vector.broadcast %cst_84 : f32 to vector<32x1xf32>
    %235 = arith.divf %233, %234 : vector<32x1xf32>
    %236 = vector.broadcast %235 : vector<32x1xf32> to vector<32x32xf32>
    %237 = arith.subf %227, %236 : vector<32x32xf32>
    %238 = arith.mulf %237, %237 : vector<32x32xf32>
    %cst_85 = arith.constant dense<0.000000e+00> : vector<32xf32>
    %239 = vector.multi_reduction <add>, %238, %cst_85 [1] : vector<32x32xf32> to vector<32xf32>
    %240 = vector.shape_cast %239 : vector<32xf32> to vector<32x1xf32>
    %cst_86 = arith.constant 3.200000e+01 : f32
    %241 = vector.broadcast %cst_86 : f32 to vector<32x1xf32>
    %242 = arith.divf %240, %241 : vector<32x1xf32>
    %243 = vector.broadcast %235 : vector<32x1xf32> to vector<32x32xf32>
    %244 = arith.subf %227, %243 : vector<32x32xf32>
    %cst_87 = arith.constant 9.99999996E-13 : f32
    %245 = vector.broadcast %cst_87 : f32 to vector<32x1xf32>
    %246 = arith.addf %242, %245 : vector<32x1xf32>
    %247 = math.rsqrt %246 : vector<32x1xf32>
    %248 = vector.broadcast %247 : vector<32x1xf32> to vector<32x32xf32>
    %249 = arith.mulf %244, %248 : vector<32x32xf32>
    %250 = vector.broadcast %229 : vector<1x32xf32> to vector<32x32xf32>
    %251 = arith.mulf %249, %250 : vector<32x32xf32>
    %252 = vector.broadcast %231 : vector<1x32xf32> to vector<32x32xf32>
    %253 = arith.addf %251, %252 : vector<32x32xf32>
    %c1 = arith.constant 1 : index
    %c0_88 = arith.constant 0 : index
    %c0_89 = arith.constant 0 : index
    %254 = vector.load %arg4[%c1, %c0_88, %c0_89] : memref<2x32x96xf32, #tpu.memory_space<vmem>>, vector<1x32x96xf32>
    %255 = vector.shape_cast %254 : vector<1x32x96xf32> to vector<32x96xf32>
    %c1_90 = arith.constant 1 : index
    %c0_91 = arith.constant 0 : index
    %c0_92 = arith.constant 0 : index
    %256 = vector.load %arg5[%c1_90, %c0_91, %c0_92] : memref<2x1x96xf32, #tpu.memory_space<vmem>>, vector<1x1x96xf32>
    %257 = vector.shape_cast %256 : vector<1x1x96xf32> to vector<1x96xf32>
    %258 = arith.truncf %253 : vector<32x32xf32> to vector<32x32xbf16>
    %259 = arith.truncf %255 : vector<32x96xf32> to vector<32x96xbf16>
    %cst_93 = arith.constant dense<0.000000e+00> : vector<32x96xf32>
    %260 = tpu.matmul %258, %259, %cst_93 {dimension_numbers = #tpu.dot_dimension_numbers<[1], [0], [0], [1], [0, 0, 1, 1], [], []>} : vector<32x32xbf16>, vector<32x96xbf16>, vector<32x96xf32> -> vector<32x96xf32>
    %261 = vector.broadcast %257 : vector<1x96xf32> to vector<32x96xf32>
    %262 = arith.addf %260, %261 : vector<32x96xf32>
    %c1_94 = arith.constant 1 : index
    %c0_95 = arith.constant 0 : index
    %c0_96 = arith.constant 0 : index
    %263 = vector.load %arg6[%c1_94, %c0_95, %c0_96] : memref<2x32x32xf32, #tpu.memory_space<vmem>>, vector<1x32x32xf32>
    %264 = vector.shape_cast %263 : vector<1x32x32xf32> to vector<32x32xf32>
    %c1_97 = arith.constant 1 : index
    %c0_98 = arith.constant 0 : index
    %c0_99 = arith.constant 0 : index
    %265 = vector.load %arg7[%c1_97, %c0_98, %c0_99] : memref<2x1x32xf32, #tpu.memory_space<vmem>>, vector<1x1x32xf32>
    %266 = vector.shape_cast %265 : vector<1x1x32xf32> to vector<1x32xf32>
    %267 = vector.extract_strided_slice %262 {offsets = [0, 0], sizes = [32, 8], strides = [1, 1]} : vector<32x96xf32> to vector<32x8xf32>
    %268 = vector.shape_cast %267 : vector<32x8xf32> to vector<4x8x8xf32>
    %269 = vector.extract_strided_slice %262 {offsets = [0, 32], sizes = [32, 8], strides = [1, 1]} : vector<32x96xf32> to vector<32x8xf32>
    %270 = vector.shape_cast %269 : vector<32x8xf32> to vector<4x8x8xf32>
    %271 = vector.extract_strided_slice %262 {offsets = [0, 64], sizes = [32, 8], strides = [1, 1]} : vector<32x96xf32> to vector<32x8xf32>
    %272 = vector.shape_cast %271 : vector<32x8xf32> to vector<4x8x8xf32>
    %273 = arith.truncf %268 : vector<4x8x8xf32> to vector<4x8x8xbf16>
    %274 = arith.truncf %270 : vector<4x8x8xf32> to vector<4x8x8xbf16>
    %cst_100 = arith.constant dense<0.000000e+00> : vector<4x8x8xf32>
    %275 = tpu.matmul %273, %274, %cst_100 {dimension_numbers = #tpu.dot_dimension_numbers<[2], [2], [1], [1], [0, 0, 0, 1, 1, 1], [0], [0]>} : vector<4x8x8xbf16>, vector<4x8x8xbf16>, vector<4x8x8xf32> -> vector<4x8x8xf32>
    %cst_101 = arith.constant 0.353553385 : f32
    %276 = vector.broadcast %cst_101 : f32 to vector<4x8x8xf32>
    %277 = arith.mulf %275, %276 : vector<4x8x8xf32>
    %278 = vector.broadcast %1 : vector<4x1x8xf32> to vector<4x8x8xf32>
    %279 = arith.addf %277, %278 : vector<4x8x8xf32>
    %cst_102 = arith.constant dense<0xFF800000> : vector<4x8xf32>
    %280 = vector.multi_reduction <maximumf>, %279, %cst_102 [2] : vector<4x8x8xf32> to vector<4x8xf32>
    %281 = vector.shape_cast %280 : vector<4x8xf32> to vector<4x8x1xf32>
    %282 = vector.broadcast %281 : vector<4x8x1xf32> to vector<4x8x8xf32>
    %283 = arith.subf %279, %282 : vector<4x8x8xf32>
    %284 = math.exp %283 : vector<4x8x8xf32>
    %cst_103 = arith.constant dense<0.000000e+00> : vector<4x8xf32>
    %285 = vector.multi_reduction <add>, %284, %cst_103 [2] : vector<4x8x8xf32> to vector<4x8xf32>
    %286 = vector.shape_cast %285 : vector<4x8xf32> to vector<4x8x1xf32>
    %287 = tpu.reciprocal %286 {approx = true} : vector<4x8x1xf32> -> vector<4x8x1xf32>
    %288 = vector.broadcast %287 : vector<4x8x1xf32> to vector<4x8x8xf32>
    %289 = arith.mulf %284, %288 : vector<4x8x8xf32>
    %290 = arith.truncf %289 : vector<4x8x8xf32> to vector<4x8x8xbf16>
    %291 = arith.truncf %272 : vector<4x8x8xf32> to vector<4x8x8xbf16>
    %cst_104 = arith.constant dense<0.000000e+00> : vector<4x8x8xf32>
    %292 = tpu.matmul %290, %291, %cst_104 {dimension_numbers = #tpu.dot_dimension_numbers<[2], [1], [1], [2], [0, 0, 0, 1, 1, 2], [0], [0]>} : vector<4x8x8xbf16>, vector<4x8x8xbf16>, vector<4x8x8xf32> -> vector<4x8x8xf32>
    %293 = vector.shape_cast %292 : vector<4x8x8xf32> to vector<32x8xf32>
    %294 = arith.truncf %293 : vector<32x8xf32> to vector<32x8xbf16>
    %295 = vector.extract_strided_slice %264 {offsets = [0, 0], sizes = [8, 32], strides = [1, 1]} : vector<32x32xf32> to vector<8x32xf32>
    %296 = arith.truncf %295 : vector<8x32xf32> to vector<8x32xbf16>
    %cst_105 = arith.constant dense<0.000000e+00> : vector<32x32xf32>
    %297 = tpu.matmul %294, %296, %cst_105 {dimension_numbers = #tpu.dot_dimension_numbers<[1], [0], [0], [1], [0, 0, 1, 1], [], []>} : vector<32x8xbf16>, vector<8x32xbf16>, vector<32x32xf32> -> vector<32x32xf32>
    %298 = vector.broadcast %266 : vector<1x32xf32> to vector<32x32xf32>
    %299 = arith.addf %298, %297 : vector<32x32xf32>
    %300 = vector.extract_strided_slice %262 {offsets = [0, 8], sizes = [32, 8], strides = [1, 1]} : vector<32x96xf32> to vector<32x8xf32>
    %301 = vector.shape_cast %300 : vector<32x8xf32> to vector<4x8x8xf32>
    %302 = vector.extract_strided_slice %262 {offsets = [0, 40], sizes = [32, 8], strides = [1, 1]} : vector<32x96xf32> to vector<32x8xf32>
    %303 = vector.shape_cast %302 : vector<32x8xf32> to vector<4x8x8xf32>
    %304 = vector.extract_strided_slice %262 {offsets = [0, 72], sizes = [32, 8], strides = [1, 1]} : vector<32x96xf32> to vector<32x8xf32>
    %305 = vector.shape_cast %304 : vector<32x8xf32> to vector<4x8x8xf32>
    %306 = arith.truncf %301 : vector<4x8x8xf32> to vector<4x8x8xbf16>
    %307 = arith.truncf %303 : vector<4x8x8xf32> to vector<4x8x8xbf16>
    %cst_106 = arith.constant dense<0.000000e+00> : vector<4x8x8xf32>
    %308 = tpu.matmul %306, %307, %cst_106 {dimension_numbers = #tpu.dot_dimension_numbers<[2], [2], [1], [1], [0, 0, 0, 1, 1, 1], [0], [0]>} : vector<4x8x8xbf16>, vector<4x8x8xbf16>, vector<4x8x8xf32> -> vector<4x8x8xf32>
    %cst_107 = arith.constant 0.353553385 : f32
    %309 = vector.broadcast %cst_107 : f32 to vector<4x8x8xf32>
    %310 = arith.mulf %308, %309 : vector<4x8x8xf32>
    %311 = vector.broadcast %1 : vector<4x1x8xf32> to vector<4x8x8xf32>
    %312 = arith.addf %310, %311 : vector<4x8x8xf32>
    %cst_108 = arith.constant dense<0xFF800000> : vector<4x8xf32>
    %313 = vector.multi_reduction <maximumf>, %312, %cst_108 [2] : vector<4x8x8xf32> to vector<4x8xf32>
    %314 = vector.shape_cast %313 : vector<4x8xf32> to vector<4x8x1xf32>
    %315 = vector.broadcast %314 : vector<4x8x1xf32> to vector<4x8x8xf32>
    %316 = arith.subf %312, %315 : vector<4x8x8xf32>
    %317 = math.exp %316 : vector<4x8x8xf32>
    %cst_109 = arith.constant dense<0.000000e+00> : vector<4x8xf32>
    %318 = vector.multi_reduction <add>, %317, %cst_109 [2] : vector<4x8x8xf32> to vector<4x8xf32>
    %319 = vector.shape_cast %318 : vector<4x8xf32> to vector<4x8x1xf32>
    %320 = tpu.reciprocal %319 {approx = true} : vector<4x8x1xf32> -> vector<4x8x1xf32>
    %321 = vector.broadcast %320 : vector<4x8x1xf32> to vector<4x8x8xf32>
    %322 = arith.mulf %317, %321 : vector<4x8x8xf32>
    %323 = arith.truncf %322 : vector<4x8x8xf32> to vector<4x8x8xbf16>
    %324 = arith.truncf %305 : vector<4x8x8xf32> to vector<4x8x8xbf16>
    %cst_110 = arith.constant dense<0.000000e+00> : vector<4x8x8xf32>
    %325 = tpu.matmul %323, %324, %cst_110 {dimension_numbers = #tpu.dot_dimension_numbers<[2], [1], [1], [2], [0, 0, 0, 1, 1, 2], [0], [0]>} : vector<4x8x8xbf16>, vector<4x8x8xbf16>, vector<4x8x8xf32> -> vector<4x8x8xf32>
    %326 = vector.shape_cast %325 : vector<4x8x8xf32> to vector<32x8xf32>
    %327 = arith.truncf %326 : vector<32x8xf32> to vector<32x8xbf16>
    %328 = vector.extract_strided_slice %264 {offsets = [8, 0], sizes = [8, 32], strides = [1, 1]} : vector<32x32xf32> to vector<8x32xf32>
    %329 = arith.truncf %328 : vector<8x32xf32> to vector<8x32xbf16>
    %cst_111 = arith.constant dense<0.000000e+00> : vector<32x32xf32>
    %330 = tpu.matmul %327, %329, %cst_111 {dimension_numbers = #tpu.dot_dimension_numbers<[1], [0], [0], [1], [0, 0, 1, 1], [], []>} : vector<32x8xbf16>, vector<8x32xbf16>, vector<32x32xf32> -> vector<32x32xf32>
    %331 = arith.addf %299, %330 : vector<32x32xf32>
    %332 = vector.extract_strided_slice %262 {offsets = [0, 16], sizes = [32, 8], strides = [1, 1]} : vector<32x96xf32> to vector<32x8xf32>
    %333 = vector.shape_cast %332 : vector<32x8xf32> to vector<4x8x8xf32>
    %334 = vector.extract_strided_slice %262 {offsets = [0, 48], sizes = [32, 8], strides = [1, 1]} : vector<32x96xf32> to vector<32x8xf32>
    %335 = vector.shape_cast %334 : vector<32x8xf32> to vector<4x8x8xf32>
    %336 = vector.extract_strided_slice %262 {offsets = [0, 80], sizes = [32, 8], strides = [1, 1]} : vector<32x96xf32> to vector<32x8xf32>
    %337 = vector.shape_cast %336 : vector<32x8xf32> to vector<4x8x8xf32>
    %338 = arith.truncf %333 : vector<4x8x8xf32> to vector<4x8x8xbf16>
    %339 = arith.truncf %335 : vector<4x8x8xf32> to vector<4x8x8xbf16>
    %cst_112 = arith.constant dense<0.000000e+00> : vector<4x8x8xf32>
    %340 = tpu.matmul %338, %339, %cst_112 {dimension_numbers = #tpu.dot_dimension_numbers<[2], [2], [1], [1], [0, 0, 0, 1, 1, 1], [0], [0]>} : vector<4x8x8xbf16>, vector<4x8x8xbf16>, vector<4x8x8xf32> -> vector<4x8x8xf32>
    %cst_113 = arith.constant 0.353553385 : f32
    %341 = vector.broadcast %cst_113 : f32 to vector<4x8x8xf32>
    %342 = arith.mulf %340, %341 : vector<4x8x8xf32>
    %343 = vector.broadcast %1 : vector<4x1x8xf32> to vector<4x8x8xf32>
    %344 = arith.addf %342, %343 : vector<4x8x8xf32>
    %cst_114 = arith.constant dense<0xFF800000> : vector<4x8xf32>
    %345 = vector.multi_reduction <maximumf>, %344, %cst_114 [2] : vector<4x8x8xf32> to vector<4x8xf32>
    %346 = vector.shape_cast %345 : vector<4x8xf32> to vector<4x8x1xf32>
    %347 = vector.broadcast %346 : vector<4x8x1xf32> to vector<4x8x8xf32>
    %348 = arith.subf %344, %347 : vector<4x8x8xf32>
    %349 = math.exp %348 : vector<4x8x8xf32>
    %cst_115 = arith.constant dense<0.000000e+00> : vector<4x8xf32>
    %350 = vector.multi_reduction <add>, %349, %cst_115 [2] : vector<4x8x8xf32> to vector<4x8xf32>
    %351 = vector.shape_cast %350 : vector<4x8xf32> to vector<4x8x1xf32>
    %352 = tpu.reciprocal %351 {approx = true} : vector<4x8x1xf32> -> vector<4x8x1xf32>
    %353 = vector.broadcast %352 : vector<4x8x1xf32> to vector<4x8x8xf32>
    %354 = arith.mulf %349, %353 : vector<4x8x8xf32>
    %355 = arith.truncf %354 : vector<4x8x8xf32> to vector<4x8x8xbf16>
    %356 = arith.truncf %337 : vector<4x8x8xf32> to vector<4x8x8xbf16>
    %cst_116 = arith.constant dense<0.000000e+00> : vector<4x8x8xf32>
    %357 = tpu.matmul %355, %356, %cst_116 {dimension_numbers = #tpu.dot_dimension_numbers<[2], [1], [1], [2], [0, 0, 0, 1, 1, 2], [0], [0]>} : vector<4x8x8xbf16>, vector<4x8x8xbf16>, vector<4x8x8xf32> -> vector<4x8x8xf32>
    %358 = vector.shape_cast %357 : vector<4x8x8xf32> to vector<32x8xf32>
    %359 = arith.truncf %358 : vector<32x8xf32> to vector<32x8xbf16>
    %360 = vector.extract_strided_slice %264 {offsets = [16, 0], sizes = [8, 32], strides = [1, 1]} : vector<32x32xf32> to vector<8x32xf32>
    %361 = arith.truncf %360 : vector<8x32xf32> to vector<8x32xbf16>
    %cst_117 = arith.constant dense<0.000000e+00> : vector<32x32xf32>
    %362 = tpu.matmul %359, %361, %cst_117 {dimension_numbers = #tpu.dot_dimension_numbers<[1], [0], [0], [1], [0, 0, 1, 1], [], []>} : vector<32x8xbf16>, vector<8x32xbf16>, vector<32x32xf32> -> vector<32x32xf32>
    %363 = arith.addf %331, %362 : vector<32x32xf32>
    %364 = vector.extract_strided_slice %262 {offsets = [0, 24], sizes = [32, 8], strides = [1, 1]} : vector<32x96xf32> to vector<32x8xf32>
    %365 = vector.shape_cast %364 : vector<32x8xf32> to vector<4x8x8xf32>
    %366 = vector.extract_strided_slice %262 {offsets = [0, 56], sizes = [32, 8], strides = [1, 1]} : vector<32x96xf32> to vector<32x8xf32>
    %367 = vector.shape_cast %366 : vector<32x8xf32> to vector<4x8x8xf32>
    %368 = vector.extract_strided_slice %262 {offsets = [0, 88], sizes = [32, 8], strides = [1, 1]} : vector<32x96xf32> to vector<32x8xf32>
    %369 = vector.shape_cast %368 : vector<32x8xf32> to vector<4x8x8xf32>
    %370 = arith.truncf %365 : vector<4x8x8xf32> to vector<4x8x8xbf16>
    %371 = arith.truncf %367 : vector<4x8x8xf32> to vector<4x8x8xbf16>
    %cst_118 = arith.constant dense<0.000000e+00> : vector<4x8x8xf32>
    %372 = tpu.matmul %370, %371, %cst_118 {dimension_numbers = #tpu.dot_dimension_numbers<[2], [2], [1], [1], [0, 0, 0, 1, 1, 1], [0], [0]>} : vector<4x8x8xbf16>, vector<4x8x8xbf16>, vector<4x8x8xf32> -> vector<4x8x8xf32>
    %cst_119 = arith.constant 0.353553385 : f32
    %373 = vector.broadcast %cst_119 : f32 to vector<4x8x8xf32>
    %374 = arith.mulf %372, %373 : vector<4x8x8xf32>
    %375 = vector.broadcast %1 : vector<4x1x8xf32> to vector<4x8x8xf32>
    %376 = arith.addf %374, %375 : vector<4x8x8xf32>
    %cst_120 = arith.constant dense<0xFF800000> : vector<4x8xf32>
    %377 = vector.multi_reduction <maximumf>, %376, %cst_120 [2] : vector<4x8x8xf32> to vector<4x8xf32>
    %378 = vector.shape_cast %377 : vector<4x8xf32> to vector<4x8x1xf32>
    %379 = vector.broadcast %378 : vector<4x8x1xf32> to vector<4x8x8xf32>
    %380 = arith.subf %376, %379 : vector<4x8x8xf32>
    %381 = math.exp %380 : vector<4x8x8xf32>
    %cst_121 = arith.constant dense<0.000000e+00> : vector<4x8xf32>
    %382 = vector.multi_reduction <add>, %381, %cst_121 [2] : vector<4x8x8xf32> to vector<4x8xf32>
    %383 = vector.shape_cast %382 : vector<4x8xf32> to vector<4x8x1xf32>
    %384 = tpu.reciprocal %383 {approx = true} : vector<4x8x1xf32> -> vector<4x8x1xf32>
    %385 = vector.broadcast %384 : vector<4x8x1xf32> to vector<4x8x8xf32>
    %386 = arith.mulf %381, %385 : vector<4x8x8xf32>
    %387 = arith.truncf %386 : vector<4x8x8xf32> to vector<4x8x8xbf16>
    %388 = arith.truncf %369 : vector<4x8x8xf32> to vector<4x8x8xbf16>
    %cst_122 = arith.constant dense<0.000000e+00> : vector<4x8x8xf32>
    %389 = tpu.matmul %387, %388, %cst_122 {dimension_numbers = #tpu.dot_dimension_numbers<[2], [1], [1], [2], [0, 0, 0, 1, 1, 2], [0], [0]>} : vector<4x8x8xbf16>, vector<4x8x8xbf16>, vector<4x8x8xf32> -> vector<4x8x8xf32>
    %390 = vector.shape_cast %389 : vector<4x8x8xf32> to vector<32x8xf32>
    %391 = arith.truncf %390 : vector<32x8xf32> to vector<32x8xbf16>
    %392 = vector.extract_strided_slice %264 {offsets = [24, 0], sizes = [8, 32], strides = [1, 1]} : vector<32x32xf32> to vector<8x32xf32>
    %393 = arith.truncf %392 : vector<8x32xf32> to vector<8x32xbf16>
    %cst_123 = arith.constant dense<0.000000e+00> : vector<32x32xf32>
    %394 = tpu.matmul %391, %393, %cst_123 {dimension_numbers = #tpu.dot_dimension_numbers<[1], [0], [0], [1], [0, 0, 1, 1], [], []>} : vector<32x8xbf16>, vector<8x32xbf16>, vector<32x32xf32> -> vector<32x32xf32>
    %395 = arith.addf %363, %394 : vector<32x32xf32>
    %396 = arith.addf %253, %395 : vector<32x32xf32>
    %c1_124 = arith.constant 1 : index
    %c0_125 = arith.constant 0 : index
    %c0_126 = arith.constant 0 : index
    %397 = vector.load %arg8[%c1_124, %c0_125, %c0_126] : memref<2x1x32xf32, #tpu.memory_space<vmem>>, vector<1x1x32xf32>
    %398 = vector.shape_cast %397 : vector<1x1x32xf32> to vector<1x32xf32>
    %c1_127 = arith.constant 1 : index
    %c0_128 = arith.constant 0 : index
    %c0_129 = arith.constant 0 : index
    %399 = vector.load %arg9[%c1_127, %c0_128, %c0_129] : memref<2x1x32xf32, #tpu.memory_space<vmem>>, vector<1x1x32xf32>
    %400 = vector.shape_cast %399 : vector<1x1x32xf32> to vector<1x32xf32>
    %cst_130 = arith.constant dense<0.000000e+00> : vector<32xf32>
    %401 = vector.multi_reduction <add>, %396, %cst_130 [1] : vector<32x32xf32> to vector<32xf32>
    %402 = vector.shape_cast %401 : vector<32xf32> to vector<32x1xf32>
    %cst_131 = arith.constant 3.200000e+01 : f32
    %403 = vector.broadcast %cst_131 : f32 to vector<32x1xf32>
    %404 = arith.divf %402, %403 : vector<32x1xf32>
    %405 = vector.broadcast %404 : vector<32x1xf32> to vector<32x32xf32>
    %406 = arith.subf %396, %405 : vector<32x32xf32>
    %407 = arith.mulf %406, %406 : vector<32x32xf32>
    %cst_132 = arith.constant dense<0.000000e+00> : vector<32xf32>
    %408 = vector.multi_reduction <add>, %407, %cst_132 [1] : vector<32x32xf32> to vector<32xf32>
    %409 = vector.shape_cast %408 : vector<32xf32> to vector<32x1xf32>
    %cst_133 = arith.constant 3.200000e+01 : f32
    %410 = vector.broadcast %cst_133 : f32 to vector<32x1xf32>
    %411 = arith.divf %409, %410 : vector<32x1xf32>
    %412 = vector.broadcast %404 : vector<32x1xf32> to vector<32x32xf32>
    %413 = arith.subf %396, %412 : vector<32x32xf32>
    %cst_134 = arith.constant 9.99999996E-13 : f32
    %414 = vector.broadcast %cst_134 : f32 to vector<32x1xf32>
    %415 = arith.addf %411, %414 : vector<32x1xf32>
    %416 = math.rsqrt %415 : vector<32x1xf32>
    %417 = vector.broadcast %416 : vector<32x1xf32> to vector<32x32xf32>
    %418 = arith.mulf %413, %417 : vector<32x32xf32>
    %419 = vector.broadcast %398 : vector<1x32xf32> to vector<32x32xf32>
    %420 = arith.mulf %418, %419 : vector<32x32xf32>
    %421 = vector.broadcast %400 : vector<1x32xf32> to vector<32x32xf32>
    %422 = arith.addf %420, %421 : vector<32x32xf32>
    %c1_135 = arith.constant 1 : index
    %c0_136 = arith.constant 0 : index
    %c0_137 = arith.constant 0 : index
    %423 = vector.load %arg10[%c1_135, %c0_136, %c0_137] : memref<2x32x64xf32, #tpu.memory_space<vmem>>, vector<1x32x64xf32>
    %424 = vector.shape_cast %423 : vector<1x32x64xf32> to vector<32x64xf32>
    %c1_138 = arith.constant 1 : index
    %c0_139 = arith.constant 0 : index
    %c0_140 = arith.constant 0 : index
    %425 = vector.load %arg11[%c1_138, %c0_139, %c0_140] : memref<2x1x64xf32, #tpu.memory_space<vmem>>, vector<1x1x64xf32>
    %426 = vector.shape_cast %425 : vector<1x1x64xf32> to vector<1x64xf32>
    %427 = arith.truncf %422 : vector<32x32xf32> to vector<32x32xbf16>
    %428 = arith.truncf %424 : vector<32x64xf32> to vector<32x64xbf16>
    %cst_141 = arith.constant dense<0.000000e+00> : vector<32x64xf32>
    %429 = tpu.matmul %427, %428, %cst_141 {dimension_numbers = #tpu.dot_dimension_numbers<[1], [0], [0], [1], [0, 0, 1, 1], [], []>} : vector<32x32xbf16>, vector<32x64xbf16>, vector<32x64xf32> -> vector<32x64xf32>
    %430 = vector.broadcast %426 : vector<1x64xf32> to vector<32x64xf32>
    %431 = arith.addf %429, %430 : vector<32x64xf32>
    %cst_142 = arith.constant 5.000000e-01 : f32
    %432 = vector.broadcast %cst_142 : f32 to vector<32x64xf32>
    %433 = arith.mulf %432, %431 : vector<32x64xf32>
    %cst_143 = arith.constant 4.471500e-02 : f32
    %434 = vector.broadcast %cst_143 : f32 to vector<32x64xf32>
    %435 = arith.mulf %434, %431 : vector<32x64xf32>
    %436 = arith.mulf %435, %431 : vector<32x64xf32>
    %437 = arith.mulf %436, %431 : vector<32x64xf32>
    %438 = arith.addf %431, %437 : vector<32x64xf32>
    %cst_144 = arith.constant 0.797884583 : f32
    %439 = vector.broadcast %cst_144 : f32 to vector<32x64xf32>
    %440 = arith.mulf %439, %438 : vector<32x64xf32>
    %441 = math.tanh %440 : vector<32x64xf32>
    %cst_145 = arith.constant 1.000000e+00 : f32
    %442 = vector.broadcast %cst_145 : f32 to vector<32x64xf32>
    %443 = arith.addf %442, %441 : vector<32x64xf32>
    %444 = arith.mulf %433, %443 : vector<32x64xf32>
    %c1_146 = arith.constant 1 : index
    %c0_147 = arith.constant 0 : index
    %c0_148 = arith.constant 0 : index
    %445 = vector.load %arg12[%c1_146, %c0_147, %c0_148] : memref<2x64x32xf32, #tpu.memory_space<vmem>>, vector<1x64x32xf32>
    %446 = vector.shape_cast %445 : vector<1x64x32xf32> to vector<64x32xf32>
    %c1_149 = arith.constant 1 : index
    %c0_150 = arith.constant 0 : index
    %c0_151 = arith.constant 0 : index
    %447 = vector.load %arg13[%c1_149, %c0_150, %c0_151] : memref<2x1x32xf32, #tpu.memory_space<vmem>>, vector<1x1x32xf32>
    %448 = vector.shape_cast %447 : vector<1x1x32xf32> to vector<1x32xf32>
    %449 = arith.truncf %444 : vector<32x64xf32> to vector<32x64xbf16>
    %450 = arith.truncf %446 : vector<64x32xf32> to vector<64x32xbf16>
    %cst_152 = arith.constant dense<0.000000e+00> : vector<32x32xf32>
    %451 = tpu.matmul %449, %450, %cst_152 {dimension_numbers = #tpu.dot_dimension_numbers<[1], [0], [0], [1], [0, 0, 1, 1], [], []>} : vector<32x64xbf16>, vector<64x32xbf16>, vector<32x32xf32> -> vector<32x32xf32>
    %452 = vector.broadcast %448 : vector<1x32xf32> to vector<32x32xf32>
    %453 = arith.addf %451, %452 : vector<32x32xf32>
    %454 = arith.addf %422, %453 : vector<32x32xf32>
    %c1_153 = arith.constant 1 : index
    %c0_154 = arith.constant 0 : index
    %c0_155 = arith.constant 0 : index
    %455 = vector.load %arg14[%c1_153, %c0_154, %c0_155] : memref<2x1x32xf32, #tpu.memory_space<vmem>>, vector<1x1x32xf32>
    %456 = vector.shape_cast %455 : vector<1x1x32xf32> to vector<1x32xf32>
    %c1_156 = arith.constant 1 : index
    %c0_157 = arith.constant 0 : index
    %c0_158 = arith.constant 0 : index
    %457 = vector.load %arg15[%c1_156, %c0_157, %c0_158] : memref<2x1x32xf32, #tpu.memory_space<vmem>>, vector<1x1x32xf32>
    %458 = vector.shape_cast %457 : vector<1x1x32xf32> to vector<1x32xf32>
    %cst_159 = arith.constant dense<0.000000e+00> : vector<32xf32>
    %459 = vector.multi_reduction <add>, %454, %cst_159 [1] : vector<32x32xf32> to vector<32xf32>
    %460 = vector.shape_cast %459 : vector<32xf32> to vector<32x1xf32>
    %cst_160 = arith.constant 3.200000e+01 : f32
    %461 = vector.broadcast %cst_160 : f32 to vector<32x1xf32>
    %462 = arith.divf %460, %461 : vector<32x1xf32>
    %463 = vector.broadcast %462 : vector<32x1xf32> to vector<32x32xf32>
    %464 = arith.subf %454, %463 : vector<32x32xf32>
    %465 = arith.mulf %464, %464 : vector<32x32xf32>
    %cst_161 = arith.constant dense<0.000000e+00> : vector<32xf32>
    %466 = vector.multi_reduction <add>, %465, %cst_161 [1] : vector<32x32xf32> to vector<32xf32>
    %467 = vector.shape_cast %466 : vector<32xf32> to vector<32x1xf32>
    %cst_162 = arith.constant 3.200000e+01 : f32
    %468 = vector.broadcast %cst_162 : f32 to vector<32x1xf32>
    %469 = arith.divf %467, %468 : vector<32x1xf32>
    %470 = vector.broadcast %462 : vector<32x1xf32> to vector<32x32xf32>
    %471 = arith.subf %454, %470 : vector<32x32xf32>
    %cst_163 = arith.constant 9.99999996E-13 : f32
    %472 = vector.broadcast %cst_163 : f32 to vector<32x1xf32>
    %473 = arith.addf %469, %472 : vector<32x1xf32>
    %474 = math.rsqrt %473 : vector<32x1xf32>
    %475 = vector.broadcast %474 : vector<32x1xf32> to vector<32x32xf32>
    %476 = arith.mulf %471, %475 : vector<32x32xf32>
    %477 = vector.broadcast %456 : vector<1x32xf32> to vector<32x32xf32>
    %478 = arith.mulf %476, %477 : vector<32x32xf32>
    %479 = vector.broadcast %458 : vector<1x32xf32> to vector<32x32xf32>
    %480 = arith.addf %478, %479 : vector<32x32xf32>
    %481 = vector.shape_cast %480 : vector<32x32xf32> to vector<4x8x32xf32>
    %482 = vector.extract_strided_slice %481 {offsets = [0, 0, 0], sizes = [4, 1, 32], strides = [1, 1, 1]} : vector<4x8x32xf32> to vector<4x1x32xf32>
    %483 = vector.shape_cast %482 : vector<4x1x32xf32> to vector<4x32xf32>
    %c0_164 = arith.constant 0 : index
    %c0_165 = arith.constant 0 : index
    %484 = vector.load %arg18[%c0_164, %c0_165] : memref<4x32xf32, #tpu.memory_space<vmem>>, vector<4x32xf32>
    tpu.vector_store %arg18[%c0_164, %c0_165], %483 {strides = array<i32>} : memref<4x32xf32, #tpu.memory_space<vmem>>, vector<4x32xf32>,
    return
  }
}

</mosaic_0001>

<llo_original>
// kernel: simcse_forward.1
$region0: #{simcse_forward.1}
  #allocation0 [shape = 'u32[]', space=smem, size = 0x4, offset = 0x4, fixed_abs, tag = 'smem constant byte address 0x4 - core index']
  #allocation1 [shape = 'u32[144,128]{1,0:T(1,128)}', space=vmem, size = 0x12000, scoped, tag = 'internal scratch']
  %s0 = inlined_call_operand.vmem [shape: f32[32,32], index: 0, kind: input, shape index: {}]
  %s1 = inlined_call_operand.vmem [shape: f32[4,8], index: 1, kind: input, shape index: {}]
  %s2 = inlined_call_operand.vmem [shape: f32[1,32], index: 2, kind: input, shape index: {}]
  %s3 = inlined_call_operand.vmem [shape: f32[1,32], index: 3, kind: input, shape index: {}]
  %s4 = inlined_call_operand.vmem [shape: f32[2,32,96], index: 4, kind: input, shape index: {}]
  %s5 = inlined_call_operand.vmem [shape: f32[2,1,96], index: 5, kind: input, shape index: {}]
  %s6 = inlined_call_operand.vmem [shape: f32[2,32,32], index: 6, kind: input, shape index: {}]
  %s7 = inlined_call_operand.vmem [shape: f32[2,1,32], index: 7, kind: input, shape index: {}]
  %s8 = inlined_call_operand.vmem [shape: f32[2,1,32], index: 8, kind: input, shape index: {}]
  %s9 = inlined_call_operand.vmem [shape: f32[2,1,32], index: 9, kind: input, shape index: {}]
  %s10 = inlined_call_operand.vmem [shape: f32[2,32,64], index: 10, kind: input, shape index: {}]
  %s11 = inlined_call_operand.vmem [shape: f32[2,1,64], index: 11, kind: input, shape index: {}]
  %s12 = inlined_call_operand.vmem [shape: f32[2,64,32], index: 12, kind: input, shape index: {}]
  %s13 = inlined_call_operand.vmem [shape: f32[2,1,32], index: 13, kind: input, shape index: {}]
  %s14 = inlined_call_operand.vmem [shape: f32[2,1,32], index: 14, kind: input, shape index: {}]
  %s15 = inlined_call_operand.vmem [shape: f32[2,1,32], index: 15, kind: input, shape index: {}]
  %s16 = inlined_call_operand.vmem [shape: f32[32,32], index: 16, kind: input, shape index: {}]
  %s17 = inlined_call_operand.vmem [shape: f32[1,32], index: 17, kind: input, shape index: {}]
  %s18 = inlined_call_operand.hbm [shape: f32[4,32], index: 18, kind: output, shape index: {}]
  %s19 = sld [smem:[#allocation0]]
  $region82: #{simcse_forward.1} parent=0
    _
  %s21 = ssub.s32 1, %s19
  %s22 = scalar_select 0, %s21, %s19
  $region1: #{simcse_forward.1} parent=0
    #allocation2 [shape = 'u8[2048]{0}', space=vmem, size = 0x800, scoped, tag = 'output window, operand 0, single buffered']
    #allocation3 [shape = 's32[1]{0}', space=sflag, size = 0x4, scoped, tag = 'scoped memory for simcse_forward.1']
    %23 = vsyncpa [#allocation3], 0
    // Predicated region
    $region2: #{simcse_forward.1} parent=1 // pred_check
      _
    $region3: #{simcse_forward.1} parent=1 // pred_check_branch
      %25 = sbr.rel (0) target = $region5
    $region4: #{simcse_forward.1} parent=1 // pred_region
      _
    $region5: #{simcse_forward.1} parent=1 // pred_fallthru
      _
    // Predicated region
    $region6: #{simcse_forward.1} parent=1 // pred_check
      _
    $region7: #{simcse_forward.1} parent=1 // pred_check_branch
      %27 = sbr.rel (0) target = $region9
    $region8: #{simcse_forward.1} parent=1 // pred_region
      _
    $region9: #{simcse_forward.1} parent=1 // pred_fallthru
      _
    // Predicated region
    $region10: #{simcse_forward.1} parent=1 // pred_check
      _
    $region11: #{simcse_forward.1} parent=1 // pred_check_branch
      %29 = sbr.rel (0) target = $region13
    $region12: #{simcse_forward.1} parent=1 // pred_region
      _
    $region13: #{simcse_forward.1} parent=1 // pred_fallthru
      _
    // Predicated region
    $region14: #{simcse_forward.1} parent=1 // pred_check
      _
    $region15: #{simcse_forward.1} parent=1 // pred_check_branch
      %31 = sbr.rel (0) target = $region17
    $region16: #{simcse_forward.1} parent=1 // pred_region
      _
    $region17: #{simcse_forward.1} parent=1 // pred_fallthru
      _
    // Predicated region
    $region18: #{simcse_forward.1} parent=1 // pred_check
      _
    $region19: #{simcse_forward.1} parent=1 // pred_check_branch
      %33 = sbr.rel (0) target = $region21
    $region20: #{simcse_forward.1} parent=1 // pred_region
      _
    $region21: #{simcse_forward.1} parent=1 // pred_fallthru
      _
    // Predicated region
    $region22: #{simcse_forward.1} parent=1 // pred_check
      _
    $region23: #{simcse_forward.1} parent=1 // pred_check_branch
      %35 = sbr.rel (0) target = $region25
    $region24: #{simcse_forward.1} parent=1 // pred_region
      _
    $region25: #{simcse_forward.1} parent=1 // pred_fallthru
      _
    // Predicated region
    $region26: #{simcse_forward.1} parent=1 // pred_check
      _
    $region27: #{simcse_forward.1} parent=1 // pred_check_branch
      %37 = sbr.rel (0) target = $region29
    $region28: #{simcse_forward.1} parent=1 // pred_region
      _
    $region29: #{simcse_forward.1} parent=1 // pred_fallthru
      _
    // Predicated region
    $region30: #{simcse_forward.1} parent=1 // pred_check
      _
    $region31: #{simcse_forward.1} parent=1 // pred_check_branch
      %39 = sbr.rel (0) target = $region33
    $region32: #{simcse_forward.1} parent=1 // pred_region
      _
    $region33: #{simcse_forward.1} parent=1 // pred_fallthru
      _
    // Predicated region
    $region34: #{simcse_forward.1} parent=1 // pred_check
      _
    $region35: #{simcse_forward.1} parent=1 // pred_check_branch
      %41 = sbr.rel (0) target = $region37
    $region36: #{simcse_forward.1} parent=1 // pred_region
      _
    $region37: #{simcse_forward.1} parent=1 // pred_fallthru
      _
    // Predicated region
    $region38: #{simcse_forward.1} parent=1 // pred_check
      _
    $region39: #{simcse_forward.1} parent=1 // pred_check_branch
      %43 = sbr.rel (0) target = $region41
    $region40: #{simcse_forward.1} parent=1 // pred_region
      _
    $region41: #{simcse_forward.1} parent=1 // pred_fallthru
      _
    // Predicated region
    $region42: #{simcse_forward.1} parent=1 // pred_check
      _
    $region43: #{simcse_forward.1} parent=1 // pred_check_branch
      %45 = sbr.rel (0) target = $region45
    $region44: #{simcse_forward.1} parent=1 // pred_region
      _
    $region45: #{simcse_forward.1} parent=1 // pred_fallthru
      _
    // Predicated region
    $region46: #{simcse_forward.1} parent=1 // pred_check
      _
    $region47: #{simcse_forward.1} parent=1 // pred_check_branch
      %47 = sbr.rel (0) target = $region49
    $region48: #{simcse_forward.1} parent=1 // pred_region
      _
    $region49: #{simcse_forward.1} parent=1 // pred_fallthru
      _
    // Predicated region
    $region50: #{simcse_forward.1} parent=1 // pred_check
      _
    $region51: #{simcse_forward.1} parent=1 // pred_check_branch
      %49 = sbr.rel (0) target = $region53
    $region52: #{simcse_forward.1} parent=1 // pred_region
      _
    $region53: #{simcse_forward.1} parent=1 // pred_fallthru
      _
    // Predicated region
    $region54: #{simcse_forward.1} parent=1 // pred_check
      _
    $region55: #{simcse_forward.1} parent=1 // pred_check_branch
      %51 = sbr.rel (0) target = $region57
    $region56: #{simcse_forward.1} parent=1 // pred_region
      _
    $region57: #{simcse_forward.1} parent=1 // pred_fallthru
      _
    // Predicated region
    $region58: #{simcse_forward.1} parent=1 // pred_check
      _
    $region59: #{simcse_forward.1} parent=1 // pred_check_branch
      %53 = sbr.rel (0) target = $region61
    $region60: #{simcse_forward.1} parent=1 // pred_region
      _
    $region61: #{simcse_forward.1} parent=1 // pred_fallthru
      _
    // Predicated region
    $region62: #{simcse_forward.1} parent=1 // pred_check
      _
    $region63: #{simcse_forward.1} parent=1 // pred_check_branch
      %55 = sbr.rel (0) target = $region65
    $region64: #{simcse_forward.1} parent=1 // pred_region
      _
    $region65: #{simcse_forward.1} parent=1 // pred_fallthru
      _
    // Predicated region
    $region66: #{simcse_forward.1} parent=1 // pred_check
      _
    $region67: #{simcse_forward.1} parent=1 // pred_check_branch
      %57 = sbr.rel (0) target = $region69
    $region68: #{simcse_forward.1} parent=1 // pred_region
      _
    $region69: #{simcse_forward.1} parent=1 // pred_fallthru
      _
    // Predicated region
    $region70: #{simcse_forward.1} parent=1 // pred_check
      _
    $region71: #{simcse_forward.1} parent=1 // pred_check_branch
      %59 = sbr.rel (0) target = $region73
    $region72: #{simcse_forward.1} parent=1 // pred_region
      _
    $region73: #{simcse_forward.1} parent=1 // pred_fallthru
      _
    %v61 = vld [vmem:[%s1] sm:$0xf]
    %v64 = vunpack.c.l.s4 1966171168
    %v65 = vunpack.c.0.s8 %v64
    %v66 = vlaneseq
    %v67 = vshrl.u32 %v66, 7
    %v68 = vsub.s32 %v65, %v67
    %v69 = vrot.slane %v61, %v68
    %v70 = vcombine.high %v69, %v69
    %v72 = vunpack.c.l.s4 1966171168
    %v73 = vunpack.c.0.s8 %v72
    %v74 = vlaneseq
    %v75 = vshrl.u32 %v74, 7
    %v76 = vsub.s32 %v73, %v75
    %v77 = vrot.slane %v69, %v76
    %v79 = vunpack.c.l.s4 1966171168
    %v80 = vunpack.c.0.s8 %v79
    %v81 = vlaneseq
    %v82 = vshrl.u32 %v81, 7
    %v83 = vsub.s32 %v80, %v82
    %v84 = vrot.slane %v70, %v83
    %v85 = vcombine.high %v77, %v77
    %v86 = vcombine.high %v84, %v84
    %v87 = vld [vmem:[%s0] sm:$0xff]
    %v88 = vld [vmem:[%s0 + $0x8] sm:$0xff]
    %v89 = vld [vmem:[%s0 + $0x10] sm:$0xff]
    %v90 = vld [vmem:[%s0 + $0x18] sm:$0xff]
    %v91 = vld [vmem:[%s2] sm:$0x1]
    %v92 = vld [vmem:[%s3] sm:$0x1]
    %vm93 = vcmask 261120
    %v94 = vsel %vm93, %v87, 0.0
    %95 = vadd.xlane.f32.xlu0 %v94
    %v96 = vpop.xlane.xlu0 %95
    %v97 = vsel %vm93, %v88, 0.0
    %98 = vadd.xlane.f32.xlu0 %v97
    %v99 = vpop.xlane.xlu0 %98
    %v100 = vsel %vm93, %v89, 0.0
    %101 = vadd.xlane.f32.xlu0 %v100
    %v102 = vpop.xlane.xlu0 %101
    %v103 = vsel %vm93, %v90, 0.0
    %104 = vadd.xlane.f32.xlu0 %v103
    %v105 = vpop.xlane.xlu0 %104
    %v106 = vrcp.pop 32.0
    %v107 = vmul.f32 %v96, %v106
    %v108 = vmul.f32 %v99, %v106
    %v109 = vmul.f32 %v102, %v106
    %v110 = vmul.f32 %v105, %v106
    %v111 = vsub.f32 %v87, %v107
    %v112 = vsub.f32 %v88, %v108
    %v113 = vsub.f32 %v89, %v109
    %v114 = vsub.f32 %v90, %v110
    %v115 = vmul.f32 %v111, %v111
    %v116 = vmul.f32 %v112, %v112
    %v117 = vmul.f32 %v113, %v113
    %v118 = vmul.f32 %v114, %v114
    %v119 = vsel %vm93, %v115, 0.0
    %120 = vadd.xlane.f32.xlu0 %v119
    %v121 = vpop.xlane.xlu0 %120
    %v122 = vsel %vm93, %v116, 0.0
    %123 = vadd.xlane.f32.xlu0 %v122
    %v124 = vpop.xlane.xlu0 %123
    %v125 = vsel %vm93, %v117, 0.0
    %126 = vadd.xlane.f32.xlu0 %v125
    %v127 = vpop.xlane.xlu0 %126
    %v128 = vsel %vm93, %v118, 0.0
    %129 = vadd.xlane.f32.xlu0 %v128
    %v130 = vpop.xlane.xlu0 %129
    %v131 = vmul.f32 %v121, %v106
    %v132 = vmul.f32 %v124, %v106
    %v133 = vmul.f32 %v127, %v106
    %v134 = vmul.f32 %v130, %v106
    %v135 = vadd.f32 %v131, 1e-12
    %v136 = vadd.f32 %v132, 1e-12
    %v137 = vadd.f32 %v133, 1e-12
    %v138 = vadd.f32 %v134, 1e-12
    %v139 = vrsqrt.pop %v135
    %v140 = vrsqrt.pop %v136
    %v141 = vrsqrt.pop %v137
    %v142 = vrsqrt.pop %v138
    %v143 = vmul.f32 %v111, %v139
    %v144 = vmul.f32 %v112, %v140
    %v145 = vmul.f32 %v113, %v141
    %v146 = vmul.f32 %v114, %v142
    %v148 = vlaneseq
    %v149 = vshrl.u32 %v148, 7
    %v150 = vsub.s32 0, %v149
    %v151 = vrot.slane %v91, %v150
    %v153 = vmul.f32 %v143, %v151
    %v154 = vmul.f32 %v144, %v151
    %v155 = vmul.f32 %v145, %v151
    %v156 = vmul.f32 %v146, %v151
    %v158 = vlaneseq
    %v159 = vshrl.u32 %v158, 7
    %v160 = vsub.s32 0, %v159
    %v161 = vrot.slane %v92, %v160
    %v163 = vadd.f32 %v153, %v161
    %v164 = vadd.f32 %v154, %v161
    %v165 = vadd.f32 %v155, %v161
    %v166 = vadd.f32 %v156, %v161
    %v167 = vld [vmem:[%s4] sm:$0xff]
    %v168 = vld [vmem:[%s4 + $0x8] sm:$0xff]
    %v169 = vld [vmem:[%s4 + $0x10] sm:$0xff]
    %v170 = vld [vmem:[%s4 + $0x18] sm:$0xff]
    %v171 = vld [vmem:[%s5] sm:$0x1]
    %v172 = vpack.c.bf16 %v164, %v163
    %v173 = vpack.c.bf16 %v166, %v165
    %v174 = vpack.c.bf16 %v168, %v167
    %v175 = vpack.c.bf16 %v170, %v169
    %v177 = vlaneseq
    %v178 = vshrl.u32 %v177, 7
    %v179 = vsub.s32 0, %v178
    %v180 = vrot.slane %v171, %v179
    %v183 = vsel %vm93, %v172, 0
    %v186 = vsel %vm93, %v173, 0
    %188 = vmatprep.subr.bf16.mxu0 0
    %189 = vmatpush1.bf16.msra.mxu0 %v174
    %190 = vmatprep.subr.bf16.mxu0 0
    %191 = vmatpush1.bf16.msra.mxu0 %v175
    %192 = vmatprep.subr.bf16.mxu0 0
    %193 = vmatpush1.bf16.msra.mxu0 0
    %194 = vmatprep.subr.bf16.mxu0 0
    %195 = vmatpush1.bf16.msra.mxu0 0
    %196 = vmatprep.subr.bf16.mxu0 0
    %197 = vmatpush1.bf16.msra.mxu0 0
    %198 = vmatprep.subr.bf16.mxu0 0
    %199 = vmatpush1.bf16.msra.mxu0 0
    %200 = vmatprep.subr.bf16.mxu0 0
    %201 = vmatpush1.bf16.msra.mxu0 0
    %202 = vmatprep.subr.bf16.mxu0 0
    %203 = vmatpush1.bf16.msra.mxu0 0
    %204 = vmatprep.subr.bf16.mxu0 0
    %205 = vmatpush1.bf16.msra.mxu0 0
    %206 = vmatprep.subr.bf16.mxu0 0
    %207 = vmatpush1.bf16.msra.mxu0 0
    %208 = vmatprep.subr.bf16.mxu0 0
    %209 = vmatpush1.bf16.msra.mxu0 0
    %210 = vmatprep.subr.bf16.mxu0 0
    %211 = vmatpush1.bf16.msra.mxu0 0
    %212 = vmatprep.subr.bf16.mxu0 0
    %213 = vmatpush1.bf16.msra.mxu0 0
    %214 = vmatprep.subr.bf16.mxu0 0
    %215 = vmatpush1.bf16.msra.mxu0 0
    %216 = vmatprep.subr.bf16.mxu0 0
    %217 = vmatpush1.bf16.msra.mxu0 0
    %218 = vmatprep.subr.bf16.mxu0 0
    %219 = vmatpush1.bf16.msra.mxu0 0
    %220 = vmatprep.mubr.bf16.mxu0 0
    %221 = vmatmul.mubr.bf16.gmra.mrb[0].mxu0 %v183
    %v222 = vpop.f32.mrb[0].mxu0
    %v223 = vadd.f32 %v180, %v222
    %v224 = vpop.f32.mrb[0].mxu0
    %v225 = vpop.f32.mrb[0].mxu0
    %v226 = vadd.f32 %v180, %v225
    %v227 = vpop.f32.mrb[0].mxu0
    %228 = vmatprep.mubr.bf16.mxu0 0
    %229 = vmatmul.mubr.bf16.gmra.mrb[0].mxu0 %v186
    %v230 = vpop.f32.mrb[0].mxu0
    %v231 = vadd.f32 %v180, %v230
    %v232 = vpop.f32.mrb[0].mxu0
    %v233 = vpop.f32.mrb[0].mxu0
    %v234 = vadd.f32 %v180, %v233
    %v235 = vpop.f32.mrb[0].mxu0
    %236 = vdwg.mxu0
    %v237 = vld [vmem:[%s6] sm:$0xff]
    %v238 = vld [vmem:[%s6 + $0x8] sm:$0xff]
    %v239 = vld [vmem:[%s6 + $0x10] sm:$0xff]
    %v240 = vld [vmem:[%s6 + $0x18] sm:$0xff]
    %v241 = vld [vmem:[%s7] sm:$0x1]
    %v242 = vpack.c.bf16 %v223, %v223
    %v243 = vpack.c.bf16 %v226, %v226
    %v244 = vpack.c.bf16 %v231, %v231
    %v245 = vpack.c.bf16 %v234, %v234
    %247 = vrot.lane.b32.xlu0 %v242, 96
    %v248 = vpop.permute.xlu0 %247
    %vm249 = vcmask 64512
    %v251 = vsel %vm249, %v242, 0
    %v254 = vsel %vm249, %v248, 0
    %256 = vmatprep.subr.bf16.mxu0 0
    %257 = vmatpush1.bf16.xpose.msra.mxu0 %v254
    %258 = vmatprep.subr.bf16.mxu0 0
    %259 = vmatpush1.bf16.xpose.msra.mxu0 0
    %260 = vmatprep.subr.bf16.mxu0 0
    %261 = vmatpush1.bf16.xpose.msra.mxu0 0
    %262 = vmatprep.subr.bf16.mxu0 0
    %263 = vmatpush1.bf16.xpose.msra.mxu0 0
    %264 = vmatprep.subr.bf16.mxu0 0
    %265 = vmatpush1.bf16.xpose.msra.mxu0 0
    %266 = vmatprep.subr.bf16.mxu0 0
    %267 = vmatpush1.bf16.xpose.msra.mxu0 0
    %268 = vmatprep.subr.bf16.mxu0 0
    %269 = vmatpush1.bf16.xpose.msra.mxu0 0
    %270 = vmatprep.subr.bf16.mxu0 0
    %271 = vmatpush1.bf16.xpose.msra.mxu0 0
    %272 = vmatprep.subr.bf16.mxu0 0
    %273 = vmatpush1.bf16.xpose.msra.mxu0 0
    %274 = vmatprep.subr.bf16.mxu0 0
    %275 = vmatpush1.bf16.xpose.msra.mxu0 0
    %276 = vmatprep.subr.bf16.mxu0 0
    %277 = vmatpush1.bf16.xpose.msra.mxu0 0
    %278 = vmatprep.subr.bf16.mxu0 0
    %279 = vmatpush1.bf16.xpose.msra.mxu0 0
    %280 = vmatprep.subr.bf16.mxu0 0
    %281 = vmatpush1.bf16.xpose.msra.mxu0 0
    %282 = vmatprep.subr.bf16.mxu0 0
    %283 = vmatpush1.bf16.xpose.msra.mxu0 0
    %284 = vmatprep.subr.bf16.mxu0 0
    %285 = vmatpush1.bf16.xpose.msra.mxu0 0
    %286 = vmatprep.subr.bf16.mxu0 0
    %287 = vmatpush1.bf16.xpose.msra.mxu0 0
    %288 = vmatprep.mubr.bf16.mxu0 0
    %289 = vmatmul.mubr.bf16.gmra.mrb[0].mxu0 %v251
    %v290 = vpop.f32.mrb[0].mxu0
    %v291 = vadd.f32 0.0, %v290
    %v292 = vpop.f32.mrb[0].mxu0
    %v293 = vpop.f32.mrb[0].mxu0
    %v294 = vpop.f32.mrb[0].mxu0
    %295 = vdwg.mxu0
    %297 = vrot.lane.b32.xlu0 %v243, 96
    %v298 = vpop.permute.xlu0 %297
    %v300 = vsel %vm249, %v243, 0
    %v303 = vsel %vm249, %v298, 0
    %305 = vmatprep.subr.bf16.mxu0 0
    %306 = vmatpush1.bf16.xpose.msra.mxu0 %v303
    %307 = vmatprep.subr.bf16.mxu0 0
    %308 = vmatpush1.bf16.xpose.msra.mxu0 0
    %309 = vmatprep.subr.bf16.mxu0 0
    %310 = vmatpush1.bf16.xpose.msra.mxu0 0
    %311 = vmatprep.subr.bf16.mxu0 0
    %312 = vmatpush1.bf16.xpose.msra.mxu0 0
    %313 = vmatprep.subr.bf16.mxu0 0
    %314 = vmatpush1.bf16.xpose.msra.mxu0 0
    %315 = vmatprep.subr.bf16.mxu0 0
    %316 = vmatpush1.bf16.xpose.msra.mxu0 0
    %317 = vmatprep.subr.bf16.mxu0 0
    %318 = vmatpush1.bf16.xpose.msra.mxu0 0
    %319 = vmatprep.subr.bf16.mxu0 0
    %320 = vmatpush1.bf16.xpose.msra.mxu0 0
    %321 = vmatprep.subr.bf16.mxu0 0
    %322 = vmatpush1.bf16.xpose.msra.mxu0 0
    %323 = vmatprep.subr.bf16.mxu0 0
    %324 = vmatpush1.bf16.xpose.msra.mxu0 0
    %325 = vmatprep.subr.bf16.mxu0 0
    %326 = vmatpush1.bf16.xpose.msra.mxu0 0
    %327 = vmatprep.subr.bf16.mxu0 0
    %328 = vmatpush1.bf16.xpose.msra.mxu0 0
    %329 = vmatprep.subr.bf16.mxu0 0
    %330 = vmatpush1.bf16.xpose.msra.mxu0 0
    %331 = vmatprep.subr.bf16.mxu0 0
    %332 = vmatpush1.bf16.xpose.msra.mxu0 0
    %333 = vmatprep.subr.bf16.mxu0 0
    %334 = vmatpush1.bf16.xpose.msra.mxu0 0
    %335 = vmatprep.subr.bf16.mxu0 0
    %336 = vmatpush1.bf16.xpose.msra.mxu0 0
    %337 = vmatprep.mubr.bf16.mxu0 0
    %338 = vmatmul.mubr.bf16.gmra.mrb[0].mxu0 %v300
    %v339 = vpop.f32.mrb[0].mxu0
    %v340 = vadd.f32 0.0, %v339
    %v341 = vpop.f32.mrb[0].mxu0
    %v342 = vpop.f32.mrb[0].mxu0
    %v343 = vpop.f32.mrb[0].mxu0
    %344 = vdwg.mxu0
    %346 = vrot.lane.b32.xlu0 %v244, 96
    %v347 = vpop.permute.xlu0 %346
    %v349 = vsel %vm249, %v244, 0
    %v352 = vsel %vm249, %v347, 0
    %354 = vmatprep.subr.bf16.mxu0 0
    %355 = vmatpush1.bf16.xpose.msra.mxu0 %v352
    %356 = vmatprep.subr.bf16.mxu0 0
    %357 = vmatpush1.bf16.xpose.msra.mxu0 0
    %358 = vmatprep.subr.bf16.mxu0 0
    %359 = vmatpush1.bf16.xpose.msra.mxu0 0
    %360 = vmatprep.subr.bf16.mxu0 0
    %361 = vmatpush1.bf16.xpose.msra.mxu0 0
    %362 = vmatprep.subr.bf16.mxu0 0
    %363 = vmatpush1.bf16.xpose.msra.mxu0 0
    %364 = vmatprep.subr.bf16.mxu0 0
    %365 = vmatpush1.bf16.xpose.msra.mxu0 0
    %366 = vmatprep.subr.bf16.mxu0 0
    %367 = vmatpush1.bf16.xpose.msra.mxu0 0
    %368 = vmatprep.subr.bf16.mxu0 0
    %369 = vmatpush1.bf16.xpose.msra.mxu0 0
    %370 = vmatprep.subr.bf16.mxu0 0
    %371 = vmatpush1.bf16.xpose.msra.mxu0 0
    %372 = vmatprep.subr.bf16.mxu0 0
    %373 = vmatpush1.bf16.xpose.msra.mxu0 0
    %374 = vmatprep.subr.bf16.mxu0 0
    %375 = vmatpush1.bf16.xpose.msra.mxu0 0
    %376 = vmatprep.subr.bf16.mxu0 0
    %377 = vmatpush1.bf16.xpose.msra.mxu0 0
    %378 = vmatprep.subr.bf16.mxu0 0
    %379 = vmatpush1.bf16.xpose.msra.mxu0 0
    %380 = vmatprep.subr.bf16.mxu0 0
    %381 = vmatpush1.bf16.xpose.msra.mxu0 0
    %382 = vmatprep.subr.bf16.mxu0 0
    %383 = vmatpush1.bf16.xpose.msra.mxu0 0
    %384 = vmatprep.subr.bf16.mxu0 0
    %385 = vmatpush1.bf16.xpose.msra.mxu0 0
    %386 = vmatprep.mubr.bf16.mxu0 0
    %387 = vmatmul.mubr.bf16.gmra.mrb[0].mxu0 %v349
    %v388 = vpop.f32.mrb[0].mxu0
    %v389 = vadd.f32 0.0, %v388
    %v390 = vpop.f32.mrb[0].mxu0
    %v391 = vpop.f32.mrb[0].mxu0
    %v392 = vpop.f32.mrb[0].mxu0
    %393 = vdwg.mxu0
    %395 = vrot.lane.b32.xlu0 %v245, 96
    %v396 = vpop.permute.xlu0 %395
    %v398 = vsel %vm249, %v245, 0
    %v401 = vsel %vm249, %v396, 0
    %403 = vmatprep.subr.bf16.mxu0 0
    %404 = vmatpush1.bf16.xpose.msra.mxu0 %v401
    %405 = vmatprep.subr.bf16.mxu0 0
    %406 = vmatpush1.bf16.xpose.msra.mxu0 0
    %407 = vmatprep.subr.bf16.mxu0 0
    %408 = vmatpush1.bf16.xpose.msra.mxu0 0
    %409 = vmatprep.subr.bf16.mxu0 0
    %410 = vmatpush1.bf16.xpose.msra.mxu0 0
    %411 = vmatprep.subr.bf16.mxu0 0
    %412 = vmatpush1.bf16.xpose.msra.mxu0 0
    %413 = vmatprep.subr.bf16.mxu0 0
    %414 = vmatpush1.bf16.xpose.msra.mxu0 0
    %415 = vmatprep.subr.bf16.mxu0 0
    %416 = vmatpush1.bf16.xpose.msra.mxu0 0
    %417 = vmatprep.subr.bf16.mxu0 0
    %418 = vmatpush1.bf16.xpose.msra.mxu0 0
    %419 = vmatprep.subr.bf16.mxu0 0
    %420 = vmatpush1.bf16.xpose.msra.mxu0 0
    %421 = vmatprep.subr.bf16.mxu0 0
    %422 = vmatpush1.bf16.xpose.msra.mxu0 0
    %423 = vmatprep.subr.bf16.mxu0 0
    %424 = vmatpush1.bf16.xpose.msra.mxu0 0
    %425 = vmatprep.subr.bf16.mxu0 0
    %426 = vmatpush1.bf16.xpose.msra.mxu0 0
    %427 = vmatprep.subr.bf16.mxu0 0
    %428 = vmatpush1.bf16.xpose.msra.mxu0 0
    %429 = vmatprep.subr.bf16.mxu0 0
    %430 = vmatpush1.bf16.xpose.msra.mxu0 0
    %431 = vmatprep.subr.bf16.mxu0 0
    %432 = vmatpush1.bf16.xpose.msra.mxu0 0
    %433 = vmatprep.subr.bf16.mxu0 0
    %434 = vmatpush1.bf16.xpose.msra.mxu0 0
    %435 = vmatprep.mubr.bf16.mxu0 0
    %436 = vmatmul.mubr.bf16.gmra.mrb[0].mxu0 %v398
    %v437 = vpop.f32.mrb[0].mxu0
    %v438 = vadd.f32 0.0, %v437
    %v439 = vpop.f32.mrb[0].mxu0
    %v440 = vpop.f32.mrb[0].mxu0
    %v441 = vpop.f32.mrb[0].mxu0
    %442 = vdwg.mxu0
    %v443 = vmul.f32 %v291, 0.35355338
    %v444 = vmul.f32 %v340, 0.35355338
    %v445 = vmul.f32 %v389, 0.35355338
    %v446 = vmul.f32 %v438, 0.35355338
    %v447 = vlaneseq
    %v448 = vshrl.u32 %v447, 7
    %v449 = vsub.s32 0, %v448
    %v450 = vrot.slane %v77, %v449
    %v451 = vlaneseq
    %v452 = vshrl.u32 %v451, 7
    %v453 = vsub.s32 0, %v452
    %v454 = vrot.slane %v84, %v453
    %v455 = vlaneseq
    %v456 = vshrl.u32 %v455, 7
    %v457 = vsub.s32 0, %v456
    %v458 = vrot.slane %v85, %v457
    %v459 = vlaneseq
    %v460 = vshrl.u32 %v459, 7
    %v461 = vsub.s32 0, %v460
    %v462 = vrot.slane %v86, %v461
    %v467 = vadd.f32 %v443, %v450
    %v468 = vadd.f32 %v444, %v454
    %v469 = vadd.f32 %v445, %v458
    %v470 = vadd.f32 %v446, %v462
    %v471 = vsel %vm249, %v467, -inf
    %472 = vmax.xlane.f32.xlu0 %v471
    %v473 = vpop.xlane.xlu0 %472
    %v474 = vsel %vm249, %v468, -inf
    %475 = vmax.xlane.f32.xlu0 %v474
    %v476 = vpop.xlane.xlu0 %475
    %v477 = vsel %vm249, %v469, -inf
    %478 = vmax.xlane.f32.xlu0 %v477
    %v479 = vpop.xlane.xlu0 %478
    %v480 = vsel %vm249, %v470, -inf
    %481 = vmax.xlane.f32.xlu0 %v480
    %v482 = vpop.xlane.xlu0 %481
    %v483 = vsub.f32 %v467, %v473
    %v484 = vsub.f32 %v468, %v476
    %v485 = vsub.f32 %v469, %v479
    %v486 = vsub.f32 %v470, %v482
    %v487 = vmul.f32 %v483, 1.442695
    %v488 = vpow.pop %v487
    %v489 = vmul.f32 %v484, 1.442695
    %v490 = vpow.pop %v489
    %v491 = vmul.f32 %v485, 1.442695
    %v492 = vpow.pop %v491
    %v493 = vmul.f32 %v486, 1.442695
    %v494 = vpow.pop %v493
    %v495 = vsel %vm249, %v488, 0.0
    %496 = vadd.xlane.f32.xlu0 %v495
    %v497 = vpop.xlane.xlu0 %496
    %v498 = vsel %vm249, %v490, 0.0
    %499 = vadd.xlane.f32.xlu0 %v498
    %v500 = vpop.xlane.xlu0 %499
    %v501 = vsel %vm249, %v492, 0.0
    %502 = vadd.xlane.f32.xlu0 %v501
    %v503 = vpop.xlane.xlu0 %502
    %v504 = vsel %vm249, %v494, 0.0
    %505 = vadd.xlane.f32.xlu0 %v504
    %v506 = vpop.xlane.xlu0 %505
    %v507 = vrcp.pop %v497
    %v508 = vrcp.pop %v500
    %v509 = vrcp.pop %v503
    %v510 = vrcp.pop %v506
    %v511 = vmul.f32 %v488, %v507
    %v512 = vmul.f32 %v490, %v508
    %v513 = vmul.f32 %v492, %v509
    %v514 = vmul.f32 %v494, %v510
    %v515 = vpack.c.bf16 %v511, %v511
    %v516 = vpack.c.bf16 %v512, %v512
    %v517 = vpack.c.bf16 %v513, %v513
    %v518 = vpack.c.bf16 %v514, %v514
    %519 = vrot.lane.b32.xlu0 %v242, 64
    %v520 = vpop.permute.xlu0 %519
    %v522 = vsel %vm249, %v515, 0
    %vm524 = vcmask 1043456
    %v526 = vsel %vm524, %v520, 0
    %528 = vmatprep.subr.bf16.mxu0 0
    %529 = vmatpush1.bf16.msra.mxu0 %v526
    %530 = vmatprep.subr.bf16.mxu0 0
    %531 = vmatpush1.bf16.msra.mxu0 0
    %532 = vmatprep.subr.bf16.mxu0 0
    %533 = vmatpush1.bf16.msra.mxu0 0
    %534 = vmatprep.subr.bf16.mxu0 0
    %535 = vmatpush1.bf16.msra.mxu0 0
    %536 = vmatprep.subr.bf16.mxu0 0
    %537 = vmatpush1.bf16.msra.mxu0 0
    %538 = vmatprep.subr.bf16.mxu0 0
    %539 = vmatpush1.bf16.msra.mxu0 0
    %540 = vmatprep.subr.bf16.mxu0 0
    %541 = vmatpush1.bf16.msra.mxu0 0
    %542 = vmatprep.subr.bf16.mxu0 0
    %543 = vmatpush1.bf16.msra.mxu0 0
    %544 = vmatprep.subr.bf16.mxu0 0
    %545 = vmatpush1.bf16.msra.mxu0 0
    %546 = vmatprep.subr.bf16.mxu0 0
    %547 = vmatpush1.bf16.msra.mxu0 0
    %548 = vmatprep.subr.bf16.mxu0 0
    %549 = vmatpush1.bf16.msra.mxu0 0
    %550 = vmatprep.subr.bf16.mxu0 0
    %551 = vmatpush1.bf16.msra.mxu0 0
    %552 = vmatprep.subr.bf16.mxu0 0
    %553 = vmatpush1.bf16.msra.mxu0 0
    %554 = vmatprep.subr.bf16.mxu0 0
    %555 = vmatpush1.bf16.msra.mxu0 0
    %556 = vmatprep.subr.bf16.mxu0 0
    %557 = vmatpush1.bf16.msra.mxu0 0
    %558 = vmatprep.subr.bf16.mxu0 0
    %559 = vmatpush1.bf16.msra.mxu0 0
    %560 = vmatprep.mubr.bf16.mxu0 0
    %561 = vmatmul.mubr.bf16.gmra.mrb[0].mxu0 %v522
    %v562 = vpop.f32.mrb[0].mxu0
    %v563 = vadd.f32 0.0, %v562
    %v564 = vpop.f32.mrb[0].mxu0
    %v565 = vpop.f32.mrb[0].mxu0
    %v566 = vpop.f32.mrb[0].mxu0
    %567 = vdwg.mxu0
    %568 = vrot.lane.b32.xlu0 %v243, 64
    %v569 = vpop.permute.xlu0 %568
    %v571 = vsel %vm249, %v516, 0
    %v574 = vsel %vm524, %v569, 0
    %576 = vmatprep.subr.bf16.mxu0 0
    %577 = vmatpush1.bf16.msra.mxu0 %v574
    %578 = vmatprep.subr.bf16.mxu0 0
    %579 = vmatpush1.bf16.msra.mxu0 0
    %580 = vmatprep.subr.bf16.mxu0 0
    %581 = vmatpush1.bf16.msra.mxu0 0
    %582 = vmatprep.subr.bf16.mxu0 0
    %583 = vmatpush1.bf16.msra.mxu0 0
    %584 = vmatprep.subr.bf16.mxu0 0
    %585 = vmatpush1.bf16.msra.mxu0 0
    %586 = vmatprep.subr.bf16.mxu0 0
    %587 = vmatpush1.bf16.msra.mxu0 0
    %588 = vmatprep.subr.bf16.mxu0 0
    %589 = vmatpush1.bf16.msra.mxu0 0
    %590 = vmatprep.subr.bf16.mxu0 0
    %591 = vmatpush1.bf16.msra.mxu0 0
    %592 = vmatprep.subr.bf16.mxu0 0
    %593 = vmatpush1.bf16.msra.mxu0 0
    %594 = vmatprep.subr.bf16.mxu0 0
    %595 = vmatpush1.bf16.msra.mxu0 0
    %596 = vmatprep.subr.bf16.mxu0 0
    %597 = vmatpush1.bf16.msra.mxu0 0
    %598 = vmatprep.subr.bf16.mxu0 0
    %599 = vmatpush1.bf16.msra.mxu0 0
    %600 = vmatprep.subr.bf16.mxu0 0
    %601 = vmatpush1.bf16.msra.mxu0 0
    %602 = vmatprep.subr.bf16.mxu0 0
    %603 = vmatpush1.bf16.msra.mxu0 0
    %604 = vmatprep.subr.bf16.mxu0 0
    %605 = vmatpush1.bf16.msra.mxu0 0
    %606 = vmatprep.subr.bf16.mxu0 0
    %607 = vmatpush1.bf16.msra.mxu0 0
    %608 = vmatprep.mubr.bf16.mxu0 0
    %609 = vmatmul.mubr.bf16.gmra.mrb[0].mxu0 %v571
    %v610 = vpop.f32.mrb[0].mxu0
    %v611 = vadd.f32 0.0, %v610
    %v612 = vpop.f32.mrb[0].mxu0
    %v613 = vpop.f32.mrb[0].mxu0
    %v614 = vpop.f32.mrb[0].mxu0
    %615 = vdwg.mxu0
    %616 = vrot.lane.b32.xlu0 %v244, 64
    %v617 = vpop.permute.xlu0 %616
    %v619 = vsel %vm249, %v517, 0
    %v622 = vsel %vm524, %v617, 0
    %624 = vmatprep.subr.bf16.mxu0 0
    %625 = vmatpush1.bf16.msra.mxu0 %v622
    %626 = vmatprep.subr.bf16.mxu0 0
    %627 = vmatpush1.bf16.msra.mxu0 0
    %628 = vmatprep.subr.bf16.mxu0 0
    %629 = vmatpush1.bf16.msra.mxu0 0
    %630 = vmatprep.subr.bf16.mxu0 0
    %631 = vmatpush1.bf16.msra.mxu0 0
    %632 = vmatprep.subr.bf16.mxu0 0
    %633 = vmatpush1.bf16.msra.mxu0 0
    %634 = vmatprep.subr.bf16.mxu0 0
    %635 = vmatpush1.bf16.msra.mxu0 0
    %636 = vmatprep.subr.bf16.mxu0 0
    %637 = vmatpush1.bf16.msra.mxu0 0
    %638 = vmatprep.subr.bf16.mxu0 0
    %639 = vmatpush1.bf16.msra.mxu0 0
    %640 = vmatprep.subr.bf16.mxu0 0
    %641 = vmatpush1.bf16.msra.mxu0 0
    %642 = vmatprep.subr.bf16.mxu0 0
    %643 = vmatpush1.bf16.msra.mxu0 0
    %644 = vmatprep.subr.bf16.mxu0 0
    %645 = vmatpush1.bf16.msra.mxu0 0
    %646 = vmatprep.subr.bf16.mxu0 0
    %647 = vmatpush1.bf16.msra.mxu0 0
    %648 = vmatprep.subr.bf16.mxu0 0
    %649 = vmatpush1.bf16.msra.mxu0 0
    %650 = vmatprep.subr.bf16.mxu0 0
    %651 = vmatpush1.bf16.msra.mxu0 0
    %652 = vmatprep.subr.bf16.mxu0 0
    %653 = vmatpush1.bf16.msra.mxu0 0
    %654 = vmatprep.subr.bf16.mxu0 0
    %655 = vmatpush1.bf16.msra.mxu0 0
    %656 = vmatprep.mubr.bf16.mxu0 0
    %657 = vmatmul.mubr.bf16.gmra.mrb[0].mxu0 %v619
    %v658 = vpop.f32.mrb[0].mxu0
    %v659 = vadd.f32 0.0, %v658
    %v660 = vpop.f32.mrb[0].mxu0
    %v661 = vpop.f32.mrb[0].mxu0
    %v662 = vpop.f32.mrb[0].mxu0
    %663 = vdwg.mxu0
    %664 = vrot.lane.b32.xlu0 %v245, 64
    %v665 = vpop.permute.xlu0 %664
    %v667 = vsel %vm249, %v518, 0
    %v670 = vsel %vm524, %v665, 0
    %672 = vmatprep.subr.bf16.mxu0 0
    %673 = vmatpush1.bf16.msra.mxu0 %v670
    %674 = vmatprep.subr.bf16.mxu0 0
    %675 = vmatpush1.bf16.msra.mxu0 0
    %676 = vmatprep.subr.bf16.mxu0 0
    %677 = vmatpush1.bf16.msra.mxu0 0
    %678 = vmatprep.subr.bf16.mxu0 0
    %679 = vmatpush1.bf16.msra.mxu0 0
    %680 = vmatprep.subr.bf16.mxu0 0
    %681 = vmatpush1.bf16.msra.mxu0 0
    %682 = vmatprep.subr.bf16.mxu0 0
    %683 = vmatpush1.bf16.msra.mxu0 0
    %684 = vmatprep.subr.bf16.mxu0 0
    %685 = vmatpush1.bf16.msra.mxu0 0
    %686 = vmatprep.subr.bf16.mxu0 0
    %687 = vmatpush1.bf16.msra.mxu0 0
    %688 = vmatprep.subr.bf16.mxu0 0
    %689 = vmatpush1.bf16.msra.mxu0 0
    %690 = vmatprep.subr.bf16.mxu0 0
    %691 = vmatpush1.bf16.msra.mxu0 0
    %692 = vmatprep.subr.bf16.mxu0 0
    %693 = vmatpush1.bf16.msra.mxu0 0
    %694 = vmatprep.subr.bf16.mxu0 0
    %695 = vmatpush1.bf16.msra.mxu0 0
    %696 = vmatprep.subr.bf16.mxu0 0
    %697 = vmatpush1.bf16.msra.mxu0 0
    %698 = vmatprep.subr.bf16.mxu0 0
    %699 = vmatpush1.bf16.msra.mxu0 0
    %700 = vmatprep.subr.bf16.mxu0 0
    %701 = vmatpush1.bf16.msra.mxu0 0
    %702 = vmatprep.subr.bf16.mxu0 0
    %703 = vmatpush1.bf16.msra.mxu0 0
    %704 = vmatprep.mubr.bf16.mxu0 0
    %705 = vmatmul.mubr.bf16.gmra.mrb[0].mxu0 %v667
    %v706 = vpop.f32.mrb[0].mxu0
    %v707 = vadd.f32 0.0, %v706
    %v708 = vpop.f32.mrb[0].mxu0
    %v709 = vpop.f32.mrb[0].mxu0
    %v710 = vpop.f32.mrb[0].mxu0
    %711 = vdwg.mxu0
    %v712 = vpack.c.bf16 %v611, %v563
    %v713 = vpack.c.bf16 %v707, %v659
    %v714 = vpack.c.bf16 %v237, %v237
    %v716 = vsel %vm249, %v712, 0
    %v719 = vsel %vm249, %v713, 0
    %v722 = vsel %vm524, %v714, 0
    %724 = vmatprep.subr.bf16.mxu0 0
    %725 = vmatpush1.bf16.msra.mxu0 %v722
    %726 = vmatprep.subr.bf16.mxu0 0
    %727 = vmatpush1.bf16.msra.mxu0 0
    %728 = vmatprep.subr.bf16.mxu0 0
    %729 = vmatpush1.bf16.msra.mxu0 0
    %730 = vmatprep.subr.bf16.mxu0 0
    %731 = vmatpush1.bf16.msra.mxu0 0
    %732 = vmatprep.subr.bf16.mxu0 0
    %733 = vmatpush1.bf16.msra.mxu0 0
    %734 = vmatprep.subr.bf16.mxu0 0
    %735 = vmatpush1.bf16.msra.mxu0 0
    %736 = vmatprep.subr.bf16.mxu0 0
    %737 = vmatpush1.bf16.msra.mxu0 0
    %738 = vmatprep.subr.bf16.mxu0 0
    %739 = vmatpush1.bf16.msra.mxu0 0
    %740 = vmatprep.subr.bf16.mxu0 0
    %741 = vmatpush1.bf16.msra.mxu0 0
    %742 = vmatprep.subr.bf16.mxu0 0
    %743 = vmatpush1.bf16.msra.mxu0 0
    %744 = vmatprep.subr.bf16.mxu0 0
    %745 = vmatpush1.bf16.msra.mxu0 0
    %746 = vmatprep.subr.bf16.mxu0 0
    %747 = vmatpush1.bf16.msra.mxu0 0
    %748 = vmatprep.subr.bf16.mxu0 0
    %749 = vmatpush1.bf16.msra.mxu0 0
    %750 = vmatprep.subr.bf16.mxu0 0
    %751 = vmatpush1.bf16.msra.mxu0 0
    %752 = vmatprep.subr.bf16.mxu0 0
    %753 = vmatpush1.bf16.msra.mxu0 0
    %754 = vmatprep.subr.bf16.mxu0 0
    %755 = vmatpush1.bf16.msra.mxu0 0
    %756 = vmatprep.mubr.bf16.mxu0 0
    %757 = vmatmul.mubr.bf16.gmra.mrb[0].mxu0 %v716
    %v758 = vpop.f32.mrb[0].mxu0
    %v759 = vadd.f32 0.0, %v758
    %v760 = vpop.f32.mrb[0].mxu0
    %v761 = vpop.f32.mrb[0].mxu0
    %v762 = vadd.f32 0.0, %v761
    %v763 = vpop.f32.mrb[0].mxu0
    %764 = vmatprep.mubr.bf16.mxu0 0
    %765 = vmatmul.mubr.bf16.gmra.mrb[0].mxu0 %v719
    %v766 = vpop.f32.mrb[0].mxu0
    %v767 = vadd.f32 0.0, %v766
    %v768 = vpop.f32.mrb[0].mxu0
    %v769 = vpop.f32.mrb[0].mxu0
    %v770 = vadd.f32 0.0, %v769
    %v771 = vpop.f32.mrb[0].mxu0
    %772 = vdwg.mxu0
    %v774 = vlaneseq
    %v775 = vshrl.u32 %v774, 7
    %v776 = vsub.s32 0, %v775
    %v777 = vrot.slane %v241, %v776
    %v779 = vadd.f32 %v777, %v759
    %v780 = vadd.f32 %v777, %v762
    %v781 = vadd.f32 %v777, %v767
    %v782 = vadd.f32 %v777, %v770
    %783 = vrot.lane.b32.xlu0 %v242, 120
    %v784 = vpop.permute.xlu0 %783
    %785 = vrot.lane.b32.xlu0 %v242, 88
    %v786 = vpop.permute.xlu0 %785
    %v788 = vsel %vm249, %v784, 0
    %v791 = vsel %vm249, %v786, 0
    %793 = vmatprep.subr.bf16.mxu0 0
    %794 = vmatpush1.bf16.xpose.msra.mxu0 %v791
    %795 = vmatprep.subr.bf16.mxu0 0
    %796 = vmatpush1.bf16.xpose.msra.mxu0 0
    %797 = vmatprep.subr.bf16.mxu0 0
    %798 = vmatpush1.bf16.xpose.msra.mxu0 0
    %799 = vmatprep.subr.bf16.mxu0 0
    %800 = vmatpush1.bf16.xpose.msra.mxu0 0
    %801 = vmatprep.subr.bf16.mxu0 0
    %802 = vmatpush1.bf16.xpose.msra.mxu0 0
    %803 = vmatprep.subr.bf16.mxu0 0
    %804 = vmatpush1.bf16.xpose.msra.mxu0 0
    %805 = vmatprep.subr.bf16.mxu0 0
    %806 = vmatpush1.bf16.xpose.msra.mxu0 0
    %807 = vmatprep.subr.bf16.mxu0 0
    %808 = vmatpush1.bf16.xpose.msra.mxu0 0
    %809 = vmatprep.subr.bf16.mxu0 0
    %810 = vmatpush1.bf16.xpose.msra.mxu0 0
    %811 = vmatprep.subr.bf16.mxu0 0
    %812 = vmatpush1.bf16.xpose.msra.mxu0 0
    %813 = vmatprep.subr.bf16.mxu0 0
    %814 = vmatpush1.bf16.xpose.msra.mxu0 0
    %815 = vmatprep.subr.bf16.mxu0 0
    %816 = vmatpush1.bf16.xpose.msra.mxu0 0
    %817 = vmatprep.subr.bf16.mxu0 0
    %818 = vmatpush1.bf16.xpose.msra.mxu0 0
    %819 = vmatprep.subr.bf16.mxu0 0
    %820 = vmatpush1.bf16.xpose.msra.mxu0 0
    %821 = vmatprep.subr.bf16.mxu0 0
    %822 = vmatpush1.bf16.xpose.msra.mxu0 0
    %823 = vmatprep.subr.bf16.mxu0 0
    %824 = vmatpush1.bf16.xpose.msra.mxu0 0
    %825 = vmatprep.mubr.bf16.mxu0 0
    %826 = vmatmul.mubr.bf16.gmra.mrb[0].mxu0 %v788
    %v827 = vpop.f32.mrb[0].mxu0
    %v828 = vadd.f32 0.0, %v827
    %v829 = vpop.f32.mrb[0].mxu0
    %v830 = vpop.f32.mrb[0].mxu0
    %v831 = vpop.f32.mrb[0].mxu0
    %832 = vdwg.mxu0
    %833 = vrot.lane.b32.xlu0 %v243, 120
    %v834 = vpop.permute.xlu0 %833
    %835 = vrot.lane.b32.xlu0 %v243, 88
    %v836 = vpop.permute.xlu0 %835
    %v838 = vsel %vm249, %v834, 0
    %v841 = vsel %vm249, %v836, 0
    %843 = vmatprep.subr.bf16.mxu0 0
    %844 = vmatpush1.bf16.xpose.msra.mxu0 %v841
    %845 = vmatprep.subr.bf16.mxu0 0
    %846 = vmatpush1.bf16.xpose.msra.mxu0 0
    %847 = vmatprep.subr.bf16.mxu0 0
    %848 = vmatpush1.bf16.xpose.msra.mxu0 0
    %849 = vmatprep.subr.bf16.mxu0 0
    %850 = vmatpush1.bf16.xpose.msra.mxu0 0
    %851 = vmatprep.subr.bf16.mxu0 0
    %852 = vmatpush1.bf16.xpose.msra.mxu0 0
    %853 = vmatprep.subr.bf16.mxu0 0
    %854 = vmatpush1.bf16.xpose.msra.mxu0 0
    %855 = vmatprep.subr.bf16.mxu0 0
    %856 = vmatpush1.bf16.xpose.msra.mxu0 0
    %857 = vmatprep.subr.bf16.mxu0 0
    %858 = vmatpush1.bf16.xpose.msra.mxu0 0
    %859 = vmatprep.subr.bf16.mxu0 0
    %860 = vmatpush1.bf16.xpose.msra.mxu0 0
    %861 = vmatprep.subr.bf16.mxu0 0
    %862 = vmatpush1.bf16.xpose.msra.mxu0 0
    %863 = vmatprep.subr.bf16.mxu0 0
    %864 = vmatpush1.bf16.xpose.msra.mxu0 0
    %865 = vmatprep.subr.bf16.mxu0 0
    %866 = vmatpush1.bf16.xpose.msra.mxu0 0
    %867 = vmatprep.subr.bf16.mxu0 0
    %868 = vmatpush1.bf16.xpose.msra.mxu0 0
    %869 = vmatprep.subr.bf16.mxu0 0
    %870 = vmatpush1.bf16.xpose.msra.mxu0 0
    %871 = vmatprep.subr.bf16.mxu0 0
    %872 = vmatpush1.bf16.xpose.msra.mxu0 0
    %873 = vmatprep.subr.bf16.mxu0 0
    %874 = vmatpush1.bf16.xpose.msra.mxu0 0
    %875 = vmatprep.mubr.bf16.mxu0 0
    %876 = vmatmul.mubr.bf16.gmra.mrb[0].mxu0 %v838
    %v877 = vpop.f32.mrb[0].mxu0
    %v878 = vadd.f32 0.0, %v877
    %v879 = vpop.f32.mrb[0].mxu0
    %v880 = vpop.f32.mrb[0].mxu0
    %v881 = vpop.f32.mrb[0].mxu0
    %882 = vdwg.mxu0
    %883 = vrot.lane.b32.xlu0 %v244, 120
    %v884 = vpop.permute.xlu0 %883
    %885 = vrot.lane.b32.xlu0 %v244, 88
    %v886 = vpop.permute.xlu0 %885
    %v888 = vsel %vm249, %v884, 0
    %v891 = vsel %vm249, %v886, 0
    %893 = vmatprep.subr.bf16.mxu0 0
    %894 = vmatpush1.bf16.xpose.msra.mxu0 %v891
    %895 = vmatprep.subr.bf16.mxu0 0
    %896 = vmatpush1.bf16.xpose.msra.mxu0 0
    %897 = vmatprep.subr.bf16.mxu0 0
    %898 = vmatpush1.bf16.xpose.msra.mxu0 0
    %899 = vmatprep.subr.bf16.mxu0 0
    %900 = vmatpush1.bf16.xpose.msra.mxu0 0
    %901 = vmatprep.subr.bf16.mxu0 0
    %902 = vmatpush1.bf16.xpose.msra.mxu0 0
    %903 = vmatprep.subr.bf16.mxu0 0
    %904 = vmatpush1.bf16.xpose.msra.mxu0 0
    %905 = vmatprep.subr.bf16.mxu0 0
    %906 = vmatpush1.bf16.xpose.msra.mxu0 0
    %907 = vmatprep.subr.bf16.mxu0 0
    %908 = vmatpush1.bf16.xpose.msra.mxu0 0
    %909 = vmatprep.subr.bf16.mxu0 0
    %910 = vmatpush1.bf16.xpose.msra.mxu0 0
    %911 = vmatprep.subr.bf16.mxu0 0
    %912 = vmatpush1.bf16.xpose.msra.mxu0 0
    %913 = vmatprep.subr.bf16.mxu0 0
    %914 = vmatpush1.bf16.xpose.msra.mxu0 0
    %915 = vmatprep.subr.bf16.mxu0 0
    %916 = vmatpush1.bf16.xpose.msra.mxu0 0
    %917 = vmatprep.subr.bf16.mxu0 0
    %918 = vmatpush1.bf16.xpose.msra.mxu0 0
    %919 = vmatprep.subr.bf16.mxu0 0
    %920 = vmatpush1.bf16.xpose.msra.mxu0 0
    %921 = vmatprep.subr.bf16.mxu0 0
    %922 = vmatpush1.bf16.xpose.msra.mxu0 0
    %923 = vmatprep.subr.bf16.mxu0 0
    %924 = vmatpush1.bf16.xpose.msra.mxu0 0
    %925 = vmatprep.mubr.bf16.mxu0 0
    %926 = vmatmul.mubr.bf16.gmra.mrb[0].mxu0 %v888
    %v927 = vpop.f32.mrb[0].mxu0
    %v928 = vadd.f32 0.0, %v927
    %v929 = vpop.f32.mrb[0].mxu0
    %v930 = vpop.f32.mrb[0].mxu0
    %v931 = vpop.f32.mrb[0].mxu0
    %932 = vdwg.mxu0
    %933 = vrot.lane.b32.xlu0 %v245, 120
    %v934 = vpop.permute.xlu0 %933
    %935 = vrot.lane.b32.xlu0 %v245, 88
    %v936 = vpop.permute.xlu0 %935
    %v938 = vsel %vm249, %v934, 0
    %v941 = vsel %vm249, %v936, 0
    %943 = vmatprep.subr.bf16.mxu0 0
    %944 = vmatpush1.bf16.xpose.msra.mxu0 %v941
    %945 = vmatprep.subr.bf16.mxu0 0
    %946 = vmatpush1.bf16.xpose.msra.mxu0 0
    %947 = vmatprep.subr.bf16.mxu0 0
    %948 = vmatpush1.bf16.xpose.msra.mxu0 0
    %949 = vmatprep.subr.bf16.mxu0 0
    %950 = vmatpush1.bf16.xpose.msra.mxu0 0
    %951 = vmatprep.subr.bf16.mxu0 0
    %952 = vmatpush1.bf16.xpose.msra.mxu0 0
    %953 = vmatprep.subr.bf16.mxu0 0
    %954 = vmatpush1.bf16.xpose.msra.mxu0 0
    %955 = vmatprep.subr.bf16.mxu0 0
    %956 = vmatpush1.bf16.xpose.msra.mxu0 0
    %957 = vmatprep.subr.bf16.mxu0 0
    %958 = vmatpush1.bf16.xpose.msra.mxu0 0
    %959 = vmatprep.subr.bf16.mxu0 0
    %960 = vmatpush1.bf16.xpose.msra.mxu0 0
    %961 = vmatprep.subr.bf16.mxu0 0
    %962 = vmatpush1.bf16.xpose.msra.mxu0 0
    %963 = vmatprep.subr.bf16.mxu0 0
    %964 = vmatpush1.bf16.xpose.msra.mxu0 0
    %965 = vmatprep.subr.bf16.mxu0 0
    %966 = vmatpush1.bf16.xpose.msra.mxu0 0
    %967 = vmatprep.subr.bf16.mxu0 0
    %968 = vmatpush1.bf16.xpose.msra.mxu0 0
    %969 = vmatprep.subr.bf16.mxu0 0
    %970 = vmatpush1.bf16.xpose.msra.mxu0 0
    %971 = vmatprep.subr.bf16.mxu0 0
    %972 = vmatpush1.bf16.xpose.msra.mxu0 0
    %973 = vmatprep.subr.bf16.mxu0 0
    %974 = vmatpush1.bf16.xpose.msra.mxu0 0
    %975 = vmatprep.mubr.bf16.mxu0 0
    %976 = vmatmul.mubr.bf16.gmra.mrb[0].mxu0 %v938
    %v977 = vpop.f32.mrb[0].mxu0
    %v978 = vadd.f32 0.0, %v977
    %v979 = vpop.f32.mrb[0].mxu0
    %v980 = vpop.f32.mrb[0].mxu0
    %v981 = vpop.f32.mrb[0].mxu0
    %982 = vdwg.mxu0
    %v983 = vmul.f32 %v828, 0.35355338
    %v984 = vmul.f32 %v878, 0.35355338
    %v985 = vmul.f32 %v928, 0.35355338
    %v986 = vmul.f32 %v978, 0.35355338
    %v987 = vadd.f32 %v983, %v450
    %v988 = vadd.f32 %v984, %v454
    %v989 = vadd.f32 %v985, %v458
    %v990 = vadd.f32 %v986, %v462
    %v991 = vsel %vm249, %v987, -inf
    %992 = vmax.xlane.f32.xlu0 %v991
    %v993 = vpop.xlane.xlu0 %992
    %v994 = vsel %vm249, %v988, -inf
    %995 = vmax.xlane.f32.xlu0 %v994
    %v996 = vpop.xlane.xlu0 %995
    %v997 = vsel %vm249, %v989, -inf
    %998 = vmax.xlane.f32.xlu0 %v997
    %v999 = vpop.xlane.xlu0 %998
    %v1000 = vsel %vm249, %v990, -inf
    %1001 = vmax.xlane.f32.xlu0 %v1000
    %v1002 = vpop.xlane.xlu0 %1001
    %v1003 = vsub.f32 %v987, %v993
    %v1004 = vsub.f32 %v988, %v996
    %v1005 = vsub.f32 %v989, %v999
    %v1006 = vsub.f32 %v990, %v1002
    %v1007 = vmul.f32 %v1003, 1.442695
    %v1008 = vpow.pop %v1007
    %v1009 = vmul.f32 %v1004, 1.442695
    %v1010 = vpow.pop %v1009
    %v1011 = vmul.f32 %v1005, 1.442695
    %v1012 = vpow.pop %v1011
    %v1013 = vmul.f32 %v1006, 1.442695
    %v1014 = vpow.pop %v1013
    %v1015 = vsel %vm249, %v1008, 0.0
    %1016 = vadd.xlane.f32.xlu0 %v1015
    %v1017 = vpop.xlane.xlu0 %1016
    %v1018 = vsel %vm249, %v1010, 0.0
    %1019 = vadd.xlane.f32.xlu0 %v1018
    %v1020 = vpop.xlane.xlu0 %1019
    %v1021 = vsel %vm249, %v1012, 0.0
    %1022 = vadd.xlane.f32.xlu0 %v1021
    %v1023 = vpop.xlane.xlu0 %1022
    %v1024 = vsel %vm249, %v1014, 0.0
    %1025 = vadd.xlane.f32.xlu0 %v1024
    %v1026 = vpop.xlane.xlu0 %1025
    %v1027 = vrcp.pop %v1017
    %v1028 = vrcp.pop %v1020
    %v1029 = vrcp.pop %v1023
    %v1030 = vrcp.pop %v1026
    %v1031 = vmul.f32 %v1008, %v1027
    %v1032 = vmul.f32 %v1010, %v1028
    %v1033 = vmul.f32 %v1012, %v1029
    %v1034 = vmul.f32 %v1014, %v1030
    %v1035 = vpack.c.bf16 %v1031, %v1031
    %v1036 = vpack.c.bf16 %v1032, %v1032
    %v1037 = vpack.c.bf16 %v1033, %v1033
    %v1038 = vpack.c.bf16 %v1034, %v1034
    %1039 = vrot.lane.b32.xlu0 %v242, 56
    %v1040 = vpop.permute.xlu0 %1039
    %v1042 = vsel %vm249, %v1035, 0
    %v1045 = vsel %vm524, %v1040, 0
    %1047 = vmatprep.subr.bf16.mxu0 0
    %1048 = vmatpush1.bf16.msra.mxu0 %v1045
    %1049 = vmatprep.subr.bf16.mxu0 0
    %1050 = vmatpush1.bf16.msra.mxu0 0
    %1051 = vmatprep.subr.bf16.mxu0 0
    %1052 = vmatpush1.bf16.msra.mxu0 0
    %1053 = vmatprep.subr.bf16.mxu0 0
    %1054 = vmatpush1.bf16.msra.mxu0 0
    %1055 = vmatprep.subr.bf16.mxu0 0
    %1056 = vmatpush1.bf16.msra.mxu0 0
    %1057 = vmatprep.subr.bf16.mxu0 0
    %1058 = vmatpush1.bf16.msra.mxu0 0
    %1059 = vmatprep.subr.bf16.mxu0 0
    %1060 = vmatpush1.bf16.msra.mxu0 0
    %1061 = vmatprep.subr.bf16.mxu0 0
    %1062 = vmatpush1.bf16.msra.mxu0 0
    %1063 = vmatprep.subr.bf16.mxu0 0
    %1064 = vmatpush1.bf16.msra.mxu0 0
    %1065 = vmatprep.subr.bf16.mxu0 0
    %1066 = vmatpush1.bf16.msra.mxu0 0
    %1067 = vmatprep.subr.bf16.mxu0 0
    %1068 = vmatpush1.bf16.msra.mxu0 0
    %1069 = vmatprep.subr.bf16.mxu0 0
    %1070 = vmatpush1.bf16.msra.mxu0 0
    %1071 = vmatprep.subr.bf16.mxu0 0
    %1072 = vmatpush1.bf16.msra.mxu0 0
    %1073 = vmatprep.subr.bf16.mxu0 0
    %1074 = vmatpush1.bf16.msra.mxu0 0
    %1075 = vmatprep.subr.bf16.mxu0 0
    %1076 = vmatpush1.bf16.msra.mxu0 0
    %1077 = vmatprep.subr.bf16.mxu0 0
    %1078 = vmatpush1.bf16.msra.mxu0 0
    %1079 = vmatprep.mubr.bf16.mxu0 0
    %1080 = vmatmul.mubr.bf16.gmra.mrb[0].mxu0 %v1042
    %v1081 = vpop.f32.mrb[0].mxu0
    %v1082 = vadd.f32 0.0, %v1081
    %v1083 = vpop.f32.mrb[0].mxu0
    %v1084 = vpop.f32.mrb[0].mxu0
    %v1085 = vpop.f32.mrb[0].mxu0
    %1086 = vdwg.mxu0
    %1087 = vrot.lane.b32.xlu0 %v243, 56
    %v1088 = vpop.permute.xlu0 %1087
    %v1090 = vsel %vm249, %v1036, 0
    %v1093 = vsel %vm524, %v1088, 0
    %1095 = vmatprep.subr.bf16.mxu0 0
    %1096 = vmatpush1.bf16.msra.mxu0 %v1093
    %1097 = vmatprep.subr.bf16.mxu0 0
    %1098 = vmatpush1.bf16.msra.mxu0 0
    %1099 = vmatprep.subr.bf16.mxu0 0
    %1100 = vmatpush1.bf16.msra.mxu0 0
    %1101 = vmatprep.subr.bf16.mxu0 0
    %1102 = vmatpush1.bf16.msra.mxu0 0
    %1103 = vmatprep.subr.bf16.mxu0 0
    %1104 = vmatpush1.bf16.msra.mxu0 0
    %1105 = vmatprep.subr.bf16.mxu0 0
    %1106 = vmatpush1.bf16.msra.mxu0 0
    %1107 = vmatprep.subr.bf16.mxu0 0
    %1108 = vmatpush1.bf16.msra.mxu0 0
    %1109 = vmatprep.subr.bf16.mxu0 0
    %1110 = vmatpush1.bf16.msra.mxu0 0
    %1111 = vmatprep.subr.bf16.mxu0 0
    %1112 = vmatpush1.bf16.msra.mxu0 0
    %1113 = vmatprep.subr.bf16.mxu0 0
    %1114 = vmatpush1.bf16.msra.mxu0 0
    %1115 = vmatprep.subr.bf16.mxu0 0
    %1116 = vmatpush1.bf16.msra.mxu0 0
    %1117 = vmatprep.subr.bf16.mxu0 0
    %1118 = vmatpush1.bf16.msra.mxu0 0
    %1119 = vmatprep.subr.bf16.mxu0 0
    %1120 = vmatpush1.bf16.msra.mxu0 0
    %1121 = vmatprep.subr.bf16.mxu0 0
    %1122 = vmatpush1.bf16.msra.mxu0 0
    %1123 = vmatprep.subr.bf16.mxu0 0
    %1124 = vmatpush1.bf16.msra.mxu0 0
    %1125 = vmatprep.subr.bf16.mxu0 0
    %1126 = vmatpush1.bf16.msra.mxu0 0
    %1127 = vmatprep.mubr.bf16.mxu0 0
    %1128 = vmatmul.mubr.bf16.gmra.mrb[0].mxu0 %v1090
    %v1129 = vpop.f32.mrb[0].mxu0
    %v1130 = vadd.f32 0.0, %v1129
    %v1131 = vpop.f32.mrb[0].mxu0
    %v1132 = vpop.f32.mrb[0].mxu0
    %v1133 = vpop.f32.mrb[0].mxu0
    %1134 = vdwg.mxu0
    %1135 = vrot.lane.b32.xlu0 %v244, 56
    %v1136 = vpop.permute.xlu0 %1135
    %v1138 = vsel %vm249, %v1037, 0
    %v1141 = vsel %vm524, %v1136, 0
    %1143 = vmatprep.subr.bf16.mxu0 0
    %1144 = vmatpush1.bf16.msra.mxu0 %v1141
    %1145 = vmatprep.subr.bf16.mxu0 0
    %1146 = vmatpush1.bf16.msra.mxu0 0
    %1147 = vmatprep.subr.bf16.mxu0 0
    %1148 = vmatpush1.bf16.msra.mxu0 0
    %1149 = vmatprep.subr.bf16.mxu0 0
    %1150 = vmatpush1.bf16.msra.mxu0 0
    %1151 = vmatprep.subr.bf16.mxu0 0
    %1152 = vmatpush1.bf16.msra.mxu0 0
    %1153 = vmatprep.subr.bf16.mxu0 0
    %1154 = vmatpush1.bf16.msra.mxu0 0
    %1155 = vmatprep.subr.bf16.mxu0 0
    %1156 = vmatpush1.bf16.msra.mxu0 0
    %1157 = vmatprep.subr.bf16.mxu0 0
    %1158 = vmatpush1.bf16.msra.mxu0 0
    %1159 = vmatprep.subr.bf16.mxu0 0
    %1160 = vmatpush1.bf16.msra.mxu0 0
    %1161 = vmatprep.subr.bf16.mxu0 0
    %1162 = vmatpush1.bf16.msra.mxu0 0
    %1163 = vmatprep.subr.bf16.mxu0 0
    %1164 = vmatpush1.bf16.msra.mxu0 0
    %1165 = vmatprep.subr.bf16.mxu0 0
    %1166 = vmatpush1.bf16.msra.mxu0 0
    %1167 = vmatprep.subr.bf16.mxu0 0
    %1168 = vmatpush1.bf16.msra.mxu0 0
    %1169 = vmatprep.subr.bf16.mxu0 0
    %1170 = vmatpush1.bf16.msra.mxu0 0
    %1171 = vmatprep.subr.bf16.mxu0 0
    %1172 = vmatpush1.bf16.msra.mxu0 0
    %1173 = vmatprep.subr.bf16.mxu0 0
    %1174 = vmatpush1.bf16.msra.mxu0 0
    %1175 = vmatprep.mubr.bf16.mxu0 0
    %1176 = vmatmul.mubr.bf16.gmra.mrb[0].mxu0 %v1138
    %v1177 = vpop.f32.mrb[0].mxu0
    %v1178 = vadd.f32 0.0, %v1177
    %v1179 = vpop.f32.mrb[0].mxu0
    %v1180 = vpop.f32.mrb[0].mxu0
    %v1181 = vpop.f32.mrb[0].mxu0
    %1182 = vdwg.mxu0
    %1183 = vrot.lane.b32.xlu0 %v245, 56
    %v1184 = vpop.permute.xlu0 %1183
    %v1186 = vsel %vm249, %v1038, 0
    %v1189 = vsel %vm524, %v1184, 0
    %1191 = vmatprep.subr.bf16.mxu0 0
    %1192 = vmatpush1.bf16.msra.mxu0 %v1189
    %1193 = vmatprep.subr.bf16.mxu0 0
    %1194 = vmatpush1.bf16.msra.mxu0 0
    %1195 = vmatprep.subr.bf16.mxu0 0
    %1196 = vmatpush1.bf16.msra.mxu0 0
    %1197 = vmatprep.subr.bf16.mxu0 0
    %1198 = vmatpush1.bf16.msra.mxu0 0
    %1199 = vmatprep.subr.bf16.mxu0 0
    %1200 = vmatpush1.bf16.msra.mxu0 0
    %1201 = vmatprep.subr.bf16.mxu0 0
    %1202 = vmatpush1.bf16.msra.mxu0 0
    %1203 = vmatprep.subr.bf16.mxu0 0
    %1204 = vmatpush1.bf16.msra.mxu0 0
    %1205 = vmatprep.subr.bf16.mxu0 0
    %1206 = vmatpush1.bf16.msra.mxu0 0
    %1207 = vmatprep.subr.bf16.mxu0 0
    %1208 = vmatpush1.bf16.msra.mxu0 0
    %1209 = vmatprep.subr.bf16.mxu0 0
    %1210 = vmatpush1.bf16.msra.mxu0 0
    %1211 = vmatprep.subr.bf16.mxu0 0
    %1212 = vmatpush1.bf16.msra.mxu0 0
    %1213 = vmatprep.subr.bf16.mxu0 0
    %1214 = vmatpush1.bf16.msra.mxu0 0
    %1215 = vmatprep.subr.bf16.mxu0 0
    %1216 = vmatpush1.bf16.msra.mxu0 0
    %1217 = vmatprep.subr.bf16.mxu0 0
    %1218 = vmatpush1.bf16.msra.mxu0 0
    %1219 = vmatprep.subr.bf16.mxu0 0
    %1220 = vmatpush1.bf16.msra.mxu0 0
    %1221 = vmatprep.subr.bf16.mxu0 0
    %1222 = vmatpush1.bf16.msra.mxu0 0
    %1223 = vmatprep.mubr.bf16.mxu0 0
    %1224 = vmatmul.mubr.bf16.gmra.mrb[0].mxu0 %v1186
    %v1225 = vpop.f32.mrb[0].mxu0
    %v1226 = vadd.f32 0.0, %v1225
    %v1227 = vpop.f32.mrb[0].mxu0
    %v1228 = vpop.f32.mrb[0].mxu0
    %v1229 = vpop.f32.mrb[0].mxu0
    %1230 = vdwg.mxu0
    %v1231 = vpack.c.bf16 %v1130, %v1082
    %v1232 = vpack.c.bf16 %v1226, %v1178
    %v1233 = vpack.c.bf16 %v238, %v238
    %v1235 = vsel %vm249, %v1231, 0
    %v1238 = vsel %vm249, %v1232, 0
    %v1241 = vsel %vm524, %v1233, 0
    %1243 = vmatprep.subr.bf16.mxu0 0
    %1244 = vmatpush1.bf16.msra.mxu0 %v1241
    %1245 = vmatprep.subr.bf16.mxu0 0
    %1246 = vmatpush1.bf16.msra.mxu0 0
    %1247 = vmatprep.subr.bf16.mxu0 0
    %1248 = vmatpush1.bf16.msra.mxu0 0
    %1249 = vmatprep.subr.bf16.mxu0 0
    %1250 = vmatpush1.bf16.msra.mxu0 0
    %1251 = vmatprep.subr.bf16.mxu0 0
    %1252 = vmatpush1.bf16.msra.mxu0 0
    %1253 = vmatprep.subr.bf16.mxu0 0
    %1254 = vmatpush1.bf16.msra.mxu0 0
    %1255 = vmatprep.subr.bf16.mxu0 0
    %1256 = vmatpush1.bf16.msra.mxu0 0
    %1257 = vmatprep.subr.bf16.mxu0 0
    %1258 = vmatpush1.bf16.msra.mxu0 0
    %1259 = vmatprep.subr.bf16.mxu0 0
    %1260 = vmatpush1.bf16.msra.mxu0 0
    %1261 = vmatprep.subr.bf16.mxu0 0
    %1262 = vmatpush1.bf16.msra.mxu0 0
    %1263 = vmatprep.subr.bf16.mxu0 0
    %1264 = vmatpush1.bf16.msra.mxu0 0
    %1265 = vmatprep.subr.bf16.mxu0 0
    %1266 = vmatpush1.bf16.msra.mxu0 0
    %1267 = vmatprep.subr.bf16.mxu0 0
    %1268 = vmatpush1.bf16.msra.mxu0 0
    %1269 = vmatprep.subr.bf16.mxu0 0
    %1270 = vmatpush1.bf16.msra.mxu0 0
    %1271 = vmatprep.subr.bf16.mxu0 0
    %1272 = vmatpush1.bf16.msra.mxu0 0
    %1273 = vmatprep.subr.bf16.mxu0 0
    %1274 = vmatpush1.bf16.msra.mxu0 0
    %1275 = vmatprep.mubr.bf16.mxu0 0
    %1276 = vmatmul.mubr.bf16.gmra.mrb[0].mxu0 %v1235
    %v1277 = vpop.f32.mrb[0].mxu0
    %v1278 = vadd.f32 0.0, %v1277
    %v1279 = vpop.f32.mrb[0].mxu0
    %v1280 = vpop.f32.mrb[0].mxu0
    %v1281 = vadd.f32 0.0, %v1280
    %v1282 = vpop.f32.mrb[0].mxu0
    %1283 = vmatprep.mubr.bf16.mxu0 0
    %1284 = vmatmul.mubr.bf16.gmra.mrb[0].mxu0 %v1238
    %v1285 = vpop.f32.mrb[0].mxu0
    %v1286 = vadd.f32 0.0, %v1285
    %v1287 = vpop.f32.mrb[0].mxu0
    %v1288 = vpop.f32.mrb[0].mxu0
    %v1289 = vadd.f32 0.0, %v1288
    %v1290 = vpop.f32.mrb[0].mxu0
    %1291 = vdwg.mxu0
    %v1292 = vadd.f32 %v779, %v1278
    %v1293 = vadd.f32 %v780, %v1281
    %v1294 = vadd.f32 %v781, %v1286
    %v1295 = vadd.f32 %v782, %v1289
    %1296 = vrot.lane.b32.xlu0 %v242, 112
    %v1297 = vpop.permute.xlu0 %1296
    %1298 = vrot.lane.b32.xlu0 %v242, 80
    %v1299 = vpop.permute.xlu0 %1298
    %v1301 = vsel %vm249, %v1297, 0
    %v1304 = vsel %vm249, %v1299, 0
    %1306 = vmatprep.subr.bf16.mxu0 0
    %1307 = vmatpush1.bf16.xpose.msra.mxu0 %v1304
    %1308 = vmatprep.subr.bf16.mxu0 0
    %1309 = vmatpush1.bf16.xpose.msra.mxu0 0
    %1310 = vmatprep.subr.bf16.mxu0 0
    %1311 = vmatpush1.bf16.xpose.msra.mxu0 0
    %1312 = vmatprep.subr.bf16.mxu0 0
    %1313 = vmatpush1.bf16.xpose.msra.mxu0 0
    %1314 = vmatprep.subr.bf16.mxu0 0
    %1315 = vmatpush1.bf16.xpose.msra.mxu0 0
    %1316 = vmatprep.subr.bf16.mxu0 0
    %1317 = vmatpush1.bf16.xpose.msra.mxu0 0
    %1318 = vmatprep.subr.bf16.mxu0 0
    %1319 = vmatpush1.bf16.xpose.msra.mxu0 0
    %1320 = vmatprep.subr.bf16.mxu0 0
    %1321 = vmatpush1.bf16.xpose.msra.mxu0 0
    %1322 = vmatprep.subr.bf16.mxu0 0
    %1323 = vmatpush1.bf16.xpose.msra.mxu0 0
    %1324 = vmatprep.subr.bf16.mxu0 0
    %1325 = vmatpush1.bf16.xpose.msra.mxu0 0
    %1326 = vmatprep.subr.bf16.mxu0 0
    %1327 = vmatpush1.bf16.xpose.msra.mxu0 0
    %1328 = vmatprep.subr.bf16.mxu0 0
    %1329 = vmatpush1.bf16.xpose.msra.mxu0 0
    %1330 = vmatprep.subr.bf16.mxu0 0
    %1331 = vmatpush1.bf16.xpose.msra.mxu0 0
    %1332 = vmatprep.subr.bf16.mxu0 0
    %1333 = vmatpush1.bf16.xpose.msra.mxu0 0
    %1334 = vmatprep.subr.bf16.mxu0 0
    %1335 = vmatpush1.bf16.xpose.msra.mxu0 0
    %1336 = vmatprep.subr.bf16.mxu0 0
    %1337 = vmatpush1.bf16.xpose.msra.mxu0 0
    %1338 = vmatprep.mubr.bf16.mxu0 0
    %1339 = vmatmul.mubr.bf16.gmra.mrb[0].mxu0 %v1301
    %v1340 = vpop.f32.mrb[0].mxu0
    %v1341 = vadd.f32 0.0, %v1340
    %v1342 = vpop.f32.mrb[0].mxu0
    %v1343 = vpop.f32.mrb[0].mxu0
    %v1344 = vpop.f32.mrb[0].mxu0
    %1345 = vdwg.mxu0
    %1346 = vrot.lane.b32.xlu0 %v243, 112
    %v1347 = vpop.permute.xlu0 %1346
    %1348 = vrot.lane.b32.xlu0 %v243, 80
    %v1349 = vpop.permute.xlu0 %1348
    %v1351 = vsel %vm249, %v1347, 0
    %v1354 = vsel %vm249, %v1349, 0
    %1356 = vmatprep.subr.bf16.mxu0 0
    %1357 = vmatpush1.bf16.xpose.msra.mxu0 %v1354
    %1358 = vmatprep.subr.bf16.mxu0 0
    %1359 = vmatpush1.bf16.xpose.msra.mxu0 0
    %1360 = vmatprep.subr.bf16.mxu0 0
    %1361 = vmatpush1.bf16.xpose.msra.mxu0 0
    %1362 = vmatprep.subr.bf16.mxu0 0
    %1363 = vmatpush1.bf16.xpose.msra.mxu0 0
    %1364 = vmatprep.subr.bf16.mxu0 0
    %1365 = vmatpush1.bf16.xpose.msra.mxu0 0
    %1366 = vmatprep.subr.bf16.mxu0 0
    %1367 = vmatpush1.bf16.xpose.msra.mxu0 0
    %1368 = vmatprep.subr.bf16.mxu0 0
    %1369 = vmatpush1.bf16.xpose.msra.mxu0 0
    %1370 = vmatprep.subr.bf16.mxu0 0
    %1371 = vmatpush1.bf16.xpose.msra.mxu0 0
    %1372 = vmatprep.subr.bf16.mxu0 0
    %1373 = vmatpush1.bf16.xpose.msra.mxu0 0
    %1374 = vmatprep.subr.bf16.mxu0 0
    %1375 = vmatpush1.bf16.xpose.msra.mxu0 0
    %1376 = vmatprep.subr.bf16.mxu0 0
    %1377 = vmatpush1.bf16.xpose.msra.mxu0 0
    %1378 = vmatprep.subr.bf16.mxu0 0
    %1379 = vmatpush1.bf16.xpose.msra.mxu0 0
    %1380 = vmatprep.subr.bf16.mxu0 0
    %1381 = vmatpush1.bf16.xpose.msra.mxu0 0
    %1382 = vmatprep.subr.bf16.mxu0 0
    %1383 = vmatpush1.bf16.xpose.msra.mxu0 0
    %1384 = vmatprep.subr.bf16.mxu0 0
    %1385 = vmatpush1.bf16.xpose.msra.mxu0 0
    %1386 = vmatprep.subr.bf16.mxu0 0
    %1387 = vmatpush1.bf16.xpose.msra.mxu0 0
    %1388 = vmatprep.mubr.bf16.mxu0 0
    %1389 = vmatmul.mubr.bf16.gmra.mrb[0].mxu0 %v1351
    %v1390 = vpop.f32.mrb[0].mxu0
    %v1391 = vadd.f32 0.0, %v1390
    %v1392 = vpop.f32.mrb[0].mxu0
    %v1393 = vpop.f32.mrb[0].mxu0
    %v1394 = vpop.f32.mrb[0].mxu0
    %1395 = vdwg.mxu0
    %1396 = vrot.lane.b32.xlu0 %v244, 112
    %v1397 = vpop.permute.xlu0 %1396
    %1398 = vrot.lane.b32.xlu0 %v244, 80
    %v1399 = vpop.permute.xlu0 %1398
    %v1401 = vsel %vm249, %v1397, 0
    %v1404 = vsel %vm249, %v1399, 0
    %1406 = vmatprep.subr.bf16.mxu0 0
    %1407 = vmatpush1.bf16.xpose.msra.mxu0 %v1404
    %1408 = vmatprep.subr.bf16.mxu0 0
    %1409 = vmatpush1.bf16.xpose.msra.mxu0 0
    %1410 = vmatprep.subr.bf16.mxu0 0
    %1411 = vmatpush1.bf16.xpose.msra.mxu0 0
    %1412 = vmatprep.subr.bf16.mxu0 0
    %1413 = vmatpush1.bf16.xpose.msra.mxu0 0
    %1414 = vmatprep.subr.bf16.mxu0 0
    %1415 = vmatpush1.bf16.xpose.msra.mxu0 0
    %1416 = vmatprep.subr.bf16.mxu0 0
    %1417 = vmatpush1.bf16.xpose.msra.mxu0 0
    %1418 = vmatprep.subr.bf16.mxu0 0
    %1419 = vmatpush1.bf16.xpose.msra.mxu0 0
    %1420 = vmatprep.subr.bf16.mxu0 0
    %1421 = vmatpush1.bf16.xpose.msra.mxu0 0
    %1422 = vmatprep.subr.bf16.mxu0 0
    %1423 = vmatpush1.bf16.xpose.msra.mxu0 0
    %1424 = vmatprep.subr.bf16.mxu0 0
    %1425 = vmatpush1.bf16.xpose.msra.mxu0 0
    %1426 = vmatprep.subr.bf16.mxu0 0
    %1427 = vmatpush1.bf16.xpose.msra.mxu0 0
    %1428 = vmatprep.subr.bf16.mxu0 0
    %1429 = vmatpush1.bf16.xpose.msra.mxu0 0
    %1430 = vmatprep.subr.bf16.mxu0 0
    %1431 = vmatpush1.bf16.xpose.msra.mxu0 0
    %1432 = vmatprep.subr.bf16.mxu0 0
    %1433 = vmatpush1.bf16.xpose.msra.mxu0 0
    %1434 = vmatprep.subr.bf16.mxu0 0
    %1435 = vmatpush1.bf16.xpose.msra.mxu0 0
    %1436 = vmatprep.subr.bf16.mxu0 0
    %1437 = vmatpush1.bf16.xpose.msra.mxu0 0
    %1438 = vmatprep.mubr.bf16.mxu0 0
    %1439 = vmatmul.mubr.bf16.gmra.mrb[0].mxu0 %v1401
    %v1440 = vpop.f32.mrb[0].mxu0
    %v1441 = vadd.f32 0.0, %v1440
    %v1442 = vpop.f32.mrb[0].mxu0
    %v1443 = vpop.f32.mrb[0].mxu0
    %v1444 = vpop.f32.mrb[0].mxu0
    %1445 = vdwg.mxu0
    %1446 = vrot.lane.b32.xlu0 %v245, 112
    %v1447 = vpop.permute.xlu0 %1446
    %1448 = vrot.lane.b32.xlu0 %v245, 80
    %v1449 = vpop.permute.xlu0 %1448
    %v1451 = vsel %vm249, %v1447, 0
    %v1454 = vsel %vm249, %v1449, 0
    %1456 = vmatprep.subr.bf16.mxu0 0
    %1457 = vmatpush1.bf16.xpose.msra.mxu0 %v1454
    %1458 = vmatprep.subr.bf16.mxu0 0
    %1459 = vmatpush1.bf16.xpose.msra.mxu0 0
    %1460 = vmatprep.subr.bf16.mxu0 0
    %1461 = vmatpush1.bf16.xpose.msra.mxu0 0
    %1462 = vmatprep.subr.bf16.mxu0 0
    %1463 = vmatpush1.bf16.xpose.msra.mxu0 0
    %1464 = vmatprep.subr.bf16.mxu0 0
    %1465 = vmatpush1.bf16.xpose.msra.mxu0 0
    %1466 = vmatprep.subr.bf16.mxu0 0
    %1467 = vmatpush1.bf16.xpose.msra.mxu0 0
    %1468 = vmatprep.subr.bf16.mxu0 0
    %1469 = vmatpush1.bf16.xpose.msra.mxu0 0
    %1470 = vmatprep.subr.bf16.mxu0 0
    %1471 = vmatpush1.bf16.xpose.msra.mxu0 0
    %1472 = vmatprep.subr.bf16.mxu0 0
    %1473 = vmatpush1.bf16.xpose.msra.mxu0 0
    %1474 = vmatprep.subr.bf16.mxu0 0
    %1475 = vmatpush1.bf16.xpose.msra.mxu0 0
    %1476 = vmatprep.subr.bf16.mxu0 0
    %1477 = vmatpush1.bf16.xpose.msra.mxu0 0
    %1478 = vmatprep.subr.bf16.mxu0 0
    %1479 = vmatpush1.bf16.xpose.msra.mxu0 0
    %1480 = vmatprep.subr.bf16.mxu0 0
    %1481 = vmatpush1.bf16.xpose.msra.mxu0 0
    %1482 = vmatprep.subr.bf16.mxu0 0
    %1483 = vmatpush1.bf16.xpose.msra.mxu0 0
    %1484 = vmatprep.subr.bf16.mxu0 0
    %1485 = vmatpush1.bf16.xpose.msra.mxu0 0
    %1486 = vmatprep.subr.bf16.mxu0 0
    %1487 = vmatpush1.bf16.xpose.msra.mxu0 0
    %1488 = vmatprep.mubr.bf16.mxu0 0
    %1489 = vmatmul.mubr.bf16.gmra.mrb[0].mxu0 %v1451
    %v1490 = vpop.f32.mrb[0].mxu0
    %v1491 = vadd.f32 0.0, %v1490
    %v1492 = vpop.f32.mrb[0].mxu0
    %v1493 = vpop.f32.mrb[0].mxu0
    %v1494 = vpop.f32.mrb[0].mxu0
    %1495 = vdwg.mxu0
    %v1496 = vmul.f32 %v1341, 0.35355338
    %v1497 = vmul.f32 %v1391, 0.35355338
    %v1498 = vmul.f32 %v1441, 0.35355338
    %v1499 = vmul.f32 %v1491, 0.35355338
    %v1500 = vadd.f32 %v1496, %v450
    %v1501 = vadd.f32 %v1497, %v454
    %v1502 = vadd.f32 %v1498, %v458
    %v1503 = vadd.f32 %v1499, %v462
    %v1504 = vsel %vm249, %v1500, -inf
    %1505 = vmax.xlane.f32.xlu0 %v1504
    %v1506 = vpop.xlane.xlu0 %1505
    %v1507 = vsel %vm249, %v1501, -inf
    %1508 = vmax.xlane.f32.xlu0 %v1507
    %v1509 = vpop.xlane.xlu0 %1508
    %v1510 = vsel %vm249, %v1502, -inf
    %1511 = vmax.xlane.f32.xlu0 %v1510
    %v1512 = vpop.xlane.xlu0 %1511
    %v1513 = vsel %vm249, %v1503, -inf
    %1514 = vmax.xlane.f32.xlu0 %v1513
    %v1515 = vpop.xlane.xlu0 %1514
    %v1516 = vsub.f32 %v1500, %v1506
    %v1517 = vsub.f32 %v1501, %v1509
    %v1518 = vsub.f32 %v1502, %v1512
    %v1519 = vsub.f32 %v1503, %v1515
    %v1520 = vmul.f32 %v1516, 1.442695
    %v1521 = vpow.pop %v1520
    %v1522 = vmul.f32 %v1517, 1.442695
    %v1523 = vpow.pop %v1522
    %v1524 = vmul.f32 %v1518, 1.442695
    %v1525 = vpow.pop %v1524
    %v1526 = vmul.f32 %v1519, 1.442695
    %v1527 = vpow.pop %v1526
    %v1528 = vsel %vm249, %v1521, 0.0
    %1529 = vadd.xlane.f32.xlu0 %v1528
    %v1530 = vpop.xlane.xlu0 %1529
    %v1531 = vsel %vm249, %v1523, 0.0
    %1532 = vadd.xlane.f32.xlu0 %v1531
    %v1533 = vpop.xlane.xlu0 %1532
    %v1534 = vsel %vm249, %v1525, 0.0
    %1535 = vadd.xlane.f32.xlu0 %v1534
    %v1536 = vpop.xlane.xlu0 %1535
    %v1537 = vsel %vm249, %v1527, 0.0
    %1538 = vadd.xlane.f32.xlu0 %v1537
    %v1539 = vpop.xlane.xlu0 %1538
    %v1540 = vrcp.pop %v1530
    %v1541 = vrcp.pop %v1533
    %v1542 = vrcp.pop %v1536
    %v1543 = vrcp.pop %v1539
    %v1544 = vmul.f32 %v1521, %v1540
    %v1545 = vmul.f32 %v1523, %v1541
    %v1546 = vmul.f32 %v1525, %v1542
    %v1547 = vmul.f32 %v1527, %v1543
    %v1548 = vpack.c.bf16 %v1544, %v1544
    %v1549 = vpack.c.bf16 %v1545, %v1545
    %v1550 = vpack.c.bf16 %v1546, %v1546
    %v1551 = vpack.c.bf16 %v1547, %v1547
    %1552 = vrot.lane.b32.xlu0 %v242, 48
    %v1553 = vpop.permute.xlu0 %1552
    %v1555 = vsel %vm249, %v1548, 0
    %v1558 = vsel %vm524, %v1553, 0
    %1560 = vmatprep.subr.bf16.mxu0 0
    %1561 = vmatpush1.bf16.msra.mxu0 %v1558
    %1562 = vmatprep.subr.bf16.mxu0 0
    %1563 = vmatpush1.bf16.msra.mxu0 0
    %1564 = vmatprep.subr.bf16.mxu0 0
    %1565 = vmatpush1.bf16.msra.mxu0 0
    %1566 = vmatprep.subr.bf16.mxu0 0
    %1567 = vmatpush1.bf16.msra.mxu0 0
    %1568 = vmatprep.subr.bf16.mxu0 0
    %1569 = vmatpush1.bf16.msra.mxu0 0
    %1570 = vmatprep.subr.bf16.mxu0 0
    %1571 = vmatpush1.bf16.msra.mxu0 0
    %1572 = vmatprep.subr.bf16.mxu0 0
    %1573 = vmatpush1.bf16.msra.mxu0 0
    %1574 = vmatprep.subr.bf16.mxu0 0
    %1575 = vmatpush1.bf16.msra.mxu0 0
    %1576 = vmatprep.subr.bf16.mxu0 0
    %1577 = vmatpush1.bf16.msra.mxu0 0
    %1578 = vmatprep.subr.bf16.mxu0 0
    %1579 = vmatpush1.bf16.msra.mxu0 0
    %1580 = vmatprep.subr.bf16.mxu0 0
    %1581 = vmatpush1.bf16.msra.mxu0 0
    %1582 = vmatprep.subr.bf16.mxu0 0
    %1583 = vmatpush1.bf16.msra.mxu0 0
    %1584 = vmatprep.subr.bf16.mxu0 0
    %1585 = vmatpush1.bf16.msra.mxu0 0
    %1586 = vmatprep.subr.bf16.mxu0 0
    %1587 = vmatpush1.bf16.msra.mxu0 0
    %1588 = vmatprep.subr.bf16.mxu0 0
    %1589 = vmatpush1.bf16.msra.mxu0 0
    %1590 = vmatprep.subr.bf16.mxu0 0
    %1591 = vmatpush1.bf16.msra.mxu0 0
    %1592 = vmatprep.mubr.bf16.mxu0 0
    %1593 = vmatmul.mubr.bf16.gmra.mrb[0].mxu0 %v1555
    %v1594 = vpop.f32.mrb[0].mxu0
    %v1595 = vadd.f32 0.0, %v1594
    %v1596 = vpop.f32.mrb[0].mxu0
    %v1597 = vpop.f32.mrb[0].mxu0
    %v1598 = vpop.f32.mrb[0].mxu0
    %1599 = vdwg.mxu0
    %1600 = vrot.lane.b32.xlu0 %v243, 48
    %v1601 = vpop.permute.xlu0 %1600
    %v1603 = vsel %vm249, %v1549, 0
    %v1606 = vsel %vm524, %v1601, 0
    %1608 = vmatprep.subr.bf16.mxu0 0
    %1609 = vmatpush1.bf16.msra.mxu0 %v1606
    %1610 = vmatprep.subr.bf16.mxu0 0
    %1611 = vmatpush1.bf16.msra.mxu0 0
    %1612 = vmatprep.subr.bf16.mxu0 0
    %1613 = vmatpush1.bf16.msra.mxu0 0
    %1614 = vmatprep.subr.bf16.mxu0 0
    %1615 = vmatpush1.bf16.msra.mxu0 0
    %1616 = vmatprep.subr.bf16.mxu0 0
    %1617 = vmatpush1.bf16.msra.mxu0 0
    %1618 = vmatprep.subr.bf16.mxu0 0
    %1619 = vmatpush1.bf16.msra.mxu0 0
    %1620 = vmatprep.subr.bf16.mxu0 0
    %1621 = vmatpush1.bf16.msra.mxu0 0
    %1622 = vmatprep.subr.bf16.mxu0 0
    %1623 = vmatpush1.bf16.msra.mxu0 0
    %1624 = vmatprep.subr.bf16.mxu0 0
    %1625 = vmatpush1.bf16.msra.mxu0 0
    %1626 = vmatprep.subr.bf16.mxu0 0
    %1627 = vmatpush1.bf16.msra.mxu0 0
    %1628 = vmatprep.subr.bf16.mxu0 0
    %1629 = vmatpush1.bf16.msra.mxu0 0
    %1630 = vmatprep.subr.bf16.mxu0 0
    %1631 = vmatpush1.bf16.msra.mxu0 0
    %1632 = vmatprep.subr.bf16.mxu0 0
    %1633 = vmatpush1.bf16.msra.mxu0 0
    %1634 = vmatprep.subr.bf16.mxu0 0
    %1635 = vmatpush1.bf16.msra.mxu0 0
    %1636 = vmatprep.subr.bf16.mxu0 0
    %1637 = vmatpush1.bf16.msra.mxu0 0
    %1638 = vmatprep.subr.bf16.mxu0 0
    %1639 = vmatpush1.bf16.msra.mxu0 0
    %1640 = vmatprep.mubr.bf16.mxu0 0
    %1641 = vmatmul.mubr.bf16.gmra.mrb[0].mxu0 %v1603
    %v1642 = vpop.f32.mrb[0].mxu0
    %v1643 = vadd.f32 0.0, %v1642
    %v1644 = vpop.f32.mrb[0].mxu0
    %v1645 = vpop.f32.mrb[0].mxu0
    %v1646 = vpop.f32.mrb[0].mxu0
    %1647 = vdwg.mxu0
    %1648 = vrot.lane.b32.xlu0 %v244, 48
    %v1649 = vpop.permute.xlu0 %1648
    %v1651 = vsel %vm249, %v1550, 0
    %v1654 = vsel %vm524, %v1649, 0
    %1656 = vmatprep.subr.bf16.mxu0 0
    %1657 = vmatpush1.bf16.msra.mxu0 %v1654
    %1658 = vmatprep.subr.bf16.mxu0 0
    %1659 = vmatpush1.bf16.msra.mxu0 0
    %1660 = vmatprep.subr.bf16.mxu0 0
    %1661 = vmatpush1.bf16.msra.mxu0 0
    %1662 = vmatprep.subr.bf16.mxu0 0
    %1663 = vmatpush1.bf16.msra.mxu0 0
    %1664 = vmatprep.subr.bf16.mxu0 0
    %1665 = vmatpush1.bf16.msra.mxu0 0
    %1666 = vmatprep.subr.bf16.mxu0 0
    %1667 = vmatpush1.bf16.msra.mxu0 0
    %1668 = vmatprep.subr.bf16.mxu0 0
    %1669 = vmatpush1.bf16.msra.mxu0 0
    %1670 = vmatprep.subr.bf16.mxu0 0
    %1671 = vmatpush1.bf16.msra.mxu0 0
    %1672 = vmatprep.subr.bf16.mxu0 0
    %1673 = vmatpush1.bf16.msra.mxu0 0
    %1674 = vmatprep.subr.bf16.mxu0 0
    %1675 = vmatpush1.bf16.msra.mxu0 0
    %1676 = vmatprep.subr.bf16.mxu0 0
    %1677 = vmatpush1.bf16.msra.mxu0 0
    %1678 = vmatprep.subr.bf16.mxu0 0
    %1679 = vmatpush1.bf16.msra.mxu0 0
    %1680 = vmatprep.subr.bf16.mxu0 0
    %1681 = vmatpush1.bf16.msra.mxu0 0
    %1682 = vmatprep.subr.bf16.mxu0 0
    %1683 = vmatpush1.bf16.msra.mxu0 0
    %1684 = vmatprep.subr.bf16.mxu0 0
    %1685 = vmatpush1.bf16.msra.mxu0 0
    %1686 = vmatprep.subr.bf16.mxu0 0
    %1687 = vmatpush1.bf16.msra.mxu0 0
    %1688 = vmatprep.mubr.bf16.mxu0 0
    %1689 = vmatmul.mubr.bf16.gmra.mrb[0].mxu0 %v1651
    %v1690 = vpop.f32.mrb[0].mxu0
    %v1691 = vadd.f32 0.0, %v1690
    %v1692 = vpop.f32.mrb[0].mxu0
    %v1693 = vpop.f32.mrb[0].mxu0
    %v1694 = vpop.f32.mrb[0].mxu0
    %1695 = vdwg.mxu0
    %1696 = vrot.lane.b32.xlu0 %v245, 48
    %v1697 = vpop.permute.xlu0 %1696
    %v1699 = vsel %vm249, %v1551, 0
    %v1702 = vsel %vm524, %v1697, 0
    %1704 = vmatprep.subr.bf16.mxu0 0
    %1705 = vmatpush1.bf16.msra.mxu0 %v1702
    %1706 = vmatprep.subr.bf16.mxu0 0
    %1707 = vmatpush1.bf16.msra.mxu0 0
    %1708 = vmatprep.subr.bf16.mxu0 0
    %1709 = vmatpush1.bf16.msra.mxu0 0
    %1710 = vmatprep.subr.bf16.mxu0 0
    %1711 = vmatpush1.bf16.msra.mxu0 0
    %1712 = vmatprep.subr.bf16.mxu0 0
    %1713 = vmatpush1.bf16.msra.mxu0 0
    %1714 = vmatprep.subr.bf16.mxu0 0
    %1715 = vmatpush1.bf16.msra.mxu0 0
    %1716 = vmatprep.subr.bf16.mxu0 0
    %1717 = vmatpush1.bf16.msra.mxu0 0
    %1718 = vmatprep.subr.bf16.mxu0 0
    %1719 = vmatpush1.bf16.msra.mxu0 0
    %1720 = vmatprep.subr.bf16.mxu0 0
    %1721 = vmatpush1.bf16.msra.mxu0 0
    %1722 = vmatprep.subr.bf16.mxu0 0
    %1723 = vmatpush1.bf16.msra.mxu0 0
    %1724 = vmatprep.subr.bf16.mxu0 0
    %1725 = vmatpush1.bf16.msra.mxu0 0
    %1726 = vmatprep.subr.bf16.mxu0 0
    %1727 = vmatpush1.bf16.msra.mxu0 0
    %1728 = vmatprep.subr.bf16.mxu0 0
    %1729 = vmatpush1.bf16.msra.mxu0 0
    %1730 = vmatprep.subr.bf16.mxu0 0
    %1731 = vmatpush1.bf16.msra.mxu0 0
    %1732 = vmatprep.subr.bf16.mxu0 0
    %1733 = vmatpush1.bf16.msra.mxu0 0
    %1734 = vmatprep.subr.bf16.mxu0 0
    %1735 = vmatpush1.bf16.msra.mxu0 0
    %1736 = vmatprep.mubr.bf16.mxu0 0
    %1737 = vmatmul.mubr.bf16.gmra.mrb[0].mxu0 %v1699
    %v1738 = vpop.f32.mrb[0].mxu0
    %v1739 = vadd.f32 0.0, %v1738
    %v1740 = vpop.f32.mrb[0].mxu0
    %v1741 = vpop.f32.mrb[0].mxu0
    %v1742 = vpop.f32.mrb[0].mxu0
    %1743 = vdwg.mxu0
    %v1744 = vpack.c.bf16 %v1643, %v1595
    %v1745 = vpack.c.bf16 %v1739, %v1691
    %v1746 = vpack.c.bf16 %v239, %v239
    %v1748 = vsel %vm249, %v1744, 0
    %v1751 = vsel %vm249, %v1745, 0
    %v1754 = vsel %vm524, %v1746, 0
    %1756 = vmatprep.subr.bf16.mxu0 0
    %1757 = vmatpush1.bf16.msra.mxu0 %v1754
    %1758 = vmatprep.subr.bf16.mxu0 0
    %1759 = vmatpush1.bf16.msra.mxu0 0
    %1760 = vmatprep.subr.bf16.mxu0 0
    %1761 = vmatpush1.bf16.msra.mxu0 0
    %1762 = vmatprep.subr.bf16.mxu0 0
    %1763 = vmatpush1.bf16.msra.mxu0 0
    %1764 = vmatprep.subr.bf16.mxu0 0
    %1765 = vmatpush1.bf16.msra.mxu0 0
    %1766 = vmatprep.subr.bf16.mxu0 0
    %1767 = vmatpush1.bf16.msra.mxu0 0
    %1768 = vmatprep.subr.bf16.mxu0 0
    %1769 = vmatpush1.bf16.msra.mxu0 0
    %1770 = vmatprep.subr.bf16.mxu0 0
    %1771 = vmatpush1.bf16.msra.mxu0 0
    %1772 = vmatprep.subr.bf16.mxu0 0
    %1773 = vmatpush1.bf16.msra.mxu0 0
    %1774 = vmatprep.subr.bf16.mxu0 0
    %1775 = vmatpush1.bf16.msra.mxu0 0
    %1776 = vmatprep.subr.bf16.mxu0 0
    %1777 = vmatpush1.bf16.msra.mxu0 0
    %1778 = vmatprep.subr.bf16.mxu0 0
    %1779 = vmatpush1.bf16.msra.mxu0 0
    %1780 = vmatprep.subr.bf16.mxu0 0
    %1781 = vmatpush1.bf16.msra.mxu0 0
    %1782 = vmatprep.subr.bf16.mxu0 0
    %1783 = vmatpush1.bf16.msra.mxu0 0
    %1784 = vmatprep.subr.bf16.mxu0 0
    %1785 = vmatpush1.bf16.msra.mxu0 0
    %1786 = vmatprep.subr.bf16.mxu0 0
    %1787 = vmatpush1.bf16.msra.mxu0 0
    %1788 = vmatprep.mubr.bf16.mxu0 0
    %1789 = vmatmul.mubr.bf16.gmra.mrb[0].mxu0 %v1748
    %v1790 = vpop.f32.mrb[0].mxu0
    %v1791 = vadd.f32 0.0, %v1790
    %v1792 = vpop.f32.mrb[0].mxu0
    %v1793 = vpop.f32.mrb[0].mxu0
    %v1794 = vadd.f32 0.0, %v1793
    %v1795 = vpop.f32.mrb[0].mxu0
    %1796 = vmatprep.mubr.bf16.mxu0 0
    %1797 = vmatmul.mubr.bf16.gmra.mrb[0].mxu0 %v1751
    %v1798 = vpop.f32.mrb[0].mxu0
    %v1799 = vadd.f32 0.0, %v1798
    %v1800 = vpop.f32.mrb[0].mxu0
    %v1801 = vpop.f32.mrb[0].mxu0
    %v1802 = vadd.f32 0.0, %v1801
    %v1803 = vpop.f32.mrb[0].mxu0
    %1804 = vdwg.mxu0
    %v1805 = vadd.f32 %v1292, %v1791
    %v1806 = vadd.f32 %v1293, %v1794
    %v1807 = vadd.f32 %v1294, %v1799
    %v1808 = vadd.f32 %v1295, %v1802
    %1809 = vrot.lane.b32.xlu0 %v242, 104
    %v1810 = vpop.permute.xlu0 %1809
    %1811 = vrot.lane.b32.xlu0 %v242, 72
    %v1812 = vpop.permute.xlu0 %1811
    %v1814 = vsel %vm249, %v1810, 0
    %v1817 = vsel %vm249, %v1812, 0
    %1819 = vmatprep.subr.bf16.mxu0 0
    %1820 = vmatpush1.bf16.xpose.msra.mxu0 %v1817
    %1821 = vmatprep.subr.bf16.mxu0 0
    %1822 = vmatpush1.bf16.xpose.msra.mxu0 0
    %1823 = vmatprep.subr.bf16.mxu0 0
    %1824 = vmatpush1.bf16.xpose.msra.mxu0 0
    %1825 = vmatprep.subr.bf16.mxu0 0
    %1826 = vmatpush1.bf16.xpose.msra.mxu0 0
    %1827 = vmatprep.subr.bf16.mxu0 0
    %1828 = vmatpush1.bf16.xpose.msra.mxu0 0
    %1829 = vmatprep.subr.bf16.mxu0 0
    %1830 = vmatpush1.bf16.xpose.msra.mxu0 0
    %1831 = vmatprep.subr.bf16.mxu0 0
    %1832 = vmatpush1.bf16.xpose.msra.mxu0 0
    %1833 = vmatprep.subr.bf16.mxu0 0
    %1834 = vmatpush1.bf16.xpose.msra.mxu0 0
    %1835 = vmatprep.subr.bf16.mxu0 0
    %1836 = vmatpush1.bf16.xpose.msra.mxu0 0
    %1837 = vmatprep.subr.bf16.mxu0 0
    %1838 = vmatpush1.bf16.xpose.msra.mxu0 0
    %1839 = vmatprep.subr.bf16.mxu0 0
    %1840 = vmatpush1.bf16.xpose.msra.mxu0 0
    %1841 = vmatprep.subr.bf16.mxu0 0
    %1842 = vmatpush1.bf16.xpose.msra.mxu0 0
    %1843 = vmatprep.subr.bf16.mxu0 0
    %1844 = vmatpush1.bf16.xpose.msra.mxu0 0
    %1845 = vmatprep.subr.bf16.mxu0 0
    %1846 = vmatpush1.bf16.xpose.msra.mxu0 0
    %1847 = vmatprep.subr.bf16.mxu0 0
    %1848 = vmatpush1.bf16.xpose.msra.mxu0 0
    %1849 = vmatprep.subr.bf16.mxu0 0
    %1850 = vmatpush1.bf16.xpose.msra.mxu0 0
    %1851 = vmatprep.mubr.bf16.mxu0 0
    %1852 = vmatmul.mubr.bf16.gmra.mrb[0].mxu0 %v1814
    %v1853 = vpop.f32.mrb[0].mxu0
    %v1854 = vadd.f32 0.0, %v1853
    %v1855 = vpop.f32.mrb[0].mxu0
    %v1856 = vpop.f32.mrb[0].mxu0
    %v1857 = vpop.f32.mrb[0].mxu0
    %1858 = vdwg.mxu0
    %1859 = vrot.lane.b32.xlu0 %v243, 104
    %v1860 = vpop.permute.xlu0 %1859
    %1861 = vrot.lane.b32.xlu0 %v243, 72
    %v1862 = vpop.permute.xlu0 %1861
    %v1864 = vsel %vm249, %v1860, 0
    %v1867 = vsel %vm249, %v1862, 0
    %1869 = vmatprep.subr.bf16.mxu0 0
    %1870 = vmatpush1.bf16.xpose.msra.mxu0 %v1867
    %1871 = vmatprep.subr.bf16.mxu0 0
    %1872 = vmatpush1.bf16.xpose.msra.mxu0 0
    %1873 = vmatprep.subr.bf16.mxu0 0
    %1874 = vmatpush1.bf16.xpose.msra.mxu0 0
    %1875 = vmatprep.subr.bf16.mxu0 0
    %1876 = vmatpush1.bf16.xpose.msra.mxu0 0
    %1877 = vmatprep.subr.bf16.mxu0 0
    %1878 = vmatpush1.bf16.xpose.msra.mxu0 0
    %1879 = vmatprep.subr.bf16.mxu0 0
    %1880 = vmatpush1.bf16.xpose.msra.mxu0 0
    %1881 = vmatprep.subr.bf16.mxu0 0
    %1882 = vmatpush1.bf16.xpose.msra.mxu0 0
    %1883 = vmatprep.subr.bf16.mxu0 0
    %1884 = vmatpush1.bf16.xpose.msra.mxu0 0
    %1885 = vmatprep.subr.bf16.mxu0 0
    %1886 = vmatpush1.bf16.xpose.msra.mxu0 0
    %1887 = vmatprep.subr.bf16.mxu0 0
    %1888 = vmatpush1.bf16.xpose.msra.mxu0 0
    %1889 = vmatprep.subr.bf16.mxu0 0
    %1890 = vmatpush1.bf16.xpose.msra.mxu0 0
    %1891 = vmatprep.subr.bf16.mxu0 0
    %1892 = vmatpush1.bf16.xpose.msra.mxu0 0
    %1893 = vmatprep.subr.bf16.mxu0 0
    %1894 = vmatpush1.bf16.xpose.msra.mxu0 0
    %1895 = vmatprep.subr.bf16.mxu0 0
    %1896 = vmatpush1.bf16.xpose.msra.mxu0 0
    %1897 = vmatprep.subr.bf16.mxu0 0
    %1898 = vmatpush1.bf16.xpose.msra.mxu0 0
    %1899 = vmatprep.subr.bf16.mxu0 0
    %1900 = vmatpush1.bf16.xpose.msra.mxu0 0
    %1901 = vmatprep.mubr.bf16.mxu0 0
    %1902 = vmatmul.mubr.bf16.gmra.mrb[0].mxu0 %v1864
    %v1903 = vpop.f32.mrb[0].mxu0
    %v1904 = vadd.f32 0.0, %v1903
    %v1905 = vpop.f32.mrb[0].mxu0
    %v1906 = vpop.f32.mrb[0].mxu0
    %v1907 = vpop.f32.mrb[0].mxu0
    %1908 = vdwg.mxu0
    %1909 = vrot.lane.b32.xlu0 %v244, 104
    %v1910 = vpop.permute.xlu0 %1909
    %1911 = vrot.lane.b32.xlu0 %v244, 72
    %v1912 = vpop.permute.xlu0 %1911
    %v1914 = vsel %vm249, %v1910, 0
    %v1917 = vsel %vm249, %v1912, 0
    %1919 = vmatprep.subr.bf16.mxu0 0
    %1920 = vmatpush1.bf16.xpose.msra.mxu0 %v1917
    %1921 = vmatprep.subr.bf16.mxu0 0
    %1922 = vmatpush1.bf16.xpose.msra.mxu0 0
    %1923 = vmatprep.subr.bf16.mxu0 0
    %1924 = vmatpush1.bf16.xpose.msra.mxu0 0
    %1925 = vmatprep.subr.bf16.mxu0 0
    %1926 = vmatpush1.bf16.xpose.msra.mxu0 0
    %1927 = vmatprep.subr.bf16.mxu0 0
    %1928 = vmatpush1.bf16.xpose.msra.mxu0 0
    %1929 = vmatprep.subr.bf16.mxu0 0
    %1930 = vmatpush1.bf16.xpose.msra.mxu0 0
    %1931 = vmatprep.subr.bf16.mxu0 0
    %1932 = vmatpush1.bf16.xpose.msra.mxu0 0
    %1933 = vmatprep.subr.bf16.mxu0 0
    %1934 = vmatpush1.bf16.xpose.msra.mxu0 0
    %1935 = vmatprep.subr.bf16.mxu0 0
    %1936 = vmatpush1.bf16.xpose.msra.mxu0 0
    %1937 = vmatprep.subr.bf16.mxu0 0
    %1938 = vmatpush1.bf16.xpose.msra.mxu0 0
    %1939 = vmatprep.subr.bf16.mxu0 0
    %1940 = vmatpush1.bf16.xpose.msra.mxu0 0
    %1941 = vmatprep.subr.bf16.mxu0 0
    %1942 = vmatpush1.bf16.xpose.msra.mxu0 0
    %1943 = vmatprep.subr.bf16.mxu0 0
    %1944 = vmatpush1.bf16.xpose.msra.mxu0 0
    %1945 = vmatprep.subr.bf16.mxu0 0
    %1946 = vmatpush1.bf16.xpose.msra.mxu0 0
    %1947 = vmatprep.subr.bf16.mxu0 0
    %1948 = vmatpush1.bf16.xpose.msra.mxu0 0
    %1949 = vmatprep.subr.bf16.mxu0 0
    %1950 = vmatpush1.bf16.xpose.msra.mxu0 0
    %1951 = vmatprep.mubr.bf16.mxu0 0
    %1952 = vmatmul.mubr.bf16.gmra.mrb[0].mxu0 %v1914
    %v1953 = vpop.f32.mrb[0].mxu0
    %v1954 = vadd.f32 0.0, %v1953
    %v1955 = vpop.f32.mrb[0].mxu0
    %v1956 = vpop.f32.mrb[0].mxu0
    %v1957 = vpop.f32.mrb[0].mxu0
    %1958 = vdwg.mxu0
    %1959 = vrot.lane.b32.xlu0 %v245, 104
    %v1960 = vpop.permute.xlu0 %1959
    %1961 = vrot.lane.b32.xlu0 %v245, 72
    %v1962 = vpop.permute.xlu0 %1961
    %v1964 = vsel %vm249, %v1960, 0
    %v1967 = vsel %vm249, %v1962, 0
    %1969 = vmatprep.subr.bf16.mxu0 0
    %1970 = vmatpush1.bf16.xpose.msra.mxu0 %v1967
    %1971 = vmatprep.subr.bf16.mxu0 0
    %1972 = vmatpush1.bf16.xpose.msra.mxu0 0
    %1973 = vmatprep.subr.bf16.mxu0 0
    %1974 = vmatpush1.bf16.xpose.msra.mxu0 0
    %1975 = vmatprep.subr.bf16.mxu0 0
    %1976 = vmatpush1.bf16.xpose.msra.mxu0 0
    %1977 = vmatprep.subr.bf16.mxu0 0
    %1978 = vmatpush1.bf16.xpose.msra.mxu0 0
    %1979 = vmatprep.subr.bf16.mxu0 0
    %1980 = vmatpush1.bf16.xpose.msra.mxu0 0
    %1981 = vmatprep.subr.bf16.mxu0 0
    %1982 = vmatpush1.bf16.xpose.msra.mxu0 0
    %1983 = vmatprep.subr.bf16.mxu0 0
    %1984 = vmatpush1.bf16.xpose.msra.mxu0 0
    %1985 = vmatprep.subr.bf16.mxu0 0
    %1986 = vmatpush1.bf16.xpose.msra.mxu0 0
    %1987 = vmatprep.subr.bf16.mxu0 0
    %1988 = vmatpush1.bf16.xpose.msra.mxu0 0
    %1989 = vmatprep.subr.bf16.mxu0 0
    %1990 = vmatpush1.bf16.xpose.msra.mxu0 0
    %1991 = vmatprep.subr.bf16.mxu0 0
    %1992 = vmatpush1.bf16.xpose.msra.mxu0 0
    %1993 = vmatprep.subr.bf16.mxu0 0
    %1994 = vmatpush1.bf16.xpose.msra.mxu0 0
    %1995 = vmatprep.subr.bf16.mxu0 0
    %1996 = vmatpush1.bf16.xpose.msra.mxu0 0
    %1997 = vmatprep.subr.bf16.mxu0 0
    %1998 = vmatpush1.bf16.xpose.msra.mxu0 0
    %1999 = vmatprep.subr.bf16.mxu0 0
    %2000 = vmatpush1.bf16.xpose.msra.mxu0 0
    %2001 = vmatprep.mubr.bf16.mxu0 0
    %2002 = vmatmul.mubr.bf16.gmra.mrb[0].mxu0 %v1964
    %v2003 = vpop.f32.mrb[0].mxu0
    %v2004 = vadd.f32 0.0, %v2003
    %v2005 = vpop.f32.mrb[0].mxu0
    %v2006 = vpop.f32.mrb[0].mxu0
    %v2007 = vpop.f32.mrb[0].mxu0
    %2008 = vdwg.mxu0
    %v2009 = vmul.f32 %v1854, 0.35355338
    %v2010 = vmul.f32 %v1904, 0.35355338
    %v2011 = vmul.f32 %v1954, 0.35355338
    %v2012 = vmul.f32 %v2004, 0.35355338
    %v2013 = vadd.f32 %v2009, %v450
    %v2014 = vadd.f32 %v2010, %v454
    %v2015 = vadd.f32 %v2011, %v458
    %v2016 = vadd.f32 %v2012, %v462
    %v2017 = vsel %vm249, %v2013, -inf
    %2018 = vmax.xlane.f32.xlu0 %v2017
    %v2019 = vpop.xlane.xlu0 %2018
    %v2020 = vsel %vm249, %v2014, -inf
    %2021 = vmax.xlane.f32.xlu0 %v2020
    %v2022 = vpop.xlane.xlu0 %2021
    %v2023 = vsel %vm249, %v2015, -inf
    %2024 = vmax.xlane.f32.xlu0 %v2023
    %v2025 = vpop.xlane.xlu0 %2024
    %v2026 = vsel %vm249, %v2016, -inf
    %2027 = vmax.xlane.f32.xlu0 %v2026
    %v2028 = vpop.xlane.xlu0 %2027
    %v2029 = vsub.f32 %v2013, %v2019
    %v2030 = vsub.f32 %v2014, %v2022
    %v2031 = vsub.f32 %v2015, %v2025
    %v2032 = vsub.f32 %v2016, %v2028
    %v2033 = vmul.f32 %v2029, 1.442695
    %v2034 = vpow.pop %v2033
    %v2035 = vmul.f32 %v2030, 1.442695
    %v2036 = vpow.pop %v2035
    %v2037 = vmul.f32 %v2031, 1.442695
    %v2038 = vpow.pop %v2037
    %v2039 = vmul.f32 %v2032, 1.442695
    %v2040 = vpow.pop %v2039
    %v2041 = vsel %vm249, %v2034, 0.0
    %2042 = vadd.xlane.f32.xlu0 %v2041
    %v2043 = vpop.xlane.xlu0 %2042
    %v2044 = vsel %vm249, %v2036, 0.0
    %2045 = vadd.xlane.f32.xlu0 %v2044
    %v2046 = vpop.xlane.xlu0 %2045
    %v2047 = vsel %vm249, %v2038, 0.0
    %2048 = vadd.xlane.f32.xlu0 %v2047
    %v2049 = vpop.xlane.xlu0 %2048
    %v2050 = vsel %vm249, %v2040, 0.0
    %2051 = vadd.xlane.f32.xlu0 %v2050
    %v2052 = vpop.xlane.xlu0 %2051
    %v2053 = vrcp.pop %v2043
    %v2054 = vrcp.pop %v2046
    %v2055 = vrcp.pop %v2049
    %v2056 = vrcp.pop %v2052
    %v2057 = vmul.f32 %v2034, %v2053
    %v2058 = vmul.f32 %v2036, %v2054
    %v2059 = vmul.f32 %v2038, %v2055
    %v2060 = vmul.f32 %v2040, %v2056
    %v2061 = vpack.c.bf16 %v2057, %v2057
    %v2062 = vpack.c.bf16 %v2058, %v2058
    %v2063 = vpack.c.bf16 %v2059, %v2059
    %v2064 = vpack.c.bf16 %v2060, %v2060
    %2065 = vrot.lane.b32.xlu0 %v242, 40
    %v2066 = vpop.permute.xlu0 %2065
    %v2068 = vsel %vm249, %v2061, 0
    %v2071 = vsel %vm524, %v2066, 0
    %2073 = vmatprep.subr.bf16.mxu0 0
    %2074 = vmatpush1.bf16.msra.mxu0 %v2071
    %2075 = vmatprep.subr.bf16.mxu0 0
    %2076 = vmatpush1.bf16.msra.mxu0 0
    %2077 = vmatprep.subr.bf16.mxu0 0
    %2078 = vmatpush1.bf16.msra.mxu0 0
    %2079 = vmatprep.subr.bf16.mxu0 0
    %2080 = vmatpush1.bf16.msra.mxu0 0
    %2081 = vmatprep.subr.bf16.mxu0 0
    %2082 = vmatpush1.bf16.msra.mxu0 0
    %2083 = vmatprep.subr.bf16.mxu0 0
    %2084 = vmatpush1.bf16.msra.mxu0 0
    %2085 = vmatprep.subr.bf16.mxu0 0
    %2086 = vmatpush1.bf16.msra.mxu0 0
    %2087 = vmatprep.subr.bf16.mxu0 0
    %2088 = vmatpush1.bf16.msra.mxu0 0
    %2089 = vmatprep.subr.bf16.mxu0 0
    %2090 = vmatpush1.bf16.msra.mxu0 0
    %2091 = vmatprep.subr.bf16.mxu0 0
    %2092 = vmatpush1.bf16.msra.mxu0 0
    %2093 = vmatprep.subr.bf16.mxu0 0
    %2094 = vmatpush1.bf16.msra.mxu0 0
    %2095 = vmatprep.subr.bf16.mxu0 0
    %2096 = vmatpush1.bf16.msra.mxu0 0
    %2097 = vmatprep.subr.bf16.mxu0 0
    %2098 = vmatpush1.bf16.msra.mxu0 0
    %2099 = vmatprep.subr.bf16.mxu0 0
    %2100 = vmatpush1.bf16.msra.mxu0 0
    %2101 = vmatprep.subr.bf16.mxu0 0
    %2102 = vmatpush1.bf16.msra.mxu0 0
    %2103 = vmatprep.subr.bf16.mxu0 0
    %2104 = vmatpush1.bf16.msra.mxu0 0
    %2105 = vmatprep.mubr.bf16.mxu0 0
    %2106 = vmatmul.mubr.bf16.gmra.mrb[0].mxu0 %v2068
    %v2107 = vpop.f32.mrb[0].mxu0
    %v2108 = vadd.f32 0.0, %v2107
    %v2109 = vpop.f32.mrb[0].mxu0
    %v2110 = vpop.f32.mrb[0].mxu0
    %v2111 = vpop.f32.mrb[0].mxu0
    %2112 = vdwg.mxu0
    %2113 = vrot.lane.b32.xlu0 %v243, 40
    %v2114 = vpop.permute.xlu0 %2113
    %v2116 = vsel %vm249, %v2062, 0
    %v2119 = vsel %vm524, %v2114, 0
    %2121 = vmatprep.subr.bf16.mxu0 0
    %2122 = vmatpush1.bf16.msra.mxu0 %v2119
    %2123 = vmatprep.subr.bf16.mxu0 0
    %2124 = vmatpush1.bf16.msra.mxu0 0
    %2125 = vmatprep.subr.bf16.mxu0 0
    %2126 = vmatpush1.bf16.msra.mxu0 0
    %2127 = vmatprep.subr.bf16.mxu0 0
    %2128 = vmatpush1.bf16.msra.mxu0 0
    %2129 = vmatprep.subr.bf16.mxu0 0
    %2130 = vmatpush1.bf16.msra.mxu0 0
    %2131 = vmatprep.subr.bf16.mxu0 0
    %2132 = vmatpush1.bf16.msra.mxu0 0
    %2133 = vmatprep.subr.bf16.mxu0 0
    %2134 = vmatpush1.bf16.msra.mxu0 0
    %2135 = vmatprep.subr.bf16.mxu0 0
    %2136 = vmatpush1.bf16.msra.mxu0 0
    %2137 = vmatprep.subr.bf16.mxu0 0
    %2138 = vmatpush1.bf16.msra.mxu0 0
    %2139 = vmatprep.subr.bf16.mxu0 0
    %2140 = vmatpush1.bf16.msra.mxu0 0
    %2141 = vmatprep.subr.bf16.mxu0 0
    %2142 = vmatpush1.bf16.msra.mxu0 0
    %2143 = vmatprep.subr.bf16.mxu0 0
    %2144 = vmatpush1.bf16.msra.mxu0 0
    %2145 = vmatprep.subr.bf16.mxu0 0
    %2146 = vmatpush1.bf16.msra.mxu0 0
    %2147 = vmatprep.subr.bf16.mxu0 0
    %2148 = vmatpush1.bf16.msra.mxu0 0
    %2149 = vmatprep.subr.bf16.mxu0 0
    %2150 = vmatpush1.bf16.msra.mxu0 0
    %2151 = vmatprep.subr.bf16.mxu0 0
    %2152 = vmatpush1.bf16.msra.mxu0 0
    %2153 = vmatprep.mubr.bf16.mxu0 0
    %2154 = vmatmul.mubr.bf16.gmra.mrb[0].mxu0 %v2116
    %v2155 = vpop.f32.mrb[0].mxu0
    %v2156 = vadd.f32 0.0, %v2155
    %v2157 = vpop.f32.mrb[0].mxu0
    %v2158 = vpop.f32.mrb[0].mxu0
    %v2159 = vpop.f32.mrb[0].mxu0
    %2160 = vdwg.mxu0
    %2161 = vrot.lane.b32.xlu0 %v244, 40
    %v2162 = vpop.permute.xlu0 %2161
    %v2164 = vsel %vm249, %v2063, 0
    %v2167 = vsel %vm524, %v2162, 0
    %2169 = vmatprep.subr.bf16.mxu0 0
    %2170 = vmatpush1.bf16.msra.mxu0 %v2167
    %2171 = vmatprep.subr.bf16.mxu0 0
    %2172 = vmatpush1.bf16.msra.mxu0 0
    %2173 = vmatprep.subr.bf16.mxu0 0
    %2174 = vmatpush1.bf16.msra.mxu0 0
    %2175 = vmatprep.subr.bf16.mxu0 0
    %2176 = vmatpush1.bf16.msra.mxu0 0
    %2177 = vmatprep.subr.bf16.mxu0 0
    %2178 = vmatpush1.bf16.msra.mxu0 0
    %2179 = vmatprep.subr.bf16.mxu0 0
    %2180 = vmatpush1.bf16.msra.mxu0 0
    %2181 = vmatprep.subr.bf16.mxu0 0
    %2182 = vmatpush1.bf16.msra.mxu0 0
    %2183 = vmatprep.subr.bf16.mxu0 0
    %2184 = vmatpush1.bf16.msra.mxu0 0
    %2185 = vmatprep.subr.bf16.mxu0 0
    %2186 = vmatpush1.bf16.msra.mxu0 0
    %2187 = vmatprep.subr.bf16.mxu0 0
    %2188 = vmatpush1.bf16.msra.mxu0 0
    %2189 = vmatprep.subr.bf16.mxu0 0
    %2190 = vmatpush1.bf16.msra.mxu0 0
    %2191 = vmatprep.subr.bf16.mxu0 0
    %2192 = vmatpush1.bf16.msra.mxu0 0
    %2193 = vmatprep.subr.bf16.mxu0 0
    %2194 = vmatpush1.bf16.msra.mxu0 0
    %2195 = vmatprep.subr.bf16.mxu0 0
    %2196 = vmatpush1.bf16.msra.mxu0 0
    %2197 = vmatprep.subr.bf16.mxu0 0
    %2198 = vmatpush1.bf16.msra.mxu0 0
    %2199 = vmatprep.subr.bf16.mxu0 0
    %2200 = vmatpush1.bf16.msra.mxu0 0
    %2201 = vmatprep.mubr.bf16.mxu0 0
    %2202 = vmatmul.mubr.bf16.gmra.mrb[0].mxu0 %v2164
    %v2203 = vpop.f32.mrb[0].mxu0
    %v2204 = vadd.f32 0.0, %v2203
    %v2205 = vpop.f32.mrb[0].mxu0
    %v2206 = vpop.f32.mrb[0].mxu0
    %v2207 = vpop.f32.mrb[0].mxu0
    %2208 = vdwg.mxu0
    %2209 = vrot.lane.b32.xlu0 %v245, 40
    %v2210 = vpop.permute.xlu0 %2209
    %v2212 = vsel %vm249, %v2064, 0
    %v2215 = vsel %vm524, %v2210, 0
    %2217 = vmatprep.subr.bf16.mxu0 0
    %2218 = vmatpush1.bf16.msra.mxu0 %v2215
    %2219 = vmatprep.subr.bf16.mxu0 0
    %2220 = vmatpush1.bf16.msra.mxu0 0
    %2221 = vmatprep.subr.bf16.mxu0 0
    %2222 = vmatpush1.bf16.msra.mxu0 0
    %2223 = vmatprep.subr.bf16.mxu0 0
    %2224 = vmatpush1.bf16.msra.mxu0 0
    %2225 = vmatprep.subr.bf16.mxu0 0
    %2226 = vmatpush1.bf16.msra.mxu0 0
    %2227 = vmatprep.subr.bf16.mxu0 0
    %2228 = vmatpush1.bf16.msra.mxu0 0
    %2229 = vmatprep.subr.bf16.mxu0 0
    %2230 = vmatpush1.bf16.msra.mxu0 0
    %2231 = vmatprep.subr.bf16.mxu0 0
    %2232 = vmatpush1.bf16.msra.mxu0 0
    %2233 = vmatprep.subr.bf16.mxu0 0
    %2234 = vmatpush1.bf16.msra.mxu0 0
    %2235 = vmatprep.subr.bf16.mxu0 0
    %2236 = vmatpush1.bf16.msra.mxu0 0
    %2237 = vmatprep.subr.bf16.mxu0 0
    %2238 = vmatpush1.bf16.msra.mxu0 0
    %2239 = vmatprep.subr.bf16.mxu0 0
    %2240 = vmatpush1.bf16.msra.mxu0 0
    %2241 = vmatprep.subr.bf16.mxu0 0
    %2242 = vmatpush1.bf16.msra.mxu0 0
    %2243 = vmatprep.subr.bf16.mxu0 0
    %2244 = vmatpush1.bf16.msra.mxu0 0
    %2245 = vmatprep.subr.bf16.mxu0 0
    %2246 = vmatpush1.bf16.msra.mxu0 0
    %2247 = vmatprep.subr.bf16.mxu0 0
    %2248 = vmatpush1.bf16.msra.mxu0 0
    %2249 = vmatprep.mubr.bf16.mxu0 0
    %2250 = vmatmul.mubr.bf16.gmra.mrb[0].mxu0 %v2212
    %v2251 = vpop.f32.mrb[0].mxu0
    %v2252 = vadd.f32 0.0, %v2251
    %v2253 = vpop.f32.mrb[0].mxu0
    %v2254 = vpop.f32.mrb[0].mxu0
    %v2255 = vpop.f32.mrb[0].mxu0
    %2256 = vdwg.mxu0
    %v2257 = vpack.c.bf16 %v2156, %v2108
    %v2258 = vpack.c.bf16 %v2252, %v2204
    %v2259 = vpack.c.bf16 %v240, %v240
    %v2261 = vsel %vm249, %v2257, 0
    %v2264 = vsel %vm249, %v2258, 0
    %v2267 = vsel %vm524, %v2259, 0
    %2269 = vmatprep.subr.bf16.mxu0 0
    %2270 = vmatpush1.bf16.msra.mxu0 %v2267
    %2271 = vmatprep.subr.bf16.mxu0 0
    %2272 = vmatpush1.bf16.msra.mxu0 0
    %2273 = vmatprep.subr.bf16.mxu0 0
    %2274 = vmatpush1.bf16.msra.mxu0 0
    %2275 = vmatprep.subr.bf16.mxu0 0
    %2276 = vmatpush1.bf16.msra.mxu0 0
    %2277 = vmatprep.subr.bf16.mxu0 0
    %2278 = vmatpush1.bf16.msra.mxu0 0
    %2279 = vmatprep.subr.bf16.mxu0 0
    %2280 = vmatpush1.bf16.msra.mxu0 0
    %2281 = vmatprep.subr.bf16.mxu0 0
    %2282 = vmatpush1.bf16.msra.mxu0 0
    %2283 = vmatprep.subr.bf16.mxu0 0
    %2284 = vmatpush1.bf16.msra.mxu0 0
    %2285 = vmatprep.subr.bf16.mxu0 0
    %2286 = vmatpush1.bf16.msra.mxu0 0
    %2287 = vmatprep.subr.bf16.mxu0 0
    %2288 = vmatpush1.bf16.msra.mxu0 0
    %2289 = vmatprep.subr.bf16.mxu0 0
    %2290 = vmatpush1.bf16.msra.mxu0 0
    %2291 = vmatprep.subr.bf16.mxu0 0
    %2292 = vmatpush1.bf16.msra.mxu0 0
    %2293 = vmatprep.subr.bf16.mxu0 0
    %2294 = vmatpush1.bf16.msra.mxu0 0
    %2295 = vmatprep.subr.bf16.mxu0 0
    %2296 = vmatpush1.bf16.msra.mxu0 0
    %2297 = vmatprep.subr.bf16.mxu0 0
    %2298 = vmatpush1.bf16.msra.mxu0 0
    %2299 = vmatprep.subr.bf16.mxu0 0
    %2300 = vmatpush1.bf16.msra.mxu0 0
    %2301 = vmatprep.mubr.bf16.mxu0 0
    %2302 = vmatmul.mubr.bf16.gmra.mrb[0].mxu0 %v2261
    %v2303 = vpop.f32.mrb[0].mxu0
    %v2304 = vadd.f32 0.0, %v2303
    %v2305 = vpop.f32.mrb[0].mxu0
    %v2306 = vpop.f32.mrb[0].mxu0
    %v2307 = vadd.f32 0.0, %v2306
    %v2308 = vpop.f32.mrb[0].mxu0
    %2309 = vmatprep.mubr.bf16.mxu0 0
    %2310 = vmatmul.mubr.bf16.gmra.mrb[0].mxu0 %v2264
    %v2311 = vpop.f32.mrb[0].mxu0
    %v2312 = vadd.f32 0.0, %v2311
    %v2313 = vpop.f32.mrb[0].mxu0
    %v2314 = vpop.f32.mrb[0].mxu0
    %v2315 = vadd.f32 0.0, %v2314
    %v2316 = vpop.f32.mrb[0].mxu0
    %2317 = vdwg.mxu0
    %v2318 = vadd.f32 %v1805, %v2304
    %v2319 = vadd.f32 %v1806, %v2307
    %v2320 = vadd.f32 %v1807, %v2312
    %v2321 = vadd.f32 %v1808, %v2315
    %v2322 = vadd.f32 %v163, %v2318
    %v2323 = vadd.f32 %v164, %v2319
    %v2324 = vadd.f32 %v165, %v2320
    %v2325 = vadd.f32 %v166, %v2321
    %v2326 = vld [vmem:[%s8] sm:$0x1]
    %v2327 = vld [vmem:[%s9] sm:$0x1]
    %v2328 = vsel %vm93, %v2322, 0.0
    %2329 = vadd.xlane.f32.xlu0 %v2328
    %v2330 = vpop.xlane.xlu0 %2329
    %v2331 = vsel %vm93, %v2323, 0.0
    %2332 = vadd.xlane.f32.xlu0 %v2331
    %v2333 = vpop.xlane.xlu0 %2332
    %v2334 = vsel %vm93, %v2324, 0.0
    %2335 = vadd.xlane.f32.xlu0 %v2334
    %v2336 = vpop.xlane.xlu0 %2335
    %v2337 = vsel %vm93, %v2325, 0.0
    %2338 = vadd.xlane.f32.xlu0 %v2337
    %v2339 = vpop.xlane.xlu0 %2338
    %v2340 = vmul.f32 %v2330, %v106
    %v2341 = vmul.f32 %v2333, %v106
    %v2342 = vmul.f32 %v2336, %v106
    %v2343 = vmul.f32 %v2339, %v106
    %v2344 = vsub.f32 %v2322, %v2340
    %v2345 = vsub.f32 %v2323, %v2341
    %v2346 = vsub.f32 %v2324, %v2342
    %v2347 = vsub.f32 %v2325, %v2343
    %v2348 = vmul.f32 %v2344, %v2344
    %v2349 = vmul.f32 %v2345, %v2345
    %v2350 = vmul.f32 %v2346, %v2346
    %v2351 = vmul.f32 %v2347, %v2347
    %v2352 = vsel %vm93, %v2348, 0.0
    %2353 = vadd.xlane.f32.xlu0 %v2352
    %v2354 = vpop.xlane.xlu0 %2353
    %v2355 = vsel %vm93, %v2349, 0.0
    %2356 = vadd.xlane.f32.xlu0 %v2355
    %v2357 = vpop.xlane.xlu0 %2356
    %v2358 = vsel %vm93, %v2350, 0.0
    %2359 = vadd.xlane.f32.xlu0 %v2358
    %v2360 = vpop.xlane.xlu0 %2359
    %v2361 = vsel %vm93, %v2351, 0.0
    %2362 = vadd.xlane.f32.xlu0 %v2361
    %v2363 = vpop.xlane.xlu0 %2362
    %v2364 = vmul.f32 %v2354, %v106
    %v2365 = vmul.f32 %v2357, %v106
    %v2366 = vmul.f32 %v2360, %v106
    %v2367 = vmul.f32 %v2363, %v106
    %v2368 = vadd.f32 %v2364, 1e-12
    %v2369 = vadd.f32 %v2365, 1e-12
    %v2370 = vadd.f32 %v2366, 1e-12
    %v2371 = vadd.f32 %v2367, 1e-12
    %v2372 = vrsqrt.pop %v2368
    %v2373 = vrsqrt.pop %v2369
    %v2374 = vrsqrt.pop %v2370
    %v2375 = vrsqrt.pop %v2371
    %v2376 = vmul.f32 %v2344, %v2372
    %v2377 = vmul.f32 %v2345, %v2373
    %v2378 = vmul.f32 %v2346, %v2374
    %v2379 = vmul.f32 %v2347, %v2375
    %v2381 = vlaneseq
    %v2382 = vshrl.u32 %v2381, 7
    %v2383 = vsub.s32 0, %v2382
    %v2384 = vrot.slane %v2326, %v2383
    %v2386 = vmul.f32 %v2376, %v2384
    %v2387 = vmul.f32 %v2377, %v2384
    %v2388 = vmul.f32 %v2378, %v2384
    %v2389 = vmul.f32 %v2379, %v2384
    %v2391 = vlaneseq
    %v2392 = vshrl.u32 %v2391, 7
    %v2393 = vsub.s32 0, %v2392
    %v2394 = vrot.slane %v2327, %v2393
    %v2396 = vadd.f32 %v2386, %v2394
    %v2397 = vadd.f32 %v2387, %v2394
    %v2398 = vadd.f32 %v2388, %v2394
    %v2399 = vadd.f32 %v2389, %v2394
    %v2400 = vld [vmem:[%s10] sm:$0xff]
    %v2401 = vld [vmem:[%s10 + $0x8] sm:$0xff]
    %v2402 = vld [vmem:[%s10 + $0x10] sm:$0xff]
    %v2403 = vld [vmem:[%s10 + $0x18] sm:$0xff]
    %v2404 = vld [vmem:[%s11] sm:$0x1]
    %v2405 = vpack.c.bf16 %v2397, %v2396
    %v2406 = vpack.c.bf16 %v2399, %v2398
    %v2407 = vpack.c.bf16 %v2401, %v2400
    %v2408 = vpack.c.bf16 %v2403, %v2402
    %v2410 = vlaneseq
    %v2411 = vshrl.u32 %v2410, 7
    %v2412 = vsub.s32 0, %v2411
    %v2413 = vrot.slane %v2404, %v2412
    %v2416 = vsel %vm93, %v2405, 0
    %v2419 = vsel %vm93, %v2406, 0
    %2421 = vmatprep.subr.bf16.mxu0 0
    %2422 = vmatpush1.bf16.msra.mxu0 %v2407
    %2423 = vmatprep.subr.bf16.mxu0 0
    %2424 = vmatpush1.bf16.msra.mxu0 %v2408
    %2425 = vmatprep.subr.bf16.mxu0 0
    %2426 = vmatpush1.bf16.msra.mxu0 0
    %2427 = vmatprep.subr.bf16.mxu0 0
    %2428 = vmatpush1.bf16.msra.mxu0 0
    %2429 = vmatprep.subr.bf16.mxu0 0
    %2430 = vmatpush1.bf16.msra.mxu0 0
    %2431 = vmatprep.subr.bf16.mxu0 0
    %2432 = vmatpush1.bf16.msra.mxu0 0
    %2433 = vmatprep.subr.bf16.mxu0 0
    %2434 = vmatpush1.bf16.msra.mxu0 0
    %2435 = vmatprep.subr.bf16.mxu0 0
    %2436 = vmatpush1.bf16.msra.mxu0 0
    %2437 = vmatprep.subr.bf16.mxu0 0
    %2438 = vmatpush1.bf16.msra.mxu0 0
    %2439 = vmatprep.subr.bf16.mxu0 0
    %2440 = vmatpush1.bf16.msra.mxu0 0
    %2441 = vmatprep.subr.bf16.mxu0 0
    %2442 = vmatpush1.bf16.msra.mxu0 0
    %2443 = vmatprep.subr.bf16.mxu0 0
    %2444 = vmatpush1.bf16.msra.mxu0 0
    %2445 = vmatprep.subr.bf16.mxu0 0
    %2446 = vmatpush1.bf16.msra.mxu0 0
    %2447 = vmatprep.subr.bf16.mxu0 0
    %2448 = vmatpush1.bf16.msra.mxu0 0
    %2449 = vmatprep.subr.bf16.mxu0 0
    %2450 = vmatpush1.bf16.msra.mxu0 0
    %2451 = vmatprep.subr.bf16.mxu0 0
    %2452 = vmatpush1.bf16.msra.mxu0 0
    %2453 = vmatprep.mubr.bf16.mxu0 0
    %2454 = vmatmul.mubr.bf16.gmra.mrb[0].mxu0 %v2416
    %v2455 = vpop.f32.mrb[0].mxu0
    %v2456 = vadd.f32 %v2413, %v2455
    %v2457 = vpop.f32.mrb[0].mxu0
    %v2458 = vpop.f32.mrb[0].mxu0
    %v2459 = vadd.f32 %v2413, %v2458
    %v2460 = vpop.f32.mrb[0].mxu0
    %2461 = vmatprep.mubr.bf16.mxu0 0
    %2462 = vmatmul.mubr.bf16.gmra.mrb[0].mxu0 %v2419
    %v2463 = vpop.f32.mrb[0].mxu0
    %v2464 = vadd.f32 %v2413, %v2463
    %v2465 = vpop.f32.mrb[0].mxu0
    %v2466 = vpop.f32.mrb[0].mxu0
    %v2467 = vadd.f32 %v2413, %v2466
    %v2468 = vpop.f32.mrb[0].mxu0
    %2469 = vdwg.mxu0
    %v2470 = vmul.f32 %v2456, 0.5
    %v2471 = vmul.f32 %v2459, 0.5
    %v2472 = vmul.f32 %v2464, 0.5
    %v2473 = vmul.f32 %v2467, 0.5
    %v2474 = vmul.f32 %v2456, 0.044715
    %v2475 = vmul.f32 %v2459, 0.044715
    %v2476 = vmul.f32 %v2464, 0.044715
    %v2477 = vmul.f32 %v2467, 0.044715
    %v2478 = vmul.f32 %v2474, %v2456
    %v2479 = vmul.f32 %v2475, %v2459
    %v2480 = vmul.f32 %v2476, %v2464
    %v2481 = vmul.f32 %v2477, %v2467
    %v2482 = vmul.f32 %v2478, %v2456
    %v2483 = vmul.f32 %v2479, %v2459
    %v2484 = vmul.f32 %v2480, %v2464
    %v2485 = vmul.f32 %v2481, %v2467
    %v2486 = vadd.f32 %v2456, %v2482
    %v2487 = vadd.f32 %v2459, %v2483
    %v2488 = vadd.f32 %v2464, %v2484
    %v2489 = vadd.f32 %v2467, %v2485
    %v2490 = vmul.f32 %v2486, 0.7978846
    %v2491 = vmul.f32 %v2487, 0.7978846
    %v2492 = vmul.f32 %v2488, 0.7978846
    %v2493 = vmul.f32 %v2489, 0.7978846
    %v2494 = vtanh.pop %v2490
    %v2495 = vtanh.pop %v2491
    %v2496 = vtanh.pop %v2492
    %v2497 = vtanh.pop %v2493
    %v2498 = vadd.f32 %v2494, 1.0
    %v2499 = vadd.f32 %v2495, 1.0
    %v2500 = vadd.f32 %v2496, 1.0
    %v2501 = vadd.f32 %v2497, 1.0
    %v2502 = vmul.f32 %v2470, %v2498
    %v2503 = vmul.f32 %v2471, %v2499
    %v2504 = vmul.f32 %v2472, %v2500
    %v2505 = vmul.f32 %v2473, %v2501
    %v2506 = vld [vmem:[%s12] sm:$0xff]
    %v2507 = vld [vmem:[%s12 + $0x8] sm:$0xff]
    %v2508 = vld [vmem:[%s12 + $0x10] sm:$0xff]
    %v2509 = vld [vmem:[%s12 + $0x18] sm:$0xff]
    %v2510 = vld [vmem:[%s12 + $0x20] sm:$0xff]
    %v2511 = vld [vmem:[%s12 + $0x28] sm:$0xff]
    %v2512 = vld [vmem:[%s12 + $0x30] sm:$0xff]
    %v2513 = vld [vmem:[%s12 + $0x38] sm:$0xff]
    %v2514 = vld [vmem:[%s13] sm:$0x1]
    %v2515 = vpack.c.bf16 %v2503, %v2502
    %v2516 = vpack.c.bf16 %v2505, %v2504
    %v2517 = vpack.c.bf16 %v2507, %v2506
    %v2518 = vpack.c.bf16 %v2509, %v2508
    %v2519 = vpack.c.bf16 %v2511, %v2510
    %v2520 = vpack.c.bf16 %v2513, %v2512
    %v2522 = vlaneseq
    %v2523 = vshrl.u32 %v2522, 7
    %v2524 = vsub.s32 0, %v2523
    %v2525 = vrot.slane %v2514, %v2524
    %vm2527 = vcmask 523264
    %v2529 = vsel %vm2527, %v2515, 0
    %v2532 = vsel %vm2527, %v2516, 0
    %2534 = vmatprep.subr.bf16.mxu0 0
    %2535 = vmatpush1.bf16.msra.mxu0 %v2517
    %2536 = vmatprep.subr.bf16.mxu0 0
    %2537 = vmatpush1.bf16.msra.mxu0 %v2518
    %2538 = vmatprep.subr.bf16.mxu0 0
    %2539 = vmatpush1.bf16.msra.mxu0 %v2519
    %2540 = vmatprep.subr.bf16.mxu0 0
    %2541 = vmatpush1.bf16.msra.mxu0 %v2520
    %2542 = vmatprep.subr.bf16.mxu0 0
    %2543 = vmatpush1.bf16.msra.mxu0 0
    %2544 = vmatprep.subr.bf16.mxu0 0
    %2545 = vmatpush1.bf16.msra.mxu0 0
    %2546 = vmatprep.subr.bf16.mxu0 0
    %2547 = vmatpush1.bf16.msra.mxu0 0
    %2548 = vmatprep.subr.bf16.mxu0 0
    %2549 = vmatpush1.bf16.msra.mxu0 0
    %2550 = vmatprep.subr.bf16.mxu0 0
    %2551 = vmatpush1.bf16.msra.mxu0 0
    %2552 = vmatprep.subr.bf16.mxu0 0
    %2553 = vmatpush1.bf16.msra.mxu0 0
    %2554 = vmatprep.subr.bf16.mxu0 0
    %2555 = vmatpush1.bf16.msra.mxu0 0
    %2556 = vmatprep.subr.bf16.mxu0 0
    %2557 = vmatpush1.bf16.msra.mxu0 0
    %2558 = vmatprep.subr.bf16.mxu0 0
    %2559 = vmatpush1.bf16.msra.mxu0 0
    %2560 = vmatprep.subr.bf16.mxu0 0
    %2561 = vmatpush1.bf16.msra.mxu0 0
    %2562 = vmatprep.subr.bf16.mxu0 0
    %2563 = vmatpush1.bf16.msra.mxu0 0
    %2564 = vmatprep.subr.bf16.mxu0 0
    %2565 = vmatpush1.bf16.msra.mxu0 0
    %2566 = vmatprep.mubr.bf16.mxu0 0
    %2567 = vmatmul.mubr.bf16.gmra.mrb[0].mxu0 %v2529
    %v2568 = vpop.f32.mrb[0].mxu0
    %v2569 = vadd.f32 %v2525, %v2568
    %v2570 = vpop.f32.mrb[0].mxu0
    %v2571 = vpop.f32.mrb[0].mxu0
    %v2572 = vadd.f32 %v2525, %v2571
    %v2573 = vpop.f32.mrb[0].mxu0
    %2574 = vmatprep.mubr.bf16.mxu0 0
    %2575 = vmatmul.mubr.bf16.gmra.mrb[0].mxu0 %v2532
    %v2576 = vpop.f32.mrb[0].mxu0
    %v2577 = vadd.f32 %v2525, %v2576
    %v2578 = vpop.f32.mrb[0].mxu0
    %v2579 = vpop.f32.mrb[0].mxu0
    %v2580 = vadd.f32 %v2525, %v2579
    %v2581 = vpop.f32.mrb[0].mxu0
    %2582 = vdwg.mxu0
    %v2583 = vadd.f32 %v2396, %v2569
    %v2584 = vadd.f32 %v2397, %v2572
    %v2585 = vadd.f32 %v2398, %v2577
    %v2586 = vadd.f32 %v2399, %v2580
    %v2587 = vld [vmem:[%s14] sm:$0x1]
    %v2588 = vld [vmem:[%s15] sm:$0x1]
    %v2589 = vsel %vm93, %v2583, 0.0
    %2590 = vadd.xlane.f32.xlu0 %v2589
    %v2591 = vpop.xlane.xlu0 %2590
    %v2592 = vsel %vm93, %v2584, 0.0
    %2593 = vadd.xlane.f32.xlu0 %v2592
    %v2594 = vpop.xlane.xlu0 %2593
    %v2595 = vsel %vm93, %v2585, 0.0
    %2596 = vadd.xlane.f32.xlu0 %v2595
    %v2597 = vpop.xlane.xlu0 %2596
    %v2598 = vsel %vm93, %v2586, 0.0
    %2599 = vadd.xlane.f32.xlu0 %v2598
    %v2600 = vpop.xlane.xlu0 %2599
    %v2601 = vmul.f32 %v2591, %v106
    %v2602 = vmul.f32 %v2594, %v106
    %v2603 = vmul.f32 %v2597, %v106
    %v2604 = vmul.f32 %v2600, %v106
    %v2605 = vsub.f32 %v2583, %v2601
    %v2606 = vsub.f32 %v2584, %v2602
    %v2607 = vsub.f32 %v2585, %v2603
    %v2608 = vsub.f32 %v2586, %v2604
    %v2609 = vmul.f32 %v2605, %v2605
    %v2610 = vmul.f32 %v2606, %v2606
    %v2611 = vmul.f32 %v2607, %v2607
    %v2612 = vmul.f32 %v2608, %v2608
    %v2613 = vsel %vm93, %v2609, 0.0
    %2614 = vadd.xlane.f32.xlu0 %v2613
    %v2615 = vpop.xlane.xlu0 %2614
    %v2616 = vsel %vm93, %v2610, 0.0
    %2617 = vadd.xlane.f32.xlu0 %v2616
    %v2618 = vpop.xlane.xlu0 %2617
    %v2619 = vsel %vm93, %v2611, 0.0
    %2620 = vadd.xlane.f32.xlu0 %v2619
    %v2621 = vpop.xlane.xlu0 %2620
    %v2622 = vsel %vm93, %v2612, 0.0
    %2623 = vadd.xlane.f32.xlu0 %v2622
    %v2624 = vpop.xlane.xlu0 %2623
    %v2625 = vmul.f32 %v2615, %v106
    %v2626 = vmul.f32 %v2618, %v106
    %v2627 = vmul.f32 %v2621, %v106
    %v2628 = vmul.f32 %v2624, %v106
    %v2629 = vadd.f32 %v2625, 1e-12
    %v2630 = vadd.f32 %v2626, 1e-12
    %v2631 = vadd.f32 %v2627, 1e-12
    %v2632 = vadd.f32 %v2628, 1e-12
    %v2633 = vrsqrt.pop %v2629
    %v2634 = vrsqrt.pop %v2630
    %v2635 = vrsqrt.pop %v2631
    %v2636 = vrsqrt.pop %v2632
    %v2637 = vmul.f32 %v2605, %v2633
    %v2638 = vmul.f32 %v2606, %v2634
    %v2639 = vmul.f32 %v2607, %v2635
    %v2640 = vmul.f32 %v2608, %v2636
    %v2642 = vlaneseq
    %v2643 = vshrl.u32 %v2642, 7
    %v2644 = vsub.s32 0, %v2643
    %v2645 = vrot.slane %v2587, %v2644
    %v2647 = vmul.f32 %v2637, %v2645
    %v2648 = vmul.f32 %v2638, %v2645
    %v2649 = vmul.f32 %v2639, %v2645
    %v2650 = vmul.f32 %v2640, %v2645
    %v2652 = vlaneseq
    %v2653 = vshrl.u32 %v2652, 7
    %v2654 = vsub.s32 0, %v2653
    %v2655 = vrot.slane %v2588, %v2654
    %v2657 = vadd.f32 %v2647, %v2655
    %v2658 = vadd.f32 %v2648, %v2655
    %v2659 = vadd.f32 %v2649, %v2655
    %v2660 = vadd.f32 %v2650, %v2655
    %s2661 = scalar_lea.vmem %s4, 32
    %v2662 = vld [vmem:[%s2661] sm:$0xff]
    %v2663 = vld [vmem:[%s2661 + $0x8] sm:$0xff]
    %v2664 = vld [vmem:[%s2661 + $0x10] sm:$0xff]
    %v2665 = vld [vmem:[%s2661 + $0x18] sm:$0xff]
    %s2666 = scalar_lea.vmem %s5, 1
    %v2667 = vld [vmem:[%s2666] sm:$0x1]
    %v2668 = vpack.c.bf16 %v2658, %v2657
    %v2669 = vpack.c.bf16 %v2660, %v2659
    %v2670 = vpack.c.bf16 %v2663, %v2662
    %v2671 = vpack.c.bf16 %v2665, %v2664
    %v2673 = vlaneseq
    %v2674 = vshrl.u32 %v2673, 7
    %v2675 = vsub.s32 0, %v2674
    %v2676 = vrot.slane %v2667, %v2675
    %v2679 = vsel %vm93, %v2668, 0
    %v2682 = vsel %vm93, %v2669, 0
    %2684 = vmatprep.subr.bf16.mxu0 0
    %2685 = vmatpush1.bf16.msra.mxu0 %v2670
    %2686 = vmatprep.subr.bf16.mxu0 0
    %2687 = vmatpush1.bf16.msra.mxu0 %v2671
    %2688 = vmatprep.subr.bf16.mxu0 0
    %2689 = vmatpush1.bf16.msra.mxu0 0
    %2690 = vmatprep.subr.bf16.mxu0 0
    %2691 = vmatpush1.bf16.msra.mxu0 0
    %2692 = vmatprep.subr.bf16.mxu0 0
    %2693 = vmatpush1.bf16.msra.mxu0 0
    %2694 = vmatprep.subr.bf16.mxu0 0
    %2695 = vmatpush1.bf16.msra.mxu0 0
    %2696 = vmatprep.subr.bf16.mxu0 0
    %2697 = vmatpush1.bf16.msra.mxu0 0
    %2698 = vmatprep.subr.bf16.mxu0 0
    %2699 = vmatpush1.bf16.msra.mxu0 0
    %2700 = vmatprep.subr.bf16.mxu0 0
    %2701 = vmatpush1.bf16.msra.mxu0 0
    %2702 = vmatprep.subr.bf16.mxu0 0
    %2703 = vmatpush1.bf16.msra.mxu0 0
    %2704 = vmatprep.subr.bf16.mxu0 0
    %2705 = vmatpush1.bf16.msra.mxu0 0
    %2706 = vmatprep.subr.bf16.mxu0 0
    %2707 = vmatpush1.bf16.msra.mxu0 0
    %2708 = vmatprep.subr.bf16.mxu0 0
    %2709 = vmatpush1.bf16.msra.mxu0 0
    %2710 = vmatprep.subr.bf16.mxu0 0
    %2711 = vmatpush1.bf16.msra.mxu0 0
    %2712 = vmatprep.subr.bf16.mxu0 0
    %2713 = vmatpush1.bf16.msra.mxu0 0
    %2714 = vmatprep.subr.bf16.mxu0 0
    %2715 = vmatpush1.bf16.msra.mxu0 0
    %2716 = vmatprep.mubr.bf16.mxu0 0
    %2717 = vmatmul.mubr.bf16.gmra.mrb[0].mxu0 %v2679
    %v2718 = vpop.f32.mrb[0].mxu0
    %v2719 = vadd.f32 %v2676, %v2718
    %v2720 = vpop.f32.mrb[0].mxu0
    %v2721 = vpop.f32.mrb[0].mxu0
    %v2722 = vadd.f32 %v2676, %v2721
    %v2723 = vpop.f32.mrb[0].mxu0
    %2724 = vmatprep.mubr.bf16.mxu0 0
    %2725 = vmatmul.mubr.bf16.gmra.mrb[0].mxu0 %v2682
    %v2726 = vpop.f32.mrb[0].mxu0
    %v2727 = vadd.f32 %v2676, %v2726
    %v2728 = vpop.f32.mrb[0].mxu0
    %v2729 = vpop.f32.mrb[0].mxu0
    %v2730 = vadd.f32 %v2676, %v2729
    %v2731 = vpop.f32.mrb[0].mxu0
    %2732 = vdwg.mxu0
    %s2733 = scalar_lea.vmem %s6, 32
    %v2734 = vld [vmem:[%s2733] sm:$0xff]
    %v2735 = vld [vmem:[%s2733 + $0x8] sm:$0xff]
    %v2736 = vld [vmem:[%s2733 + $0x10] sm:$0xff]
    %v2737 = vld [vmem:[%s2733 + $0x18] sm:$0xff]
    %s2738 = scalar_lea.vmem %s7, 1
    %v2739 = vld [vmem:[%s2738] sm:$0x1]
    %v2740 = vpack.c.bf16 %v2719, %v2719
    %v2741 = vpack.c.bf16 %v2722, %v2722
    %v2742 = vpack.c.bf16 %v2727, %v2727
    %v2743 = vpack.c.bf16 %v2730, %v2730
    %2745 = vrot.lane.b32.xlu0 %v2740, 96
    %v2746 = vpop.permute.xlu0 %2745
    %v2748 = vsel %vm249, %v2740, 0
    %v2751 = vsel %vm249, %v2746, 0
    %2753 = vmatprep.subr.bf16.mxu0 0
    %2754 = vmatpush1.bf16.xpose.msra.mxu0 %v2751
    %2755 = vmatprep.subr.bf16.mxu0 0
    %2756 = vmatpush1.bf16.xpose.msra.mxu0 0
    %2757 = vmatprep.subr.bf16.mxu0 0
    %2758 = vmatpush1.bf16.xpose.msra.mxu0 0
    %2759 = vmatprep.subr.bf16.mxu0 0
    %2760 = vmatpush1.bf16.xpose.msra.mxu0 0
    %2761 = vmatprep.subr.bf16.mxu0 0
    %2762 = vmatpush1.bf16.xpose.msra.mxu0 0
    %2763 = vmatprep.subr.bf16.mxu0 0
    %2764 = vmatpush1.bf16.xpose.msra.mxu0 0
    %2765 = vmatprep.subr.bf16.mxu0 0
    %2766 = vmatpush1.bf16.xpose.msra.mxu0 0
    %2767 = vmatprep.subr.bf16.mxu0 0
    %2768 = vmatpush1.bf16.xpose.msra.mxu0 0
    %2769 = vmatprep.subr.bf16.mxu0 0
    %2770 = vmatpush1.bf16.xpose.msra.mxu0 0
    %2771 = vmatprep.subr.bf16.mxu0 0
    %2772 = vmatpush1.bf16.xpose.msra.mxu0 0
    %2773 = vmatprep.subr.bf16.mxu0 0
    %2774 = vmatpush1.bf16.xpose.msra.mxu0 0
    %2775 = vmatprep.subr.bf16.mxu0 0
    %2776 = vmatpush1.bf16.xpose.msra.mxu0 0
    %2777 = vmatprep.subr.bf16.mxu0 0
    %2778 = vmatpush1.bf16.xpose.msra.mxu0 0
    %2779 = vmatprep.subr.bf16.mxu0 0
    %2780 = vmatpush1.bf16.xpose.msra.mxu0 0
    %2781 = vmatprep.subr.bf16.mxu0 0
    %2782 = vmatpush1.bf16.xpose.msra.mxu0 0
    %2783 = vmatprep.subr.bf16.mxu0 0
    %2784 = vmatpush1.bf16.xpose.msra.mxu0 0
    %2785 = vmatprep.mubr.bf16.mxu0 0
    %2786 = vmatmul.mubr.bf16.gmra.mrb[0].mxu0 %v2748
    %v2787 = vpop.f32.mrb[0].mxu0
    %v2788 = vadd.f32 0.0, %v2787
    %v2789 = vpop.f32.mrb[0].mxu0
    %v2790 = vpop.f32.mrb[0].mxu0
    %v2791 = vpop.f32.mrb[0].mxu0
    %2792 = vdwg.mxu0
    %2794 = vrot.lane.b32.xlu0 %v2741, 96
    %v2795 = vpop.permute.xlu0 %2794
    %v2797 = vsel %vm249, %v2741, 0
    %v2800 = vsel %vm249, %v2795, 0
    %2802 = vmatprep.subr.bf16.mxu0 0
    %2803 = vmatpush1.bf16.xpose.msra.mxu0 %v2800
    %2804 = vmatprep.subr.bf16.mxu0 0
    %2805 = vmatpush1.bf16.xpose.msra.mxu0 0
    %2806 = vmatprep.subr.bf16.mxu0 0
    %2807 = vmatpush1.bf16.xpose.msra.mxu0 0
    %2808 = vmatprep.subr.bf16.mxu0 0
    %2809 = vmatpush1.bf16.xpose.msra.mxu0 0
    %2810 = vmatprep.subr.bf16.mxu0 0
    %2811 = vmatpush1.bf16.xpose.msra.mxu0 0
    %2812 = vmatprep.subr.bf16.mxu0 0
    %2813 = vmatpush1.bf16.xpose.msra.mxu0 0
    %2814 = vmatprep.subr.bf16.mxu0 0
    %2815 = vmatpush1.bf16.xpose.msra.mxu0 0
    %2816 = vmatprep.subr.bf16.mxu0 0
    %2817 = vmatpush1.bf16.xpose.msra.mxu0 0
    %2818 = vmatprep.subr.bf16.mxu0 0
    %2819 = vmatpush1.bf16.xpose.msra.mxu0 0
    %2820 = vmatprep.subr.bf16.mxu0 0
    %2821 = vmatpush1.bf16.xpose.msra.mxu0 0
    %2822 = vmatprep.subr.bf16.mxu0 0
    %2823 = vmatpush1.bf16.xpose.msra.mxu0 0
    %2824 = vmatprep.subr.bf16.mxu0 0
    %2825 = vmatpush1.bf16.xpose.msra.mxu0 0
    %2826 = vmatprep.subr.bf16.mxu0 0
    %2827 = vmatpush1.bf16.xpose.msra.mxu0 0
    %2828 = vmatprep.subr.bf16.mxu0 0
    %2829 = vmatpush1.bf16.xpose.msra.mxu0 0
    %2830 = vmatprep.subr.bf16.mxu0 0
    %2831 = vmatpush1.bf16.xpose.msra.mxu0 0
    %2832 = vmatprep.subr.bf16.mxu0 0
    %2833 = vmatpush1.bf16.xpose.msra.mxu0 0
    %2834 = vmatprep.mubr.bf16.mxu0 0
    %2835 = vmatmul.mubr.bf16.gmra.mrb[0].mxu0 %v2797
    %v2836 = vpop.f32.mrb[0].mxu0
    %v2837 = vadd.f32 0.0, %v2836
    %v2838 = vpop.f32.mrb[0].mxu0
    %v2839 = vpop.f32.mrb[0].mxu0
    %v2840 = vpop.f32.mrb[0].mxu0
    %2841 = vdwg.mxu0
    %2843 = vrot.lane.b32.xlu0 %v2742, 96
    %v2844 = vpop.permute.xlu0 %2843
    %v2846 = vsel %vm249, %v2742, 0
    %v2849 = vsel %vm249, %v2844, 0
    %2851 = vmatprep.subr.bf16.mxu0 0
    %2852 = vmatpush1.bf16.xpose.msra.mxu0 %v2849
    %2853 = vmatprep.subr.bf16.mxu0 0
    %2854 = vmatpush1.bf16.xpose.msra.mxu0 0
    %2855 = vmatprep.subr.bf16.mxu0 0
    %2856 = vmatpush1.bf16.xpose.msra.mxu0 0
    %2857 = vmatprep.subr.bf16.mxu0 0
    %2858 = vmatpush1.bf16.xpose.msra.mxu0 0
    %2859 = vmatprep.subr.bf16.mxu0 0
    %2860 = vmatpush1.bf16.xpose.msra.mxu0 0
    %2861 = vmatprep.subr.bf16.mxu0 0
    %2862 = vmatpush1.bf16.xpose.msra.mxu0 0
    %2863 = vmatprep.subr.bf16.mxu0 0
    %2864 = vmatpush1.bf16.xpose.msra.mxu0 0
    %2865 = vmatprep.subr.bf16.mxu0 0
    %2866 = vmatpush1.bf16.xpose.msra.mxu0 0
    %2867 = vmatprep.subr.bf16.mxu0 0
    %2868 = vmatpush1.bf16.xpose.msra.mxu0 0
    %2869 = vmatprep.subr.bf16.mxu0 0
    %2870 = vmatpush1.bf16.xpose.msra.mxu0 0
    %2871 = vmatprep.subr.bf16.mxu0 0
    %2872 = vmatpush1.bf16.xpose.msra.mxu0 0
    %2873 = vmatprep.subr.bf16.mxu0 0
    %2874 = vmatpush1.bf16.xpose.msra.mxu0 0
    %2875 = vmatprep.subr.bf16.mxu0 0
    %2876 = vmatpush1.bf16.xpose.msra.mxu0 0
    %2877 = vmatprep.subr.bf16.mxu0 0
    %2878 = vmatpush1.bf16.xpose.msra.mxu0 0
    %2879 = vmatprep.subr.bf16.mxu0 0
    %2880 = vmatpush1.bf16.xpose.msra.mxu0 0
    %2881 = vmatprep.subr.bf16.mxu0 0
    %2882 = vmatpush1.bf16.xpose.msra.mxu0 0
    %2883 = vmatprep.mubr.bf16.mxu0 0
    %2884 = vmatmul.mubr.bf16.gmra.mrb[0].mxu0 %v2846
    %v2885 = vpop.f32.mrb[0].mxu0
    %v2886 = vadd.f32 0.0, %v2885
    %v2887 = vpop.f32.mrb[0].mxu0
    %v2888 = vpop.f32.mrb[0].mxu0
    %v2889 = vpop.f32.mrb[0].mxu0
    %2890 = vdwg.mxu0
    %2892 = vrot.lane.b32.xlu0 %v2743, 96
    %v2893 = vpop.permute.xlu0 %2892
    %v2895 = vsel %vm249, %v2743, 0
    %v2898 = vsel %vm249, %v2893, 0
    %2900 = vmatprep.subr.bf16.mxu0 0
    %2901 = vmatpush1.bf16.xpose.msra.mxu0 %v2898
    %2902 = vmatprep.subr.bf16.mxu0 0
    %2903 = vmatpush1.bf16.xpose.msra.mxu0 0
    %2904 = vmatprep.subr.bf16.mxu0 0
    %2905 = vmatpush1.bf16.xpose.msra.mxu0 0
    %2906 = vmatprep.subr.bf16.mxu0 0
    %2907 = vmatpush1.bf16.xpose.msra.mxu0 0
    %2908 = vmatprep.subr.bf16.mxu0 0
    %2909 = vmatpush1.bf16.xpose.msra.mxu0 0
    %2910 = vmatprep.subr.bf16.mxu0 0
    %2911 = vmatpush1.bf16.xpose.msra.mxu0 0
    %2912 = vmatprep.subr.bf16.mxu0 0
    %2913 = vmatpush1.bf16.xpose.msra.mxu0 0
    %2914 = vmatprep.subr.bf16.mxu0 0
    %2915 = vmatpush1.bf16.xpose.msra.mxu0 0
    %2916 = vmatprep.subr.bf16.mxu0 0
    %2917 = vmatpush1.bf16.xpose.msra.mxu0 0
    %2918 = vmatprep.subr.bf16.mxu0 0
    %2919 = vmatpush1.bf16.xpose.msra.mxu0 0
    %2920 = vmatprep.subr.bf16.mxu0 0
    %2921 = vmatpush1.bf16.xpose.msra.mxu0 0
    %2922 = vmatprep.subr.bf16.mxu0 0
    %2923 = vmatpush1.bf16.xpose.msra.mxu0 0
    %2924 = vmatprep.subr.bf16.mxu0 0
    %2925 = vmatpush1.bf16.xpose.msra.mxu0 0
    %2926 = vmatprep.subr.bf16.mxu0 0
    %2927 = vmatpush1.bf16.xpose.msra.mxu0 0
    %2928 = vmatprep.subr.bf16.mxu0 0
    %2929 = vmatpush1.bf16.xpose.msra.mxu0 0
    %2930 = vmatprep.subr.bf16.mxu0 0
    %2931 = vmatpush1.bf16.xpose.msra.mxu0 0
    %2932 = vmatprep.mubr.bf16.mxu0 0
    %2933 = vmatmul.mubr.bf16.gmra.mrb[0].mxu0 %v2895
    %v2934 = vpop.f32.mrb[0].mxu0
    %v2935 = vadd.f32 0.0, %v2934
    %v2936 = vpop.f32.mrb[0].mxu0
    %v2937 = vpop.f32.mrb[0].mxu0
    %v2938 = vpop.f32.mrb[0].mxu0
    %2939 = vdwg.mxu0
    %v2940 = vmul.f32 %v2788, 0.35355338
    %v2941 = vmul.f32 %v2837, 0.35355338
    %v2942 = vmul.f32 %v2886, 0.35355338
    %v2943 = vmul.f32 %v2935, 0.35355338
    %v2944 = vadd.f32 %v2940, %v450
    %v2945 = vadd.f32 %v2941, %v454
    %v2946 = vadd.f32 %v2942, %v458
    %v2947 = vadd.f32 %v2943, %v462
    %v2948 = vsel %vm249, %v2944, -inf
    %2949 = vmax.xlane.f32.xlu0 %v2948
    %v2950 = vpop.xlane.xlu0 %2949
    %v2951 = vsel %vm249, %v2945, -inf
    %2952 = vmax.xlane.f32.xlu0 %v2951
    %v2953 = vpop.xlane.xlu0 %2952
    %v2954 = vsel %vm249, %v2946, -inf
    %2955 = vmax.xlane.f32.xlu0 %v2954
    %v2956 = vpop.xlane.xlu0 %2955
    %v2957 = vsel %vm249, %v2947, -inf
    %2958 = vmax.xlane.f32.xlu0 %v2957
    %v2959 = vpop.xlane.xlu0 %2958
    %v2960 = vsub.f32 %v2944, %v2950
    %v2961 = vsub.f32 %v2945, %v2953
    %v2962 = vsub.f32 %v2946, %v2956
    %v2963 = vsub.f32 %v2947, %v2959
    %v2964 = vmul.f32 %v2960, 1.442695
    %v2965 = vpow.pop %v2964
    %v2966 = vmul.f32 %v2961, 1.442695
    %v2967 = vpow.pop %v2966
    %v2968 = vmul.f32 %v2962, 1.442695
    %v2969 = vpow.pop %v2968
    %v2970 = vmul.f32 %v2963, 1.442695
    %v2971 = vpow.pop %v2970
    %v2972 = vsel %vm249, %v2965, 0.0
    %2973 = vadd.xlane.f32.xlu0 %v2972
    %v2974 = vpop.xlane.xlu0 %2973
    %v2975 = vsel %vm249, %v2967, 0.0
    %2976 = vadd.xlane.f32.xlu0 %v2975
    %v2977 = vpop.xlane.xlu0 %2976
    %v2978 = vsel %vm249, %v2969, 0.0
    %2979 = vadd.xlane.f32.xlu0 %v2978
    %v2980 = vpop.xlane.xlu0 %2979
    %v2981 = vsel %vm249, %v2971, 0.0
    %2982 = vadd.xlane.f32.xlu0 %v2981
    %v2983 = vpop.xlane.xlu0 %2982
    %v2984 = vrcp.pop %v2974
    %v2985 = vrcp.pop %v2977
    %v2986 = vrcp.pop %v2980
    %v2987 = vrcp.pop %v2983
    %v2988 = vmul.f32 %v2965, %v2984
    %v2989 = vmul.f32 %v2967, %v2985
    %v2990 = vmul.f32 %v2969, %v2986
    %v2991 = vmul.f32 %v2971, %v2987
    %v2992 = vpack.c.bf16 %v2988, %v2988
    %v2993 = vpack.c.bf16 %v2989, %v2989
    %v2994 = vpack.c.bf16 %v2990, %v2990
    %v2995 = vpack.c.bf16 %v2991, %v2991
    %2996 = vrot.lane.b32.xlu0 %v2740, 64
    %v2997 = vpop.permute.xlu0 %2996
    %v2999 = vsel %vm249, %v2992, 0
    %v3002 = vsel %vm524, %v2997, 0
    %3004 = vmatprep.subr.bf16.mxu0 0
    %3005 = vmatpush1.bf16.msra.mxu0 %v3002
    %3006 = vmatprep.subr.bf16.mxu0 0
    %3007 = vmatpush1.bf16.msra.mxu0 0
    %3008 = vmatprep.subr.bf16.mxu0 0
    %3009 = vmatpush1.bf16.msra.mxu0 0
    %3010 = vmatprep.subr.bf16.mxu0 0
    %3011 = vmatpush1.bf16.msra.mxu0 0
    %3012 = vmatprep.subr.bf16.mxu0 0
    %3013 = vmatpush1.bf16.msra.mxu0 0
    %3014 = vmatprep.subr.bf16.mxu0 0
    %3015 = vmatpush1.bf16.msra.mxu0 0
    %3016 = vmatprep.subr.bf16.mxu0 0
    %3017 = vmatpush1.bf16.msra.mxu0 0
    %3018 = vmatprep.subr.bf16.mxu0 0
    %3019 = vmatpush1.bf16.msra.mxu0 0
    %3020 = vmatprep.subr.bf16.mxu0 0
    %3021 = vmatpush1.bf16.msra.mxu0 0
    %3022 = vmatprep.subr.bf16.mxu0 0
    %3023 = vmatpush1.bf16.msra.mxu0 0
    %3024 = vmatprep.subr.bf16.mxu0 0
    %3025 = vmatpush1.bf16.msra.mxu0 0
    %3026 = vmatprep.subr.bf16.mxu0 0
    %3027 = vmatpush1.bf16.msra.mxu0 0
    %3028 = vmatprep.subr.bf16.mxu0 0
    %3029 = vmatpush1.bf16.msra.mxu0 0
    %3030 = vmatprep.subr.bf16.mxu0 0
    %3031 = vmatpush1.bf16.msra.mxu0 0
    %3032 = vmatprep.subr.bf16.mxu0 0
    %3033 = vmatpush1.bf16.msra.mxu0 0
    %3034 = vmatprep.subr.bf16.mxu0 0
    %3035 = vmatpush1.bf16.msra.mxu0 0
    %3036 = vmatprep.mubr.bf16.mxu0 0
    %3037 = vmatmul.mubr.bf16.gmra.mrb[0].mxu0 %v2999
    %v3038 = vpop.f32.mrb[0].mxu0
    %v3039 = vadd.f32 0.0, %v3038
    %v3040 = vpop.f32.mrb[0].mxu0
    %v3041 = vpop.f32.mrb[0].mxu0
    %v3042 = vpop.f32.mrb[0].mxu0
    %3043 = vdwg.mxu0
    %3044 = vrot.lane.b32.xlu0 %v2741, 64
    %v3045 = vpop.permute.xlu0 %3044
    %v3047 = vsel %vm249, %v2993, 0
    %v3050 = vsel %vm524, %v3045, 0
    %3052 = vmatprep.subr.bf16.mxu0 0
    %3053 = vmatpush1.bf16.msra.mxu0 %v3050
    %3054 = vmatprep.subr.bf16.mxu0 0
    %3055 = vmatpush1.bf16.msra.mxu0 0
    %3056 = vmatprep.subr.bf16.mxu0 0
    %3057 = vmatpush1.bf16.msra.mxu0 0
    %3058 = vmatprep.subr.bf16.mxu0 0
    %3059 = vmatpush1.bf16.msra.mxu0 0
    %3060 = vmatprep.subr.bf16.mxu0 0
    %3061 = vmatpush1.bf16.msra.mxu0 0
    %3062 = vmatprep.subr.bf16.mxu0 0
    %3063 = vmatpush1.bf16.msra.mxu0 0
    %3064 = vmatprep.subr.bf16.mxu0 0
    %3065 = vmatpush1.bf16.msra.mxu0 0
    %3066 = vmatprep.subr.bf16.mxu0 0
    %3067 = vmatpush1.bf16.msra.mxu0 0
    %3068 = vmatprep.subr.bf16.mxu0 0
    %3069 = vmatpush1.bf16.msra.mxu0 0
    %3070 = vmatprep.subr.bf16.mxu0 0
    %3071 = vmatpush1.bf16.msra.mxu0 0
    %3072 = vmatprep.subr.bf16.mxu0 0
    %3073 = vmatpush1.bf16.msra.mxu0 0
    %3074 = vmatprep.subr.bf16.mxu0 0
    %3075 = vmatpush1.bf16.msra.mxu0 0
    %3076 = vmatprep.subr.bf16.mxu0 0
    %3077 = vmatpush1.bf16.msra.mxu0 0
    %3078 = vmatprep.subr.bf16.mxu0 0
    %3079 = vmatpush1.bf16.msra.mxu0 0
    %3080 = vmatprep.subr.bf16.mxu0 0
    %3081 = vmatpush1.bf16.msra.mxu0 0
    %3082 = vmatprep.subr.bf16.mxu0 0
    %3083 = vmatpush1.bf16.msra.mxu0 0
    %3084 = vmatprep.mubr.bf16.mxu0 0
    %3085 = vmatmul.mubr.bf16.gmra.mrb[0].mxu0 %v3047
    %v3086 = vpop.f32.mrb[0].mxu0
    %v3087 = vadd.f32 0.0, %v3086
    %v3088 = vpop.f32.mrb[0].mxu0
    %v3089 = vpop.f32.mrb[0].mxu0
    %v3090 = vpop.f32.mrb[0].mxu0
    %3091 = vdwg.mxu0
    %3092 = vrot.lane.b32.xlu0 %v2742, 64
    %v3093 = vpop.permute.xlu0 %3092
    %v3095 = vsel %vm249, %v2994, 0
    %v3098 = vsel %vm524, %v3093, 0
    %3100 = vmatprep.subr.bf16.mxu0 0
    %3101 = vmatpush1.bf16.msra.mxu0 %v3098
    %3102 = vmatprep.subr.bf16.mxu0 0
    %3103 = vmatpush1.bf16.msra.mxu0 0
    %3104 = vmatprep.subr.bf16.mxu0 0
    %3105 = vmatpush1.bf16.msra.mxu0 0
    %3106 = vmatprep.subr.bf16.mxu0 0
    %3107 = vmatpush1.bf16.msra.mxu0 0
    %3108 = vmatprep.subr.bf16.mxu0 0
    %3109 = vmatpush1.bf16.msra.mxu0 0
    %3110 = vmatprep.subr.bf16.mxu0 0
    %3111 = vmatpush1.bf16.msra.mxu0 0
    %3112 = vmatprep.subr.bf16.mxu0 0
    %3113 = vmatpush1.bf16.msra.mxu0 0
    %3114 = vmatprep.subr.bf16.mxu0 0
    %3115 = vmatpush1.bf16.msra.mxu0 0
    %3116 = vmatprep.subr.bf16.mxu0 0
    %3117 = vmatpush1.bf16.msra.mxu0 0
    %3118 = vmatprep.subr.bf16.mxu0 0
    %3119 = vmatpush1.bf16.msra.mxu0 0
    %3120 = vmatprep.subr.bf16.mxu0 0
    %3121 = vmatpush1.bf16.msra.mxu0 0
    %3122 = vmatprep.subr.bf16.mxu0 0
    %3123 = vmatpush1.bf16.msra.mxu0 0
    %3124 = vmatprep.subr.bf16.mxu0 0
    %3125 = vmatpush1.bf16.msra.mxu0 0
    %3126 = vmatprep.subr.bf16.mxu0 0
    %3127 = vmatpush1.bf16.msra.mxu0 0
    %3128 = vmatprep.subr.bf16.mxu0 0
    %3129 = vmatpush1.bf16.msra.mxu0 0
    %3130 = vmatprep.subr.bf16.mxu0 0
    %3131 = vmatpush1.bf16.msra.mxu0 0
    %3132 = vmatprep.mubr.bf16.mxu0 0
    %3133 = vmatmul.mubr.bf16.gmra.mrb[0].mxu0 %v3095
    %v3134 = vpop.f32.mrb[0].mxu0
    %v3135 = vadd.f32 0.0, %v3134
    %v3136 = vpop.f32.mrb[0].mxu0
    %v3137 = vpop.f32.mrb[0].mxu0
    %v3138 = vpop.f32.mrb[0].mxu0
    %3139 = vdwg.mxu0
    %3140 = vrot.lane.b32.xlu0 %v2743, 64
    %v3141 = vpop.permute.xlu0 %3140
    %v3143 = vsel %vm249, %v2995, 0
    %v3146 = vsel %vm524, %v3141, 0
    %3148 = vmatprep.subr.bf16.mxu0 0
    %3149 = vmatpush1.bf16.msra.mxu0 %v3146
    %3150 = vmatprep.subr.bf16.mxu0 0
    %3151 = vmatpush1.bf16.msra.mxu0 0
    %3152 = vmatprep.subr.bf16.mxu0 0
    %3153 = vmatpush1.bf16.msra.mxu0 0
    %3154 = vmatprep.subr.bf16.mxu0 0
    %3155 = vmatpush1.bf16.msra.mxu0 0
    %3156 = vmatprep.subr.bf16.mxu0 0
    %3157 = vmatpush1.bf16.msra.mxu0 0
    %3158 = vmatprep.subr.bf16.mxu0 0
    %3159 = vmatpush1.bf16.msra.mxu0 0
    %3160 = vmatprep.subr.bf16.mxu0 0
    %3161 = vmatpush1.bf16.msra.mxu0 0
    %3162 = vmatprep.subr.bf16.mxu0 0
    %3163 = vmatpush1.bf16.msra.mxu0 0
    %3164 = vmatprep.subr.bf16.mxu0 0
    %3165 = vmatpush1.bf16.msra.mxu0 0
    %3166 = vmatprep.subr.bf16.mxu0 0
    %3167 = vmatpush1.bf16.msra.mxu0 0
    %3168 = vmatprep.subr.bf16.mxu0 0
    %3169 = vmatpush1.bf16.msra.mxu0 0
    %3170 = vmatprep.subr.bf16.mxu0 0
    %3171 = vmatpush1.bf16.msra.mxu0 0
    %3172 = vmatprep.subr.bf16.mxu0 0
    %3173 = vmatpush1.bf16.msra.mxu0 0
    %3174 = vmatprep.subr.bf16.mxu0 0
    %3175 = vmatpush1.bf16.msra.mxu0 0
    %3176 = vmatprep.subr.bf16.mxu0 0
    %3177 = vmatpush1.bf16.msra.mxu0 0
    %3178 = vmatprep.subr.bf16.mxu0 0
    %3179 = vmatpush1.bf16.msra.mxu0 0
    %3180 = vmatprep.mubr.bf16.mxu0 0
    %3181 = vmatmul.mubr.bf16.gmra.mrb[0].mxu0 %v3143
    %v3182 = vpop.f32.mrb[0].mxu0
    %v3183 = vadd.f32 0.0, %v3182
    %v3184 = vpop.f32.mrb[0].mxu0
    %v3185 = vpop.f32.mrb[0].mxu0
    %v3186 = vpop.f32.mrb[0].mxu0
    %3187 = vdwg.mxu0
    %v3188 = vpack.c.bf16 %v3087, %v3039
    %v3189 = vpack.c.bf16 %v3183, %v3135
    %v3190 = vpack.c.bf16 %v2734, %v2734
    %v3192 = vsel %vm249, %v3188, 0
    %v3195 = vsel %vm249, %v3189, 0
    %v3198 = vsel %vm524, %v3190, 0
    %3200 = vmatprep.subr.bf16.mxu0 0
    %3201 = vmatpush1.bf16.msra.mxu0 %v3198
    %3202 = vmatprep.subr.bf16.mxu0 0
    %3203 = vmatpush1.bf16.msra.mxu0 0
    %3204 = vmatprep.subr.bf16.mxu0 0
    %3205 = vmatpush1.bf16.msra.mxu0 0
    %3206 = vmatprep.subr.bf16.mxu0 0
    %3207 = vmatpush1.bf16.msra.mxu0 0
    %3208 = vmatprep.subr.bf16.mxu0 0
    %3209 = vmatpush1.bf16.msra.mxu0 0
    %3210 = vmatprep.subr.bf16.mxu0 0
    %3211 = vmatpush1.bf16.msra.mxu0 0
    %3212 = vmatprep.subr.bf16.mxu0 0
    %3213 = vmatpush1.bf16.msra.mxu0 0
    %3214 = vmatprep.subr.bf16.mxu0 0
    %3215 = vmatpush1.bf16.msra.mxu0 0
    %3216 = vmatprep.subr.bf16.mxu0 0
    %3217 = vmatpush1.bf16.msra.mxu0 0
    %3218 = vmatprep.subr.bf16.mxu0 0
    %3219 = vmatpush1.bf16.msra.mxu0 0
    %3220 = vmatprep.subr.bf16.mxu0 0
    %3221 = vmatpush1.bf16.msra.mxu0 0
    %3222 = vmatprep.subr.bf16.mxu0 0
    %3223 = vmatpush1.bf16.msra.mxu0 0
    %3224 = vmatprep.subr.bf16.mxu0 0
    %3225 = vmatpush1.bf16.msra.mxu0 0
    %3226 = vmatprep.subr.bf16.mxu0 0
    %3227 = vmatpush1.bf16.msra.mxu0 0
    %3228 = vmatprep.subr.bf16.mxu0 0
    %3229 = vmatpush1.bf16.msra.mxu0 0
    %3230 = vmatprep.subr.bf16.mxu0 0
    %3231 = vmatpush1.bf16.msra.mxu0 0
    %3232 = vmatprep.mubr.bf16.mxu0 0
    %3233 = vmatmul.mubr.bf16.gmra.mrb[0].mxu0 %v3192
    %v3234 = vpop.f32.mrb[0].mxu0
    %v3235 = vadd.f32 0.0, %v3234
    %v3236 = vpop.f32.mrb[0].mxu0
    %v3237 = vpop.f32.mrb[0].mxu0
    %v3238 = vadd.f32 0.0, %v3237
    %v3239 = vpop.f32.mrb[0].mxu0
    %3240 = vmatprep.mubr.bf16.mxu0 0
    %3241 = vmatmul.mubr.bf16.gmra.mrb[0].mxu0 %v3195
    %v3242 = vpop.f32.mrb[0].mxu0
    %v3243 = vadd.f32 0.0, %v3242
    %v3244 = vpop.f32.mrb[0].mxu0
    %v3245 = vpop.f32.mrb[0].mxu0
    %v3246 = vadd.f32 0.0, %v3245
    %v3247 = vpop.f32.mrb[0].mxu0
    %3248 = vdwg.mxu0
    %v3250 = vlaneseq
    %v3251 = vshrl.u32 %v3250, 7
    %v3252 = vsub.s32 0, %v3251
    %v3253 = vrot.slane %v2739, %v3252
    %v3255 = vadd.f32 %v3253, %v3235
    %v3256 = vadd.f32 %v3253, %v3238
    %v3257 = vadd.f32 %v3253, %v3243
    %v3258 = vadd.f32 %v3253, %v3246
    %3259 = vrot.lane.b32.xlu0 %v2740, 120
    %v3260 = vpop.permute.xlu0 %3259
    %3261 = vrot.lane.b32.xlu0 %v2740, 88
    %v3262 = vpop.permute.xlu0 %3261
    %v3264 = vsel %vm249, %v3260, 0
    %v3267 = vsel %vm249, %v3262, 0
    %3269 = vmatprep.subr.bf16.mxu0 0
    %3270 = vmatpush1.bf16.xpose.msra.mxu0 %v3267
    %3271 = vmatprep.subr.bf16.mxu0 0
    %3272 = vmatpush1.bf16.xpose.msra.mxu0 0
    %3273 = vmatprep.subr.bf16.mxu0 0
    %3274 = vmatpush1.bf16.xpose.msra.mxu0 0
    %3275 = vmatprep.subr.bf16.mxu0 0
    %3276 = vmatpush1.bf16.xpose.msra.mxu0 0
    %3277 = vmatprep.subr.bf16.mxu0 0
    %3278 = vmatpush1.bf16.xpose.msra.mxu0 0
    %3279 = vmatprep.subr.bf16.mxu0 0
    %3280 = vmatpush1.bf16.xpose.msra.mxu0 0
    %3281 = vmatprep.subr.bf16.mxu0 0
    %3282 = vmatpush1.bf16.xpose.msra.mxu0 0
    %3283 = vmatprep.subr.bf16.mxu0 0
    %3284 = vmatpush1.bf16.xpose.msra.mxu0 0
    %3285 = vmatprep.subr.bf16.mxu0 0
    %3286 = vmatpush1.bf16.xpose.msra.mxu0 0
    %3287 = vmatprep.subr.bf16.mxu0 0
    %3288 = vmatpush1.bf16.xpose.msra.mxu0 0
    %3289 = vmatprep.subr.bf16.mxu0 0
    %3290 = vmatpush1.bf16.xpose.msra.mxu0 0
    %3291 = vmatprep.subr.bf16.mxu0 0
    %3292 = vmatpush1.bf16.xpose.msra.mxu0 0
    %3293 = vmatprep.subr.bf16.mxu0 0
    %3294 = vmatpush1.bf16.xpose.msra.mxu0 0
    %3295 = vmatprep.subr.bf16.mxu0 0
    %3296 = vmatpush1.bf16.xpose.msra.mxu0 0
    %3297 = vmatprep.subr.bf16.mxu0 0
    %3298 = vmatpush1.bf16.xpose.msra.mxu0 0
    %3299 = vmatprep.subr.bf16.mxu0 0
    %3300 = vmatpush1.bf16.xpose.msra.mxu0 0
    %3301 = vmatprep.mubr.bf16.mxu0 0
    %3302 = vmatmul.mubr.bf16.gmra.mrb[0].mxu0 %v3264
    %v3303 = vpop.f32.mrb[0].mxu0
    %v3304 = vadd.f32 0.0, %v3303
    %v3305 = vpop.f32.mrb[0].mxu0
    %v3306 = vpop.f32.mrb[0].mxu0
    %v3307 = vpop.f32.mrb[0].mxu0
    %3308 = vdwg.mxu0
    %3309 = vrot.lane.b32.xlu0 %v2741, 120
    %v3310 = vpop.permute.xlu0 %3309
    %3311 = vrot.lane.b32.xlu0 %v2741, 88
    %v3312 = vpop.permute.xlu0 %3311
    %v3314 = vsel %vm249, %v3310, 0
    %v3317 = vsel %vm249, %v3312, 0
    %3319 = vmatprep.subr.bf16.mxu0 0
    %3320 = vmatpush1.bf16.xpose.msra.mxu0 %v3317
    %3321 = vmatprep.subr.bf16.mxu0 0
    %3322 = vmatpush1.bf16.xpose.msra.mxu0 0
    %3323 = vmatprep.subr.bf16.mxu0 0
    %3324 = vmatpush1.bf16.xpose.msra.mxu0 0
    %3325 = vmatprep.subr.bf16.mxu0 0
    %3326 = vmatpush1.bf16.xpose.msra.mxu0 0
    %3327 = vmatprep.subr.bf16.mxu0 0
    %3328 = vmatpush1.bf16.xpose.msra.mxu0 0
    %3329 = vmatprep.subr.bf16.mxu0 0
    %3330 = vmatpush1.bf16.xpose.msra.mxu0 0
    %3331 = vmatprep.subr.bf16.mxu0 0
    %3332 = vmatpush1.bf16.xpose.msra.mxu0 0
    %3333 = vmatprep.subr.bf16.mxu0 0
    %3334 = vmatpush1.bf16.xpose.msra.mxu0 0
    %3335 = vmatprep.subr.bf16.mxu0 0
    %3336 = vmatpush1.bf16.xpose.msra.mxu0 0
    %3337 = vmatprep.subr.bf16.mxu0 0
    %3338 = vmatpush1.bf16.xpose.msra.mxu0 0
    %3339 = vmatprep.subr.bf16.mxu0 0
    %3340 = vmatpush1.bf16.xpose.msra.mxu0 0
    %3341 = vmatprep.subr.bf16.mxu0 0
    %3342 = vmatpush1.bf16.xpose.msra.mxu0 0
    %3343 = vmatprep.subr.bf16.mxu0 0
    %3344 = vmatpush1.bf16.xpose.msra.mxu0 0
    %3345 = vmatprep.subr.bf16.mxu0 0
    %3346 = vmatpush1.bf16.xpose.msra.mxu0 0
    %3347 = vmatprep.subr.bf16.mxu0 0
    %3348 = vmatpush1.bf16.xpose.msra.mxu0 0
    %3349 = vmatprep.subr.bf16.mxu0 0
    %3350 = vmatpush1.bf16.xpose.msra.mxu0 0
    %3351 = vmatprep.mubr.bf16.mxu0 0
    %3352 = vmatmul.mubr.bf16.gmra.mrb[0].mxu0 %v3314
    %v3353 = vpop.f32.mrb[0].mxu0
    %v3354 = vadd.f32 0.0, %v3353
    %v3355 = vpop.f32.mrb[0].mxu0
    %v3356 = vpop.f32.mrb[0].mxu0
    %v3357 = vpop.f32.mrb[0].mxu0
    %3358 = vdwg.mxu0
    %3359 = vrot.lane.b32.xlu0 %v2742, 120
    %v3360 = vpop.permute.xlu0 %3359
    %3361 = vrot.lane.b32.xlu0 %v2742, 88
    %v3362 = vpop.permute.xlu0 %3361
    %v3364 = vsel %vm249, %v3360, 0
    %v3367 = vsel %vm249, %v3362, 0
    %3369 = vmatprep.subr.bf16.mxu0 0
    %3370 = vmatpush1.bf16.xpose.msra.mxu0 %v3367
    %3371 = vmatprep.subr.bf16.mxu0 0
    %3372 = vmatpush1.bf16.xpose.msra.mxu0 0
    %3373 = vmatprep.subr.bf16.mxu0 0
    %3374 = vmatpush1.bf16.xpose.msra.mxu0 0
    %3375 = vmatprep.subr.bf16.mxu0 0
    %3376 = vmatpush1.bf16.xpose.msra.mxu0 0
    %3377 = vmatprep.subr.bf16.mxu0 0
    %3378 = vmatpush1.bf16.xpose.msra.mxu0 0
    %3379 = vmatprep.subr.bf16.mxu0 0
    %3380 = vmatpush1.bf16.xpose.msra.mxu0 0
    %3381 = vmatprep.subr.bf16.mxu0 0
    %3382 = vmatpush1.bf16.xpose.msra.mxu0 0
    %3383 = vmatprep.subr.bf16.mxu0 0
    %3384 = vmatpush1.bf16.xpose.msra.mxu0 0
    %3385 = vmatprep.subr.bf16.mxu0 0
    %3386 = vmatpush1.bf16.xpose.msra.mxu0 0
    %3387 = vmatprep.subr.bf16.mxu0 0
    %3388 = vmatpush1.bf16.xpose.msra.mxu0 0
    %3389 = vmatprep.subr.bf16.mxu0 0
    %3390 = vmatpush1.bf16.xpose.msra.mxu0 0
    %3391 = vmatprep.subr.bf16.mxu0 0
    %3392 = vmatpush1.bf16.xpose.msra.mxu0 0
    %3393 = vmatprep.subr.bf16.mxu0 0
    %3394 = vmatpush1.bf16.xpose.msra.mxu0 0
    %3395 = vmatprep.subr.bf16.mxu0 0
    %3396 = vmatpush1.bf16.xpose.msra.mxu0 0
    %3397 = vmatprep.subr.bf16.mxu0 0
    %3398 = vmatpush1.bf16.xpose.msra.mxu0 0
    %3399 = vmatprep.subr.bf16.mxu0 0
    %3400 = vmatpush1.bf16.xpose.msra.mxu0 0
    %3401 = vmatprep.mubr.bf16.mxu0 0
    %3402 = vmatmul.mubr.bf16.gmra.mrb[0].mxu0 %v3364
    %v3403 = vpop.f32.mrb[0].mxu0
    %v3404 = vadd.f32 0.0, %v3403
    %v3405 = vpop.f32.mrb[0].mxu0
    %v3406 = vpop.f32.mrb[0].mxu0
    %v3407 = vpop.f32.mrb[0].mxu0
    %3408 = vdwg.mxu0
    %3409 = vrot.lane.b32.xlu0 %v2743, 120
    %v3410 = vpop.permute.xlu0 %3409
    %3411 = vrot.lane.b32.xlu0 %v2743, 88
    %v3412 = vpop.permute.xlu0 %3411
    %v3414 = vsel %vm249, %v3410, 0
    %v3417 = vsel %vm249, %v3412, 0
    %3419 = vmatprep.subr.bf16.mxu0 0
    %3420 = vmatpush1.bf16.xpose.msra.mxu0 %v3417
    %3421 = vmatprep.subr.bf16.mxu0 0
    %3422 = vmatpush1.bf16.xpose.msra.mxu0 0
    %3423 = vmatprep.subr.bf16.mxu0 0
    %3424 = vmatpush1.bf16.xpose.msra.mxu0 0
    %3425 = vmatprep.subr.bf16.mxu0 0
    %3426 = vmatpush1.bf16.xpose.msra.mxu0 0
    %3427 = vmatprep.subr.bf16.mxu0 0
    %3428 = vmatpush1.bf16.xpose.msra.mxu0 0
    %3429 = vmatprep.subr.bf16.mxu0 0
    %3430 = vmatpush1.bf16.xpose.msra.mxu0 0
    %3431 = vmatprep.subr.bf16.mxu0 0
    %3432 = vmatpush1.bf16.xpose.msra.mxu0 0
    %3433 = vmatprep.subr.bf16.mxu0 0
    %3434 = vmatpush1.bf16.xpose.msra.mxu0 0
    %3435 = vmatprep.subr.bf16.mxu0 0
    %3436 = vmatpush1.bf16.xpose.msra.mxu0 0
    %3437 = vmatprep.subr.bf16.mxu0 0
    %3438 = vmatpush1.bf16.xpose.msra.mxu0 0
    %3439 = vmatprep.subr.bf16.mxu0 0
    %3440 = vmatpush1.bf16.xpose.msra.mxu0 0
    %3441 = vmatprep.subr.bf16.mxu0 0
    %3442 = vmatpush1.bf16.xpose.msra.mxu0 0
    %3443 = vmatprep.subr.bf16.mxu0 0
    %3444 = vmatpush1.bf16.xpose.msra.mxu0 0
    %3445 = vmatprep.subr.bf16.mxu0 0
    %3446 = vmatpush1.bf16.xpose.msra.mxu0 0
    %3447 = vmatprep.subr.bf16.mxu0 0
    %3448 = vmatpush1.bf16.xpose.msra.mxu0 0
    %3449 = vmatprep.subr.bf16.mxu0 0
    %3450 = vmatpush1.bf16.xpose.msra.mxu0 0
    %3451 = vmatprep.mubr.bf16.mxu0 0
    %3452 = vmatmul.mubr.bf16.gmra.mrb[0].mxu0 %v3414
    %v3453 = vpop.f32.mrb[0].mxu0
    %v3454 = vadd.f32 0.0, %v3453
    %v3455 = vpop.f32.mrb[0].mxu0
    %v3456 = vpop.f32.mrb[0].mxu0
    %v3457 = vpop.f32.mrb[0].mxu0
    %3458 = vdwg.mxu0
    %v3459 = vmul.f32 %v3304, 0.35355338
    %v3460 = vmul.f32 %v3354, 0.35355338
    %v3461 = vmul.f32 %v3404, 0.35355338
    %v3462 = vmul.f32 %v3454, 0.35355338
    %v3463 = vadd.f32 %v3459, %v450
    %v3464 = vadd.f32 %v3460, %v454
    %v3465 = vadd.f32 %v3461, %v458
    %v3466 = vadd.f32 %v3462, %v462
    %v3467 = vsel %vm249, %v3463, -inf
    %3468 = vmax.xlane.f32.xlu0 %v3467
    %v3469 = vpop.xlane.xlu0 %3468
    %v3470 = vsel %vm249, %v3464, -inf
    %3471 = vmax.xlane.f32.xlu0 %v3470
    %v3472 = vpop.xlane.xlu0 %3471
    %v3473 = vsel %vm249, %v3465, -inf
    %3474 = vmax.xlane.f32.xlu0 %v3473
    %v3475 = vpop.xlane.xlu0 %3474
    %v3476 = vsel %vm249, %v3466, -inf
    %3477 = vmax.xlane.f32.xlu0 %v3476
    %v3478 = vpop.xlane.xlu0 %3477
    %v3479 = vsub.f32 %v3463, %v3469
    %v3480 = vsub.f32 %v3464, %v3472
    %v3481 = vsub.f32 %v3465, %v3475
    %v3482 = vsub.f32 %v3466, %v3478
    %v3483 = vmul.f32 %v3479, 1.442695
    %v3484 = vpow.pop %v3483
    %v3485 = vmul.f32 %v3480, 1.442695
    %v3486 = vpow.pop %v3485
    %v3487 = vmul.f32 %v3481, 1.442695
    %v3488 = vpow.pop %v3487
    %v3489 = vmul.f32 %v3482, 1.442695
    %v3490 = vpow.pop %v3489
    %v3491 = vsel %vm249, %v3484, 0.0
    %3492 = vadd.xlane.f32.xlu0 %v3491
    %v3493 = vpop.xlane.xlu0 %3492
    %v3494 = vsel %vm249, %v3486, 0.0
    %3495 = vadd.xlane.f32.xlu0 %v3494
    %v3496 = vpop.xlane.xlu0 %3495
    %v3497 = vsel %vm249, %v3488, 0.0
    %3498 = vadd.xlane.f32.xlu0 %v3497
    %v3499 = vpop.xlane.xlu0 %3498
    %v3500 = vsel %vm249, %v3490, 0.0
    %3501 = vadd.xlane.f32.xlu0 %v3500
    %v3502 = vpop.xlane.xlu0 %3501
    %v3503 = vrcp.pop %v3493
    %v3504 = vrcp.pop %v3496
    %v3505 = vrcp.pop %v3499
    %v3506 = vrcp.pop %v3502
    %v3507 = vmul.f32 %v3484, %v3503
    %v3508 = vmul.f32 %v3486, %v3504
    %v3509 = vmul.f32 %v3488, %v3505
    %v3510 = vmul.f32 %v3490, %v3506
    %v3511 = vpack.c.bf16 %v3507, %v3507
    %v3512 = vpack.c.bf16 %v3508, %v3508
    %v3513 = vpack.c.bf16 %v3509, %v3509
    %v3514 = vpack.c.bf16 %v3510, %v3510
    %3515 = vrot.lane.b32.xlu0 %v2740, 56
    %v3516 = vpop.permute.xlu0 %3515
    %v3518 = vsel %vm249, %v3511, 0
    %v3521 = vsel %vm524, %v3516, 0
    %3523 = vmatprep.subr.bf16.mxu0 0
    %3524 = vmatpush1.bf16.msra.mxu0 %v3521
    %3525 = vmatprep.subr.bf16.mxu0 0
    %3526 = vmatpush1.bf16.msra.mxu0 0
    %3527 = vmatprep.subr.bf16.mxu0 0
    %3528 = vmatpush1.bf16.msra.mxu0 0
    %3529 = vmatprep.subr.bf16.mxu0 0
    %3530 = vmatpush1.bf16.msra.mxu0 0
    %3531 = vmatprep.subr.bf16.mxu0 0
    %3532 = vmatpush1.bf16.msra.mxu0 0
    %3533 = vmatprep.subr.bf16.mxu0 0
    %3534 = vmatpush1.bf16.msra.mxu0 0
    %3535 = vmatprep.subr.bf16.mxu0 0
    %3536 = vmatpush1.bf16.msra.mxu0 0
    %3537 = vmatprep.subr.bf16.mxu0 0
    %3538 = vmatpush1.bf16.msra.mxu0 0
    %3539 = vmatprep.subr.bf16.mxu0 0
    %3540 = vmatpush1.bf16.msra.mxu0 0
    %3541 = vmatprep.subr.bf16.mxu0 0
    %3542 = vmatpush1.bf16.msra.mxu0 0
    %3543 = vmatprep.subr.bf16.mxu0 0
    %3544 = vmatpush1.bf16.msra.mxu0 0
    %3545 = vmatprep.subr.bf16.mxu0 0
    %3546 = vmatpush1.bf16.msra.mxu0 0
    %3547 = vmatprep.subr.bf16.mxu0 0
    %3548 = vmatpush1.bf16.msra.mxu0 0
    %3549 = vmatprep.subr.bf16.mxu0 0
    %3550 = vmatpush1.bf16.msra.mxu0 0
    %3551 = vmatprep.subr.bf16.mxu0 0
    %3552 = vmatpush1.bf16.msra.mxu0 0
    %3553 = vmatprep.subr.bf16.mxu0 0
    %3554 = vmatpush1.bf16.msra.mxu0 0
    %3555 = vmatprep.mubr.bf16.mxu0 0
    %3556 = vmatmul.mubr.bf16.gmra.mrb[0].mxu0 %v3518
    %v3557 = vpop.f32.mrb[0].mxu0
    %v3558 = vadd.f32 0.0, %v3557
    %v3559 = vpop.f32.mrb[0].mxu0
    %v3560 = vpop.f32.mrb[0].mxu0
    %v3561 = vpop.f32.mrb[0].mxu0
    %3562 = vdwg.mxu0
    %3563 = vrot.lane.b32.xlu0 %v2741, 56
    %v3564 = vpop.permute.xlu0 %3563
    %v3566 = vsel %vm249, %v3512, 0
    %v3569 = vsel %vm524, %v3564, 0
    %3571 = vmatprep.subr.bf16.mxu0 0
    %3572 = vmatpush1.bf16.msra.mxu0 %v3569
    %3573 = vmatprep.subr.bf16.mxu0 0
    %3574 = vmatpush1.bf16.msra.mxu0 0
    %3575 = vmatprep.subr.bf16.mxu0 0
    %3576 = vmatpush1.bf16.msra.mxu0 0
    %3577 = vmatprep.subr.bf16.mxu0 0
    %3578 = vmatpush1.bf16.msra.mxu0 0
    %3579 = vmatprep.subr.bf16.mxu0 0
    %3580 = vmatpush1.bf16.msra.mxu0 0
    %3581 = vmatprep.subr.bf16.mxu0 0
    %3582 = vmatpush1.bf16.msra.mxu0 0
    %3583 = vmatprep.subr.bf16.mxu0 0
    %3584 = vmatpush1.bf16.msra.mxu0 0
    %3585 = vmatprep.subr.bf16.mxu0 0
    %3586 = vmatpush1.bf16.msra.mxu0 0
    %3587 = vmatprep.subr.bf16.mxu0 0
    %3588 = vmatpush1.bf16.msra.mxu0 0
    %3589 = vmatprep.subr.bf16.mxu0 0
    %3590 = vmatpush1.bf16.msra.mxu0 0
    %3591 = vmatprep.subr.bf16.mxu0 0
    %3592 = vmatpush1.bf16.msra.mxu0 0
    %3593 = vmatprep.subr.bf16.mxu0 0
    %3594 = vmatpush1.bf16.msra.mxu0 0
    %3595 = vmatprep.subr.bf16.mxu0 0
    %3596 = vmatpush1.bf16.msra.mxu0 0
    %3597 = vmatprep.subr.bf16.mxu0 0
    %3598 = vmatpush1.bf16.msra.mxu0 0
    %3599 = vmatprep.subr.bf16.mxu0 0
    %3600 = vmatpush1.bf16.msra.mxu0 0
    %3601 = vmatprep.subr.bf16.mxu0 0
    %3602 = vmatpush1.bf16.msra.mxu0 0
    %3603 = vmatprep.mubr.bf16.mxu0 0
    %3604 = vmatmul.mubr.bf16.gmra.mrb[0].mxu0 %v3566
    %v3605 = vpop.f32.mrb[0].mxu0
    %v3606 = vadd.f32 0.0, %v3605
    %v3607 = vpop.f32.mrb[0].mxu0
    %v3608 = vpop.f32.mrb[0].mxu0
    %v3609 = vpop.f32.mrb[0].mxu0
    %3610 = vdwg.mxu0
    %3611 = vrot.lane.b32.xlu0 %v2742, 56
    %v3612 = vpop.permute.xlu0 %3611
    %v3614 = vsel %vm249, %v3513, 0
    %v3617 = vsel %vm524, %v3612, 0
    %3619 = vmatprep.subr.bf16.mxu0 0
    %3620 = vmatpush1.bf16.msra.mxu0 %v3617
    %3621 = vmatprep.subr.bf16.mxu0 0
    %3622 = vmatpush1.bf16.msra.mxu0 0
    %3623 = vmatprep.subr.bf16.mxu0 0
    %3624 = vmatpush1.bf16.msra.mxu0 0
    %3625 = vmatprep.subr.bf16.mxu0 0
    %3626 = vmatpush1.bf16.msra.mxu0 0
    %3627 = vmatprep.subr.bf16.mxu0 0
    %3628 = vmatpush1.bf16.msra.mxu0 0
    %3629 = vmatprep.subr.bf16.mxu0 0
    %3630 = vmatpush1.bf16.msra.mxu0 0
    %3631 = vmatprep.subr.bf16.mxu0 0
    %3632 = vmatpush1.bf16.msra.mxu0 0
    %3633 = vmatprep.subr.bf16.mxu0 0
    %3634 = vmatpush1.bf16.msra.mxu0 0
    %3635 = vmatprep.subr.bf16.mxu0 0
    %3636 = vmatpush1.bf16.msra.mxu0 0
    %3637 = vmatprep.subr.bf16.mxu0 0
    %3638 = vmatpush1.bf16.msra.mxu0 0
    %3639 = vmatprep.subr.bf16.mxu0 0
    %3640 = vmatpush1.bf16.msra.mxu0 0
    %3641 = vmatprep.subr.bf16.mxu0 0
    %3642 = vmatpush1.bf16.msra.mxu0 0
    %3643 = vmatprep.subr.bf16.mxu0 0
    %3644 = vmatpush1.bf16.msra.mxu0 0
    %3645 = vmatprep.subr.bf16.mxu0 0
    %3646 = vmatpush1.bf16.msra.mxu0 0
    %3647 = vmatprep.subr.bf16.mxu0 0
    %3648 = vmatpush1.bf16.msra.mxu0 0
    %3649 = vmatprep.subr.bf16.mxu0 0
    %3650 = vmatpush1.bf16.msra.mxu0 0
    %3651 = vmatprep.mubr.bf16.mxu0 0
    %3652 = vmatmul.mubr.bf16.gmra.mrb[0].mxu0 %v3614
    %v3653 = vpop.f32.mrb[0].mxu0
    %v3654 = vadd.f32 0.0, %v3653
    %v3655 = vpop.f32.mrb[0].mxu0
    %v3656 = vpop.f32.mrb[0].mxu0
    %v3657 = vpop.f32.mrb[0].mxu0
    %3658 = vdwg.mxu0
    %3659 = vrot.lane.b32.xlu0 %v2743, 56
    %v3660 = vpop.permute.xlu0 %3659
    %v3662 = vsel %vm249, %v3514, 0
    %v3665 = vsel %vm524, %v3660, 0
    %3667 = vmatprep.subr.bf16.mxu0 0
    %3668 = vmatpush1.bf16.msra.mxu0 %v3665
    %3669 = vmatprep.subr.bf16.mxu0 0
    %3670 = vmatpush1.bf16.msra.mxu0 0
    %3671 = vmatprep.subr.bf16.mxu0 0
    %3672 = vmatpush1.bf16.msra.mxu0 0
    %3673 = vmatprep.subr.bf16.mxu0 0
    %3674 = vmatpush1.bf16.msra.mxu0 0
    %3675 = vmatprep.subr.bf16.mxu0 0
    %3676 = vmatpush1.bf16.msra.mxu0 0
    %3677 = vmatprep.subr.bf16.mxu0 0
    %3678 = vmatpush1.bf16.msra.mxu0 0
    %3679 = vmatprep.subr.bf16.mxu0 0
    %3680 = vmatpush1.bf16.msra.mxu0 0
    %3681 = vmatprep.subr.bf16.mxu0 0
    %3682 = vmatpush1.bf16.msra.mxu0 0
    %3683 = vmatprep.subr.bf16.mxu0 0
    %3684 = vmatpush1.bf16.msra.mxu0 0
    %3685 = vmatprep.subr.bf16.mxu0 0
    %3686 = vmatpush1.bf16.msra.mxu0 0
    %3687 = vmatprep.subr.bf16.mxu0 0
    %3688 = vmatpush1.bf16.msra.mxu0 0
    %3689 = vmatprep.subr.bf16.mxu0 0
    %3690 = vmatpush1.bf16.msra.mxu0 0
    %3691 = vmatprep.subr.bf16.mxu0 0
    %3692 = vmatpush1.bf16.msra.mxu0 0
    %3693 = vmatprep.subr.bf16.mxu0 0
    %3694 = vmatpush1.bf16.msra.mxu0 0
    %3695 = vmatprep.subr.bf16.mxu0 0
    %3696 = vmatpush1.bf16.msra.mxu0 0
    %3697 = vmatprep.subr.bf16.mxu0 0
    %3698 = vmatpush1.bf16.msra.mxu0 0
    %3699 = vmatprep.mubr.bf16.mxu0 0
    %3700 = vmatmul.mubr.bf16.gmra.mrb[0].mxu0 %v3662
    %v3701 = vpop.f32.mrb[0].mxu0
    %v3702 = vadd.f32 0.0, %v3701
    %v3703 = vpop.f32.mrb[0].mxu0
    %v3704 = vpop.f32.mrb[0].mxu0
    %v3705 = vpop.f32.mrb[0].mxu0
    %3706 = vdwg.mxu0
    %v3707 = vpack.c.bf16 %v3606, %v3558
    %v3708 = vpack.c.bf16 %v3702, %v3654
    %v3709 = vpack.c.bf16 %v2735, %v2735
    %v3711 = vsel %vm249, %v3707, 0
    %v3714 = vsel %vm249, %v3708, 0
    %v3717 = vsel %vm524, %v3709, 0
    %3719 = vmatprep.subr.bf16.mxu0 0
    %3720 = vmatpush1.bf16.msra.mxu0 %v3717
    %3721 = vmatprep.subr.bf16.mxu0 0
    %3722 = vmatpush1.bf16.msra.mxu0 0
    %3723 = vmatprep.subr.bf16.mxu0 0
    %3724 = vmatpush1.bf16.msra.mxu0 0
    %3725 = vmatprep.subr.bf16.mxu0 0
    %3726 = vmatpush1.bf16.msra.mxu0 0
    %3727 = vmatprep.subr.bf16.mxu0 0
    %3728 = vmatpush1.bf16.msra.mxu0 0
    %3729 = vmatprep.subr.bf16.mxu0 0
    %3730 = vmatpush1.bf16.msra.mxu0 0
    %3731 = vmatprep.subr.bf16.mxu0 0
    %3732 = vmatpush1.bf16.msra.mxu0 0
    %3733 = vmatprep.subr.bf16.mxu0 0
    %3734 = vmatpush1.bf16.msra.mxu0 0
    %3735 = vmatprep.subr.bf16.mxu0 0
    %3736 = vmatpush1.bf16.msra.mxu0 0
    %3737 = vmatprep.subr.bf16.mxu0 0
    %3738 = vmatpush1.bf16.msra.mxu0 0
    %3739 = vmatprep.subr.bf16.mxu0 0
    %3740 = vmatpush1.bf16.msra.mxu0 0
    %3741 = vmatprep.subr.bf16.mxu0 0
    %3742 = vmatpush1.bf16.msra.mxu0 0
    %3743 = vmatprep.subr.bf16.mxu0 0
    %3744 = vmatpush1.bf16.msra.mxu0 0
    %3745 = vmatprep.subr.bf16.mxu0 0
    %3746 = vmatpush1.bf16.msra.mxu0 0
    %3747 = vmatprep.subr.bf16.mxu0 0
    %3748 = vmatpush1.bf16.msra.mxu0 0
    %3749 = vmatprep.subr.bf16.mxu0 0
    %3750 = vmatpush1.bf16.msra.mxu0 0
    %3751 = vmatprep.mubr.bf16.mxu0 0
    %3752 = vmatmul.mubr.bf16.gmra.mrb[0].mxu0 %v3711
    %v3753 = vpop.f32.mrb[0].mxu0
    %v3754 = vadd.f32 0.0, %v3753
    %v3755 = vpop.f32.mrb[0].mxu0
    %v3756 = vpop.f32.mrb[0].mxu0
    %v3757 = vadd.f32 0.0, %v3756
    %v3758 = vpop.f32.mrb[0].mxu0
    %3759 = vmatprep.mubr.bf16.mxu0 0
    %3760 = vmatmul.mubr.bf16.gmra.mrb[0].mxu0 %v3714
    %v3761 = vpop.f32.mrb[0].mxu0
    %v3762 = vadd.f32 0.0, %v3761
    %v3763 = vpop.f32.mrb[0].mxu0
    %v3764 = vpop.f32.mrb[0].mxu0
    %v3765 = vadd.f32 0.0, %v3764
    %v3766 = vpop.f32.mrb[0].mxu0
    %3767 = vdwg.mxu0
    %v3768 = vadd.f32 %v3255, %v3754
    %v3769 = vadd.f32 %v3256, %v3757
    %v3770 = vadd.f32 %v3257, %v3762
    %v3771 = vadd.f32 %v3258, %v3765
    %3772 = vrot.lane.b32.xlu0 %v2740, 112
    %v3773 = vpop.permute.xlu0 %3772
    %3774 = vrot.lane.b32.xlu0 %v2740, 80
    %v3775 = vpop.permute.xlu0 %3774
    %v3777 = vsel %vm249, %v3773, 0
    %v3780 = vsel %vm249, %v3775, 0
    %3782 = vmatprep.subr.bf16.mxu0 0
    %3783 = vmatpush1.bf16.xpose.msra.mxu0 %v3780
    %3784 = vmatprep.subr.bf16.mxu0 0
    %3785 = vmatpush1.bf16.xpose.msra.mxu0 0
    %3786 = vmatprep.subr.bf16.mxu0 0
    %3787 = vmatpush1.bf16.xpose.msra.mxu0 0
    %3788 = vmatprep.subr.bf16.mxu0 0
    %3789 = vmatpush1.bf16.xpose.msra.mxu0 0
    %3790 = vmatprep.subr.bf16.mxu0 0
    %3791 = vmatpush1.bf16.xpose.msra.mxu0 0
    %3792 = vmatprep.subr.bf16.mxu0 0
    %3793 = vmatpush1.bf16.xpose.msra.mxu0 0
    %3794 = vmatprep.subr.bf16.mxu0 0
    %3795 = vmatpush1.bf16.xpose.msra.mxu0 0
    %3796 = vmatprep.subr.bf16.mxu0 0
    %3797 = vmatpush1.bf16.xpose.msra.mxu0 0
    %3798 = vmatprep.subr.bf16.mxu0 0
    %3799 = vmatpush1.bf16.xpose.msra.mxu0 0
    %3800 = vmatprep.subr.bf16.mxu0 0
    %3801 = vmatpush1.bf16.xpose.msra.mxu0 0
    %3802 = vmatprep.subr.bf16.mxu0 0
    %3803 = vmatpush1.bf16.xpose.msra.mxu0 0
    %3804 = vmatprep.subr.bf16.mxu0 0
    %3805 = vmatpush1.bf16.xpose.msra.mxu0 0
    %3806 = vmatprep.subr.bf16.mxu0 0
    %3807 = vmatpush1.bf16.xpose.msra.mxu0 0
    %3808 = vmatprep.subr.bf16.mxu0 0
    %3809 = vmatpush1.bf16.xpose.msra.mxu0 0
    %3810 = vmatprep.subr.bf16.mxu0 0
    %3811 = vmatpush1.bf16.xpose.msra.mxu0 0
    %3812 = vmatprep.subr.bf16.mxu0 0
    %3813 = vmatpush1.bf16.xpose.msra.mxu0 0
    %3814 = vmatprep.mubr.bf16.mxu0 0
    %3815 = vmatmul.mubr.bf16.gmra.mrb[0].mxu0 %v3777
    %v3816 = vpop.f32.mrb[0].mxu0
    %v3817 = vadd.f32 0.0, %v3816
    %v3818 = vpop.f32.mrb[0].mxu0
    %v3819 = vpop.f32.mrb[0].mxu0
    %v3820 = vpop.f32.mrb[0].mxu0
    %3821 = vdwg.mxu0
    %3822 = vrot.lane.b32.xlu0 %v2741, 112
    %v3823 = vpop.permute.xlu0 %3822
    %3824 = vrot.lane.b32.xlu0 %v2741, 80
    %v3825 = vpop.permute.xlu0 %3824
    %v3827 = vsel %vm249, %v3823, 0
    %v3830 = vsel %vm249, %v3825, 0
    %3832 = vmatprep.subr.bf16.mxu0 0
    %3833 = vmatpush1.bf16.xpose.msra.mxu0 %v3830
    %3834 = vmatprep.subr.bf16.mxu0 0
    %3835 = vmatpush1.bf16.xpose.msra.mxu0 0
    %3836 = vmatprep.subr.bf16.mxu0 0
    %3837 = vmatpush1.bf16.xpose.msra.mxu0 0
    %3838 = vmatprep.subr.bf16.mxu0 0
    %3839 = vmatpush1.bf16.xpose.msra.mxu0 0
    %3840 = vmatprep.subr.bf16.mxu0 0
    %3841 = vmatpush1.bf16.xpose.msra.mxu0 0
    %3842 = vmatprep.subr.bf16.mxu0 0
    %3843 = vmatpush1.bf16.xpose.msra.mxu0 0
    %3844 = vmatprep.subr.bf16.mxu0 0
    %3845 = vmatpush1.bf16.xpose.msra.mxu0 0
    %3846 = vmatprep.subr.bf16.mxu0 0
    %3847 = vmatpush1.bf16.xpose.msra.mxu0 0
    %3848 = vmatprep.subr.bf16.mxu0 0
    %3849 = vmatpush1.bf16.xpose.msra.mxu0 0
    %3850 = vmatprep.subr.bf16.mxu0 0
    %3851 = vmatpush1.bf16.xpose.msra.mxu0 0
    %3852 = vmatprep.subr.bf16.mxu0 0
    %3853 = vmatpush1.bf16.xpose.msra.mxu0 0
    %3854 = vmatprep.subr.bf16.mxu0 0
    %3855 = vmatpush1.bf16.xpose.msra.mxu0 0
    %3856 = vmatprep.subr.bf16.mxu0 0
    %3857 = vmatpush1.bf16.xpose.msra.mxu0 0
    %3858 = vmatprep.subr.bf16.mxu0 0
    %3859 = vmatpush1.bf16.xpose.msra.mxu0 0
    %3860 = vmatprep.subr.bf16.mxu0 0
    %3861 = vmatpush1.bf16.xpose.msra.mxu0 0
    %3862 = vmatprep.subr.bf16.mxu0 0
    %3863 = vmatpush1.bf16.xpose.msra.mxu0 0
    %3864 = vmatprep.mubr.bf16.mxu0 0
    %3865 = vmatmul.mubr.bf16.gmra.mrb[0].mxu0 %v3827
    %v3866 = vpop.f32.mrb[0].mxu0
    %v3867 = vadd.f32 0.0, %v3866
    %v3868 = vpop.f32.mrb[0].mxu0
    %v3869 = vpop.f32.mrb[0].mxu0
    %v3870 = vpop.f32.mrb[0].mxu0
    %3871 = vdwg.mxu0
    %3872 = vrot.lane.b32.xlu0 %v2742, 112
    %v3873 = vpop.permute.xlu0 %3872
    %3874 = vrot.lane.b32.xlu0 %v2742, 80
    %v3875 = vpop.permute.xlu0 %3874
    %v3877 = vsel %vm249, %v3873, 0
    %v3880 = vsel %vm249, %v3875, 0
    %3882 = vmatprep.subr.bf16.mxu0 0
    %3883 = vmatpush1.bf16.xpose.msra.mxu0 %v3880
    %3884 = vmatprep.subr.bf16.mxu0 0
    %3885 = vmatpush1.bf16.xpose.msra.mxu0 0
    %3886 = vmatprep.subr.bf16.mxu0 0
    %3887 = vmatpush1.bf16.xpose.msra.mxu0 0
    %3888 = vmatprep.subr.bf16.mxu0 0
    %3889 = vmatpush1.bf16.xpose.msra.mxu0 0
    %3890 = vmatprep.subr.bf16.mxu0 0
    %3891 = vmatpush1.bf16.xpose.msra.mxu0 0
    %3892 = vmatprep.subr.bf16.mxu0 0
    %3893 = vmatpush1.bf16.xpose.msra.mxu0 0
    %3894 = vmatprep.subr.bf16.mxu0 0
    %3895 = vmatpush1.bf16.xpose.msra.mxu0 0
    %3896 = vmatprep.subr.bf16.mxu0 0
    %3897 = vmatpush1.bf16.xpose.msra.mxu0 0
    %3898 = vmatprep.subr.bf16.mxu0 0
    %3899 = vmatpush1.bf16.xpose.msra.mxu0 0
    %3900 = vmatprep.subr.bf16.mxu0 0
    %3901 = vmatpush1.bf16.xpose.msra.mxu0 0
    %3902 = vmatprep.subr.bf16.mxu0 0
    %3903 = vmatpush1.bf16.xpose.msra.mxu0 0
    %3904 = vmatprep.subr.bf16.mxu0 0
    %3905 = vmatpush1.bf16.xpose.msra.mxu0 0
    %3906 = vmatprep.subr.bf16.mxu0 0
    %3907 = vmatpush1.bf16.xpose.msra.mxu0 0
    %3908 = vmatprep.subr.bf16.mxu0 0
    %3909 = vmatpush1.bf16.xpose.msra.mxu0 0
    %3910 = vmatprep.subr.bf16.mxu0 0
    %3911 = vmatpush1.bf16.xpose.msra.mxu0 0
    %3912 = vmatprep.subr.bf16.mxu0 0
    %3913 = vmatpush1.bf16.xpose.msra.mxu0 0
    %3914 = vmatprep.mubr.bf16.mxu0 0
    %3915 = vmatmul.mubr.bf16.gmra.mrb[0].mxu0 %v3877
    %v3916 = vpop.f32.mrb[0].mxu0
    %v3917 = vadd.f32 0.0, %v3916
    %v3918 = vpop.f32.mrb[0].mxu0
    %v3919 = vpop.f32.mrb[0].mxu0
    %v3920 = vpop.f32.mrb[0].mxu0
    %3921 = vdwg.mxu0
    %3922 = vrot.lane.b32.xlu0 %v2743, 112
    %v3923 = vpop.permute.xlu0 %3922
    %3924 = vrot.lane.b32.xlu0 %v2743, 80
    %v3925 = vpop.permute.xlu0 %3924
    %v3927 = vsel %vm249, %v3923, 0
    %v3930 = vsel %vm249, %v3925, 0
    %3932 = vmatprep.subr.bf16.mxu0 0
    %3933 = vmatpush1.bf16.xpose.msra.mxu0 %v3930
    %3934 = vmatprep.subr.bf16.mxu0 0
    %3935 = vmatpush1.bf16.xpose.msra.mxu0 0
    %3936 = vmatprep.subr.bf16.mxu0 0
    %3937 = vmatpush1.bf16.xpose.msra.mxu0 0
    %3938 = vmatprep.subr.bf16.mxu0 0
    %3939 = vmatpush1.bf16.xpose.msra.mxu0 0
    %3940 = vmatprep.subr.bf16.mxu0 0
    %3941 = vmatpush1.bf16.xpose.msra.mxu0 0
    %3942 = vmatprep.subr.bf16.mxu0 0
    %3943 = vmatpush1.bf16.xpose.msra.mxu0 0
    %3944 = vmatprep.subr.bf16.mxu0 0
    %3945 = vmatpush1.bf16.xpose.msra.mxu0 0
    %3946 = vmatprep.subr.bf16.mxu0 0
    %3947 = vmatpush1.bf16.xpose.msra.mxu0 0
    %3948 = vmatprep.subr.bf16.mxu0 0
    %3949 = vmatpush1.bf16.xpose.msra.mxu0 0
    %3950 = vmatprep.subr.bf16.mxu0 0
    %3951 = vmatpush1.bf16.xpose.msra.mxu0 0
    %3952 = vmatprep.subr.bf16.mxu0 0
    %3953 = vmatpush1.bf16.xpose.msra.mxu0 0
    %3954 = vmatprep.subr.bf16.mxu0 0
    %3955 = vmatpush1.bf16.xpose.msra.mxu0 0
    %3956 = vmatprep.subr.bf16.mxu0 0
    %3957 = vmatpush1.bf16.xpose.msra.mxu0 0
    %3958 = vmatprep.subr.bf16.mxu0 0
    %3959 = vmatpush1.bf16.xpose.msra.mxu0 0
    %3960 = vmatprep.subr.bf16.mxu0 0
    %3961 = vmatpush1.bf16.xpose.msra.mxu0 0
    %3962 = vmatprep.subr.bf16.mxu0 0
    %3963 = vmatpush1.bf16.xpose.msra.mxu0 0
    %3964 = vmatprep.mubr.bf16.mxu0 0
    %3965 = vmatmul.mubr.bf16.gmra.mrb[0].mxu0 %v3927
    %v3966 = vpop.f32.mrb[0].mxu0
    %v3967 = vadd.f32 0.0, %v3966
    %v3968 = vpop.f32.mrb[0].mxu0
    %v3969 = vpop.f32.mrb[0].mxu0
    %v3970 = vpop.f32.mrb[0].mxu0
    %3971 = vdwg.mxu0
    %v3972 = vmul.f32 %v3817, 0.35355338
    %v3973 = vmul.f32 %v3867, 0.35355338
    %v3974 = vmul.f32 %v3917, 0.35355338
    %v3975 = vmul.f32 %v3967, 0.35355338
    %v3976 = vadd.f32 %v3972, %v450
    %v3977 = vadd.f32 %v3973, %v454
    %v3978 = vadd.f32 %v3974, %v458
    %v3979 = vadd.f32 %v3975, %v462
    %v3980 = vsel %vm249, %v3976, -inf
    %3981 = vmax.xlane.f32.xlu0 %v3980
    %v3982 = vpop.xlane.xlu0 %3981
    %v3983 = vsel %vm249, %v3977, -inf
    %3984 = vmax.xlane.f32.xlu0 %v3983
    %v3985 = vpop.xlane.xlu0 %3984
    %v3986 = vsel %vm249, %v3978, -inf
    %3987 = vmax.xlane.f32.xlu0 %v3986
    %v3988 = vpop.xlane.xlu0 %3987
    %v3989 = vsel %vm249, %v3979, -inf
    %3990 = vmax.xlane.f32.xlu0 %v3989
    %v3991 = vpop.xlane.xlu0 %3990
    %v3992 = vsub.f32 %v3976, %v3982
    %v3993 = vsub.f32 %v3977, %v3985
    %v3994 = vsub.f32 %v3978, %v3988
    %v3995 = vsub.f32 %v3979, %v3991
    %v3996 = vmul.f32 %v3992, 1.442695
    %v3997 = vpow.pop %v3996
    %v3998 = vmul.f32 %v3993, 1.442695
    %v3999 = vpow.pop %v3998
    %v4000 = vmul.f32 %v3994, 1.442695
    %v4001 = vpow.pop %v4000
    %v4002 = vmul.f32 %v3995, 1.442695
    %v4003 = vpow.pop %v4002
    %v4004 = vsel %vm249, %v3997, 0.0
    %4005 = vadd.xlane.f32.xlu0 %v4004
    %v4006 = vpop.xlane.xlu0 %4005
    %v4007 = vsel %vm249, %v3999, 0.0
    %4008 = vadd.xlane.f32.xlu0 %v4007
    %v4009 = vpop.xlane.xlu0 %4008
    %v4010 = vsel %vm249, %v4001, 0.0
    %4011 = vadd.xlane.f32.xlu0 %v4010
    %v4012 = vpop.xlane.xlu0 %4011
    %v4013 = vsel %vm249, %v4003, 0.0
    %4014 = vadd.xlane.f32.xlu0 %v4013
    %v4015 = vpop.xlane.xlu0 %4014
    %v4016 = vrcp.pop %v4006
    %v4017 = vrcp.pop %v4009
    %v4018 = vrcp.pop %v4012
    %v4019 = vrcp.pop %v4015
    %v4020 = vmul.f32 %v3997, %v4016
    %v4021 = vmul.f32 %v3999, %v4017
    %v4022 = vmul.f32 %v4001, %v4018
    %v4023 = vmul.f32 %v4003, %v4019
    %v4024 = vpack.c.bf16 %v4020, %v4020
    %v4025 = vpack.c.bf16 %v4021, %v4021
    %v4026 = vpack.c.bf16 %v4022, %v4022
    %v4027 = vpack.c.bf16 %v4023, %v4023
    %4028 = vrot.lane.b32.xlu0 %v2740, 48
    %v4029 = vpop.permute.xlu0 %4028
    %v4031 = vsel %vm249, %v4024, 0
    %v4034 = vsel %vm524, %v4029, 0
    %4036 = vmatprep.subr.bf16.mxu0 0
    %4037 = vmatpush1.bf16.msra.mxu0 %v4034
    %4038 = vmatprep.subr.bf16.mxu0 0
    %4039 = vmatpush1.bf16.msra.mxu0 0
    %4040 = vmatprep.subr.bf16.mxu0 0
    %4041 = vmatpush1.bf16.msra.mxu0 0
    %4042 = vmatprep.subr.bf16.mxu0 0
    %4043 = vmatpush1.bf16.msra.mxu0 0
    %4044 = vmatprep.subr.bf16.mxu0 0
    %4045 = vmatpush1.bf16.msra.mxu0 0
    %4046 = vmatprep.subr.bf16.mxu0 0
    %4047 = vmatpush1.bf16.msra.mxu0 0
    %4048 = vmatprep.subr.bf16.mxu0 0
    %4049 = vmatpush1.bf16.msra.mxu0 0
    %4050 = vmatprep.subr.bf16.mxu0 0
    %4051 = vmatpush1.bf16.msra.mxu0 0
    %4052 = vmatprep.subr.bf16.mxu0 0
    %4053 = vmatpush1.bf16.msra.mxu0 0
    %4054 = vmatprep.subr.bf16.mxu0 0
    %4055 = vmatpush1.bf16.msra.mxu0 0
    %4056 = vmatprep.subr.bf16.mxu0 0
    %4057 = vmatpush1.bf16.msra.mxu0 0
    %4058 = vmatprep.subr.bf16.mxu0 0
    %4059 = vmatpush1.bf16.msra.mxu0 0
    %4060 = vmatprep.subr.bf16.mxu0 0
    %4061 = vmatpush1.bf16.msra.mxu0 0
    %4062 = vmatprep.subr.bf16.mxu0 0
    %4063 = vmatpush1.bf16.msra.mxu0 0
    %4064 = vmatprep.subr.bf16.mxu0 0
    %4065 = vmatpush1.bf16.msra.mxu0 0
    %4066 = vmatprep.subr.bf16.mxu0 0
    %4067 = vmatpush1.bf16.msra.mxu0 0
    %4068 = vmatprep.mubr.bf16.mxu0 0
    %4069 = vmatmul.mubr.bf16.gmra.mrb[0].mxu0 %v4031
    %v4070 = vpop.f32.mrb[0].mxu0
    %v4071 = vadd.f32 0.0, %v4070
    %v4072 = vpop.f32.mrb[0].mxu0
    %v4073 = vpop.f32.mrb[0].mxu0
    %v4074 = vpop.f32.mrb[0].mxu0
    %4075 = vdwg.mxu0
    %4076 = vrot.lane.b32.xlu0 %v2741, 48
    %v4077 = vpop.permute.xlu0 %4076
    %v4079 = vsel %vm249, %v4025, 0
    %v4082 = vsel %vm524, %v4077, 0
    %4084 = vmatprep.subr.bf16.mxu0 0
    %4085 = vmatpush1.bf16.msra.mxu0 %v4082
    %4086 = vmatprep.subr.bf16.mxu0 0
    %4087 = vmatpush1.bf16.msra.mxu0 0
    %4088 = vmatprep.subr.bf16.mxu0 0
    %4089 = vmatpush1.bf16.msra.mxu0 0
    %4090 = vmatprep.subr.bf16.mxu0 0
    %4091 = vmatpush1.bf16.msra.mxu0 0
    %4092 = vmatprep.subr.bf16.mxu0 0
    %4093 = vmatpush1.bf16.msra.mxu0 0
    %4094 = vmatprep.subr.bf16.mxu0 0
    %4095 = vmatpush1.bf16.msra.mxu0 0
    %4096 = vmatprep.subr.bf16.mxu0 0
    %4097 = vmatpush1.bf16.msra.mxu0 0
    %4098 = vmatprep.subr.bf16.mxu0 0
    %4099 = vmatpush1.bf16.msra.mxu0 0
    %4100 = vmatprep.subr.bf16.mxu0 0
    %4101 = vmatpush1.bf16.msra.mxu0 0
    %4102 = vmatprep.subr.bf16.mxu0 0
    %4103 = vmatpush1.bf16.msra.mxu0 0
    %4104 = vmatprep.subr.bf16.mxu0 0
    %4105 = vmatpush1.bf16.msra.mxu0 0
    %4106 = vmatprep.subr.bf16.mxu0 0
    %4107 = vmatpush1.bf16.msra.mxu0 0
    %4108 = vmatprep.subr.bf16.mxu0 0
    %4109 = vmatpush1.bf16.msra.mxu0 0
    %4110 = vmatprep.subr.bf16.mxu0 0
    %4111 = vmatpush1.bf16.msra.mxu0 0
    %4112 = vmatprep.subr.bf16.mxu0 0
    %4113 = vmatpush1.bf16.msra.mxu0 0
    %4114 = vmatprep.subr.bf16.mxu0 0
    %4115 = vmatpush1.bf16.msra.mxu0 0
    %4116 = vmatprep.mubr.bf16.mxu0 0
    %4117 = vmatmul.mubr.bf16.gmra.mrb[0].mxu0 %v4079
    %v4118 = vpop.f32.mrb[0].mxu0
    %v4119 = vadd.f32 0.0, %v4118
    %v4120 = vpop.f32.mrb[0].mxu0
    %v4121 = vpop.f32.mrb[0].mxu0
    %v4122 = vpop.f32.mrb[0].mxu0
    %4123 = vdwg.mxu0
    %4124 = vrot.lane.b32.xlu0 %v2742, 48
    %v4125 = vpop.permute.xlu0 %4124
    %v4127 = vsel %vm249, %v4026, 0
    %v4130 = vsel %vm524, %v4125, 0
    %4132 = vmatprep.subr.bf16.mxu0 0
    %4133 = vmatpush1.bf16.msra.mxu0 %v4130
    %4134 = vmatprep.subr.bf16.mxu0 0
    %4135 = vmatpush1.bf16.msra.mxu0 0
    %4136 = vmatprep.subr.bf16.mxu0 0
    %4137 = vmatpush1.bf16.msra.mxu0 0
    %4138 = vmatprep.subr.bf16.mxu0 0
    %4139 = vmatpush1.bf16.msra.mxu0 0
    %4140 = vmatprep.subr.bf16.mxu0 0
    %4141 = vmatpush1.bf16.msra.mxu0 0
    %4142 = vmatprep.subr.bf16.mxu0 0
    %4143 = vmatpush1.bf16.msra.mxu0 0
    %4144 = vmatprep.subr.bf16.mxu0 0
    %4145 = vmatpush1.bf16.msra.mxu0 0
    %4146 = vmatprep.subr.bf16.mxu0 0
    %4147 = vmatpush1.bf16.msra.mxu0 0
    %4148 = vmatprep.subr.bf16.mxu0 0
    %4149 = vmatpush1.bf16.msra.mxu0 0
    %4150 = vmatprep.subr.bf16.mxu0 0
    %4151 = vmatpush1.bf16.msra.mxu0 0
    %4152 = vmatprep.subr.bf16.mxu0 0
    %4153 = vmatpush1.bf16.msra.mxu0 0
    %4154 = vmatprep.subr.bf16.mxu0 0
    %4155 = vmatpush1.bf16.msra.mxu0 0
    %4156 = vmatprep.subr.bf16.mxu0 0
    %4157 = vmatpush1.bf16.msra.mxu0 0
    %4158 = vmatprep.subr.bf16.mxu0 0
    %4159 = vmatpush1.bf16.msra.mxu0 0
    %4160 = vmatprep.subr.bf16.mxu0 0
    %4161 = vmatpush1.bf16.msra.mxu0 0
    %4162 = vmatprep.subr.bf16.mxu0 0
    %4163 = vmatpush1.bf16.msra.mxu0 0
    %4164 = vmatprep.mubr.bf16.mxu0 0
    %4165 = vmatmul.mubr.bf16.gmra.mrb[0].mxu0 %v4127
    %v4166 = vpop.f32.mrb[0].mxu0
    %v4167 = vadd.f32 0.0, %v4166
    %v4168 = vpop.f32.mrb[0].mxu0
    %v4169 = vpop.f32.mrb[0].mxu0
    %v4170 = vpop.f32.mrb[0].mxu0
    %4171 = vdwg.mxu0
    %4172 = vrot.lane.b32.xlu0 %v2743, 48
    %v4173 = vpop.permute.xlu0 %4172
    %v4175 = vsel %vm249, %v4027, 0
    %v4178 = vsel %vm524, %v4173, 0
    %4180 = vmatprep.subr.bf16.mxu0 0
    %4181 = vmatpush1.bf16.msra.mxu0 %v4178
    %4182 = vmatprep.subr.bf16.mxu0 0
    %4183 = vmatpush1.bf16.msra.mxu0 0
    %4184 = vmatprep.subr.bf16.mxu0 0
    %4185 = vmatpush1.bf16.msra.mxu0 0
    %4186 = vmatprep.subr.bf16.mxu0 0
    %4187 = vmatpush1.bf16.msra.mxu0 0
    %4188 = vmatprep.subr.bf16.mxu0 0
    %4189 = vmatpush1.bf16.msra.mxu0 0
    %4190 = vmatprep.subr.bf16.mxu0 0
    %4191 = vmatpush1.bf16.msra.mxu0 0
    %4192 = vmatprep.subr.bf16.mxu0 0
    %4193 = vmatpush1.bf16.msra.mxu0 0
    %4194 = vmatprep.subr.bf16.mxu0 0
    %4195 = vmatpush1.bf16.msra.mxu0 0
    %4196 = vmatprep.subr.bf16.mxu0 0
    %4197 = vmatpush1.bf16.msra.mxu0 0
    %4198 = vmatprep.subr.bf16.mxu0 0
    %4199 = vmatpush1.bf16.msra.mxu0 0
    %4200 = vmatprep.subr.bf16.mxu0 0
    %4201 = vmatpush1.bf16.msra.mxu0 0
    %4202 = vmatprep.subr.bf16.mxu0 0
    %4203 = vmatpush1.bf16.msra.mxu0 0
    %4204 = vmatprep.subr.bf16.mxu0 0
    %4205 = vmatpush1.bf16.msra.mxu0 0
    %4206 = vmatprep.subr.bf16.mxu0 0
    %4207 = vmatpush1.bf16.msra.mxu0 0
    %4208 = vmatprep.subr.bf16.mxu0 0
    %4209 = vmatpush1.bf16.msra.mxu0 0
    %4210 = vmatprep.subr.bf16.mxu0 0
    %4211 = vmatpush1.bf16.msra.mxu0 0
    %4212 = vmatprep.mubr.bf16.mxu0 0
    %4213 = vmatmul.mubr.bf16.gmra.mrb[0].mxu0 %v4175
    %v4214 = vpop.f32.mrb[0].mxu0
    %v4215 = vadd.f32 0.0, %v4214
    %v4216 = vpop.f32.mrb[0].mxu0
    %v4217 = vpop.f32.mrb[0].mxu0
    %v4218 = vpop.f32.mrb[0].mxu0
    %4219 = vdwg.mxu0
    %v4220 = vpack.c.bf16 %v4119, %v4071
    %v4221 = vpack.c.bf16 %v4215, %v4167
    %v4222 = vpack.c.bf16 %v2736, %v2736
    %v4224 = vsel %vm249, %v4220, 0
    %v4227 = vsel %vm249, %v4221, 0
    %v4230 = vsel %vm524, %v4222, 0
    %4232 = vmatprep.subr.bf16.mxu0 0
    %4233 = vmatpush1.bf16.msra.mxu0 %v4230
    %4234 = vmatprep.subr.bf16.mxu0 0
    %4235 = vmatpush1.bf16.msra.mxu0 0
    %4236 = vmatprep.subr.bf16.mxu0 0
    %4237 = vmatpush1.bf16.msra.mxu0 0
    %4238 = vmatprep.subr.bf16.mxu0 0
    %4239 = vmatpush1.bf16.msra.mxu0 0
    %4240 = vmatprep.subr.bf16.mxu0 0
    %4241 = vmatpush1.bf16.msra.mxu0 0
    %4242 = vmatprep.subr.bf16.mxu0 0
    %4243 = vmatpush1.bf16.msra.mxu0 0
    %4244 = vmatprep.subr.bf16.mxu0 0
    %4245 = vmatpush1.bf16.msra.mxu0 0
    %4246 = vmatprep.subr.bf16.mxu0 0
    %4247 = vmatpush1.bf16.msra.mxu0 0
    %4248 = vmatprep.subr.bf16.mxu0 0
    %4249 = vmatpush1.bf16.msra.mxu0 0
    %4250 = vmatprep.subr.bf16.mxu0 0
    %4251 = vmatpush1.bf16.msra.mxu0 0
    %4252 = vmatprep.subr.bf16.mxu0 0
    %4253 = vmatpush1.bf16.msra.mxu0 0
    %4254 = vmatprep.subr.bf16.mxu0 0
    %4255 = vmatpush1.bf16.msra.mxu0 0
    %4256 = vmatprep.subr.bf16.mxu0 0
    %4257 = vmatpush1.bf16.msra.mxu0 0
    %4258 = vmatprep.subr.bf16.mxu0 0
    %4259 = vmatpush1.bf16.msra.mxu0 0
    %4260 = vmatprep.subr.bf16.mxu0 0
    %4261 = vmatpush1.bf16.msra.mxu0 0
    %4262 = vmatprep.subr.bf16.mxu0 0
    %4263 = vmatpush1.bf16.msra.mxu0 0
    %4264 = vmatprep.mubr.bf16.mxu0 0
    %4265 = vmatmul.mubr.bf16.gmra.mrb[0].mxu0 %v4224
    %v4266 = vpop.f32.mrb[0].mxu0
    %v4267 = vadd.f32 0.0, %v4266
    %v4268 = vpop.f32.mrb[0].mxu0
    %v4269 = vpop.f32.mrb[0].mxu0
    %v4270 = vadd.f32 0.0, %v4269
    %v4271 = vpop.f32.mrb[0].mxu0
    %4272 = vmatprep.mubr.bf16.mxu0 0
    %4273 = vmatmul.mubr.bf16.gmra.mrb[0].mxu0 %v4227
    %v4274 = vpop.f32.mrb[0].mxu0
    %v4275 = vadd.f32 0.0, %v4274
    %v4276 = vpop.f32.mrb[0].mxu0
    %v4277 = vpop.f32.mrb[0].mxu0
    %v4278 = vadd.f32 0.0, %v4277
    %v4279 = vpop.f32.mrb[0].mxu0
    %4280 = vdwg.mxu0
    %v4281 = vadd.f32 %v3768, %v4267
    %v4282 = vadd.f32 %v3769, %v4270
    %v4283 = vadd.f32 %v3770, %v4275
    %v4284 = vadd.f32 %v3771, %v4278
    %4285 = vrot.lane.b32.xlu0 %v2740, 104
    %v4286 = vpop.permute.xlu0 %4285
    %4287 = vrot.lane.b32.xlu0 %v2740, 72
    %v4288 = vpop.permute.xlu0 %4287
    %v4290 = vsel %vm249, %v4286, 0
    %v4293 = vsel %vm249, %v4288, 0
    %4295 = vmatprep.subr.bf16.mxu0 0
    %4296 = vmatpush1.bf16.xpose.msra.mxu0 %v4293
    %4297 = vmatprep.subr.bf16.mxu0 0
    %4298 = vmatpush1.bf16.xpose.msra.mxu0 0
    %4299 = vmatprep.subr.bf16.mxu0 0
    %4300 = vmatpush1.bf16.xpose.msra.mxu0 0
    %4301 = vmatprep.subr.bf16.mxu0 0
    %4302 = vmatpush1.bf16.xpose.msra.mxu0 0
    %4303 = vmatprep.subr.bf16.mxu0 0
    %4304 = vmatpush1.bf16.xpose.msra.mxu0 0
    %4305 = vmatprep.subr.bf16.mxu0 0
    %4306 = vmatpush1.bf16.xpose.msra.mxu0 0
    %4307 = vmatprep.subr.bf16.mxu0 0
    %4308 = vmatpush1.bf16.xpose.msra.mxu0 0
    %4309 = vmatprep.subr.bf16.mxu0 0
    %4310 = vmatpush1.bf16.xpose.msra.mxu0 0
    %4311 = vmatprep.subr.bf16.mxu0 0
    %4312 = vmatpush1.bf16.xpose.msra.mxu0 0
    %4313 = vmatprep.subr.bf16.mxu0 0
    %4314 = vmatpush1.bf16.xpose.msra.mxu0 0
    %4315 = vmatprep.subr.bf16.mxu0 0
    %4316 = vmatpush1.bf16.xpose.msra.mxu0 0
    %4317 = vmatprep.subr.bf16.mxu0 0
    %4318 = vmatpush1.bf16.xpose.msra.mxu0 0
    %4319 = vmatprep.subr.bf16.mxu0 0
    %4320 = vmatpush1.bf16.xpose.msra.mxu0 0
    %4321 = vmatprep.subr.bf16.mxu0 0
    %4322 = vmatpush1.bf16.xpose.msra.mxu0 0
    %4323 = vmatprep.subr.bf16.mxu0 0
    %4324 = vmatpush1.bf16.xpose.msra.mxu0 0
    %4325 = vmatprep.subr.bf16.mxu0 0
    %4326 = vmatpush1.bf16.xpose.msra.mxu0 0
    %4327 = vmatprep.mubr.bf16.mxu0 0
    %4328 = vmatmul.mubr.bf16.gmra.mrb[0].mxu0 %v4290
    %v4329 = vpop.f32.mrb[0].mxu0
    %v4330 = vadd.f32 0.0, %v4329
    %v4331 = vpop.f32.mrb[0].mxu0
    %v4332 = vpop.f32.mrb[0].mxu0
    %v4333 = vpop.f32.mrb[0].mxu0
    %4334 = vdwg.mxu0
    %4335 = vrot.lane.b32.xlu0 %v2741, 104
    %v4336 = vpop.permute.xlu0 %4335
    %4337 = vrot.lane.b32.xlu0 %v2741, 72
    %v4338 = vpop.permute.xlu0 %4337
    %v4340 = vsel %vm249, %v4336, 0
    %v4343 = vsel %vm249, %v4338, 0
    %4345 = vmatprep.subr.bf16.mxu0 0
    %4346 = vmatpush1.bf16.xpose.msra.mxu0 %v4343
    %4347 = vmatprep.subr.bf16.mxu0 0
    %4348 = vmatpush1.bf16.xpose.msra.mxu0 0
    %4349 = vmatprep.subr.bf16.mxu0 0
    %4350 = vmatpush1.bf16.xpose.msra.mxu0 0
    %4351 = vmatprep.subr.bf16.mxu0 0
    %4352 = vmatpush1.bf16.xpose.msra.mxu0 0
    %4353 = vmatprep.subr.bf16.mxu0 0
    %4354 = vmatpush1.bf16.xpose.msra.mxu0 0
    %4355 = vmatprep.subr.bf16.mxu0 0
    %4356 = vmatpush1.bf16.xpose.msra.mxu0 0
    %4357 = vmatprep.subr.bf16.mxu0 0
    %4358 = vmatpush1.bf16.xpose.msra.mxu0 0
    %4359 = vmatprep.subr.bf16.mxu0 0
    %4360 = vmatpush1.bf16.xpose.msra.mxu0 0
    %4361 = vmatprep.subr.bf16.mxu0 0
    %4362 = vmatpush1.bf16.xpose.msra.mxu0 0
    %4363 = vmatprep.subr.bf16.mxu0 0
    %4364 = vmatpush1.bf16.xpose.msra.mxu0 0
    %4365 = vmatprep.subr.bf16.mxu0 0
    %4366 = vmatpush1.bf16.xpose.msra.mxu0 0
    %4367 = vmatprep.subr.bf16.mxu0 0
    %4368 = vmatpush1.bf16.xpose.msra.mxu0 0
    %4369 = vmatprep.subr.bf16.mxu0 0
    %4370 = vmatpush1.bf16.xpose.msra.mxu0 0
    %4371 = vmatprep.subr.bf16.mxu0 0
    %4372 = vmatpush1.bf16.xpose.msra.mxu0 0
    %4373 = vmatprep.subr.bf16.mxu0 0
    %4374 = vmatpush1.bf16.xpose.msra.mxu0 0
    %4375 = vmatprep.subr.bf16.mxu0 0
    %4376 = vmatpush1.bf16.xpose.msra.mxu0 0
    %4377 = vmatprep.mubr.bf16.mxu0 0
    %4378 = vmatmul.mubr.bf16.gmra.mrb[0].mxu0 %v4340
    %v4379 = vpop.f32.mrb[0].mxu0
    %v4380 = vadd.f32 0.0, %v4379
    %v4381 = vpop.f32.mrb[0].mxu0
    %v4382 = vpop.f32.mrb[0].mxu0
    %v4383 = vpop.f32.mrb[0].mxu0
    %4384 = vdwg.mxu0
    %4385 = vrot.lane.b32.xlu0 %v2742, 104
    %v4386 = vpop.permute.xlu0 %4385
    %4387 = vrot.lane.b32.xlu0 %v2742, 72
    %v4388 = vpop.permute.xlu0 %4387
    %v4390 = vsel %vm249, %v4386, 0
    %v4393 = vsel %vm249, %v4388, 0
    %4395 = vmatprep.subr.bf16.mxu0 0
    %4396 = vmatpush1.bf16.xpose.msra.mxu0 %v4393
    %4397 = vmatprep.subr.bf16.mxu0 0
    %4398 = vmatpush1.bf16.xpose.msra.mxu0 0
    %4399 = vmatprep.subr.bf16.mxu0 0
    %4400 = vmatpush1.bf16.xpose.msra.mxu0 0
    %4401 = vmatprep.subr.bf16.mxu0 0
    %4402 = vmatpush1.bf16.xpose.msra.mxu0 0
    %4403 = vmatprep.subr.bf16.mxu0 0
    %4404 = vmatpush1.bf16.xpose.msra.mxu0 0
    %4405 = vmatprep.subr.bf16.mxu0 0
    %4406 = vmatpush1.bf16.xpose.msra.mxu0 0
    %4407 = vmatprep.subr.bf16.mxu0 0
    %4408 = vmatpush1.bf16.xpose.msra.mxu0 0
    %4409 = vmatprep.subr.bf16.mxu0 0
    %4410 = vmatpush1.bf16.xpose.msra.mxu0 0
    %4411 = vmatprep.subr.bf16.mxu0 0
    %4412 = vmatpush1.bf16.xpose.msra.mxu0 0
    %4413 = vmatprep.subr.bf16.mxu0 0
    %4414 = vmatpush1.bf16.xpose.msra.mxu0 0
    %4415 = vmatprep.subr.bf16.mxu0 0
    %4416 = vmatpush1.bf16.xpose.msra.mxu0 0
    %4417 = vmatprep.subr.bf16.mxu0 0
    %4418 = vmatpush1.bf16.xpose.msra.mxu0 0
    %4419 = vmatprep.subr.bf16.mxu0 0
    %4420 = vmatpush1.bf16.xpose.msra.mxu0 0
    %4421 = vmatprep.subr.bf16.mxu0 0
    %4422 = vmatpush1.bf16.xpose.msra.mxu0 0
    %4423 = vmatprep.subr.bf16.mxu0 0
    %4424 = vmatpush1.bf16.xpose.msra.mxu0 0
    %4425 = vmatprep.subr.bf16.mxu0 0
    %4426 = vmatpush1.bf16.xpose.msra.mxu0 0
    %4427 = vmatprep.mubr.bf16.mxu0 0
    %4428 = vmatmul.mubr.bf16.gmra.mrb[0].mxu0 %v4390
    %v4429 = vpop.f32.mrb[0].mxu0
    %v4430 = vadd.f32 0.0, %v4429
    %v4431 = vpop.f32.mrb[0].mxu0
    %v4432 = vpop.f32.mrb[0].mxu0
    %v4433 = vpop.f32.mrb[0].mxu0
    %4434 = vdwg.mxu0
    %4435 = vrot.lane.b32.xlu0 %v2743, 104
    %v4436 = vpop.permute.xlu0 %4435
    %4437 = vrot.lane.b32.xlu0 %v2743, 72
    %v4438 = vpop.permute.xlu0 %4437
    %v4440 = vsel %vm249, %v4436, 0
    %v4443 = vsel %vm249, %v4438, 0
    %4445 = vmatprep.subr.bf16.mxu0 0
    %4446 = vmatpush1.bf16.xpose.msra.mxu0 %v4443
    %4447 = vmatprep.subr.bf16.mxu0 0
    %4448 = vmatpush1.bf16.xpose.msra.mxu0 0
    %4449 = vmatprep.subr.bf16.mxu0 0
    %4450 = vmatpush1.bf16.xpose.msra.mxu0 0
    %4451 = vmatprep.subr.bf16.mxu0 0
    %4452 = vmatpush1.bf16.xpose.msra.mxu0 0
    %4453 = vmatprep.subr.bf16.mxu0 0
    %4454 = vmatpush1.bf16.xpose.msra.mxu0 0
    %4455 = vmatprep.subr.bf16.mxu0 0
    %4456 = vmatpush1.bf16.xpose.msra.mxu0 0
    %4457 = vmatprep.subr.bf16.mxu0 0
    %4458 = vmatpush1.bf16.xpose.msra.mxu0 0
    %4459 = vmatprep.subr.bf16.mxu0 0
    %4460 = vmatpush1.bf16.xpose.msra.mxu0 0
    %4461 = vmatprep.subr.bf16.mxu0 0
    %4462 = vmatpush1.bf16.xpose.msra.mxu0 0
    %4463 = vmatprep.subr.bf16.mxu0 0
    %4464 = vmatpush1.bf16.xpose.msra.mxu0 0
    %4465 = vmatprep.subr.bf16.mxu0 0
    %4466 = vmatpush1.bf16.xpose.msra.mxu0 0
    %4467 = vmatprep.subr.bf16.mxu0 0
    %4468 = vmatpush1.bf16.xpose.msra.mxu0 0
    %4469 = vmatprep.subr.bf16.mxu0 0
    %4470 = vmatpush1.bf16.xpose.msra.mxu0 0
    %4471 = vmatprep.subr.bf16.mxu0 0
    %4472 = vmatpush1.bf16.xpose.msra.mxu0 0
    %4473 = vmatprep.subr.bf16.mxu0 0
    %4474 = vmatpush1.bf16.xpose.msra.mxu0 0
    %4475 = vmatprep.subr.bf16.mxu0 0
    %4476 = vmatpush1.bf16.xpose.msra.mxu0 0
    %4477 = vmatprep.mubr.bf16.mxu0 0
    %4478 = vmatmul.mubr.bf16.gmra.mrb[0].mxu0 %v4440
    %v4479 = vpop.f32.mrb[0].mxu0
    %v4480 = vadd.f32 0.0, %v4479
    %v4481 = vpop.f32.mrb[0].mxu0
    %v4482 = vpop.f32.mrb[0].mxu0
    %v4483 = vpop.f32.mrb[0].mxu0
    %4484 = vdwg.mxu0
    %v4485 = vmul.f32 %v4330, 0.35355338
    %v4486 = vmul.f32 %v4380, 0.35355338
    %v4487 = vmul.f32 %v4430, 0.35355338
    %v4488 = vmul.f32 %v4480, 0.35355338
    %v4489 = vadd.f32 %v4485, %v450
    %v4490 = vadd.f32 %v4486, %v454
    %v4491 = vadd.f32 %v4487, %v458
    %v4492 = vadd.f32 %v4488, %v462
    %v4493 = vsel %vm249, %v4489, -inf
    %4494 = vmax.xlane.f32.xlu0 %v4493
    %v4495 = vpop.xlane.xlu0 %4494
    %v4496 = vsel %vm249, %v4490, -inf
    %4497 = vmax.xlane.f32.xlu0 %v4496
    %v4498 = vpop.xlane.xlu0 %4497
    %v4499 = vsel %vm249, %v4491, -inf
    %4500 = vmax.xlane.f32.xlu0 %v4499
    %v4501 = vpop.xlane.xlu0 %4500
    %v4502 = vsel %vm249, %v4492, -inf
    %4503 = vmax.xlane.f32.xlu0 %v4502
    %v4504 = vpop.xlane.xlu0 %4503
    %v4505 = vsub.f32 %v4489, %v4495
    %v4506 = vsub.f32 %v4490, %v4498
    %v4507 = vsub.f32 %v4491, %v4501
    %v4508 = vsub.f32 %v4492, %v4504
    %v4509 = vmul.f32 %v4505, 1.442695
    %v4510 = vpow.pop %v4509
    %v4511 = vmul.f32 %v4506, 1.442695
    %v4512 = vpow.pop %v4511
    %v4513 = vmul.f32 %v4507, 1.442695
    %v4514 = vpow.pop %v4513
    %v4515 = vmul.f32 %v4508, 1.442695
    %v4516 = vpow.pop %v4515
    %v4517 = vsel %vm249, %v4510, 0.0
    %4518 = vadd.xlane.f32.xlu0 %v4517
    %v4519 = vpop.xlane.xlu0 %4518
    %v4520 = vsel %vm249, %v4512, 0.0
    %4521 = vadd.xlane.f32.xlu0 %v4520
    %v4522 = vpop.xlane.xlu0 %4521
    %v4523 = vsel %vm249, %v4514, 0.0
    %4524 = vadd.xlane.f32.xlu0 %v4523
    %v4525 = vpop.xlane.xlu0 %4524
    %v4526 = vsel %vm249, %v4516, 0.0
    %4527 = vadd.xlane.f32.xlu0 %v4526
    %v4528 = vpop.xlane.xlu0 %4527
    %v4529 = vrcp.pop %v4519
    %v4530 = vrcp.pop %v4522
    %v4531 = vrcp.pop %v4525
    %v4532 = vrcp.pop %v4528
    %v4533 = vmul.f32 %v4510, %v4529
    %v4534 = vmul.f32 %v4512, %v4530
    %v4535 = vmul.f32 %v4514, %v4531
    %v4536 = vmul.f32 %v4516, %v4532
    %v4537 = vpack.c.bf16 %v4533, %v4533
    %v4538 = vpack.c.bf16 %v4534, %v4534
    %v4539 = vpack.c.bf16 %v4535, %v4535
    %v4540 = vpack.c.bf16 %v4536, %v4536
    %4541 = vrot.lane.b32.xlu0 %v2740, 40
    %v4542 = vpop.permute.xlu0 %4541
    %v4544 = vsel %vm249, %v4537, 0
    %v4547 = vsel %vm524, %v4542, 0
    %4549 = vmatprep.subr.bf16.mxu0 0
    %4550 = vmatpush1.bf16.msra.mxu0 %v4547
    %4551 = vmatprep.subr.bf16.mxu0 0
    %4552 = vmatpush1.bf16.msra.mxu0 0
    %4553 = vmatprep.subr.bf16.mxu0 0
    %4554 = vmatpush1.bf16.msra.mxu0 0
    %4555 = vmatprep.subr.bf16.mxu0 0
    %4556 = vmatpush1.bf16.msra.mxu0 0
    %4557 = vmatprep.subr.bf16.mxu0 0
    %4558 = vmatpush1.bf16.msra.mxu0 0
    %4559 = vmatprep.subr.bf16.mxu0 0
    %4560 = vmatpush1.bf16.msra.mxu0 0
    %4561 = vmatprep.subr.bf16.mxu0 0
    %4562 = vmatpush1.bf16.msra.mxu0 0
    %4563 = vmatprep.subr.bf16.mxu0 0
    %4564 = vmatpush1.bf16.msra.mxu0 0
    %4565 = vmatprep.subr.bf16.mxu0 0
    %4566 = vmatpush1.bf16.msra.mxu0 0
    %4567 = vmatprep.subr.bf16.mxu0 0
    %4568 = vmatpush1.bf16.msra.mxu0 0
    %4569 = vmatprep.subr.bf16.mxu0 0
    %4570 = vmatpush1.bf16.msra.mxu0 0
    %4571 = vmatprep.subr.bf16.mxu0 0
    %4572 = vmatpush1.bf16.msra.mxu0 0
    %4573 = vmatprep.subr.bf16.mxu0 0
    %4574 = vmatpush1.bf16.msra.mxu0 0
    %4575 = vmatprep.subr.bf16.mxu0 0
    %4576 = vmatpush1.bf16.msra.mxu0 0
    %4577 = vmatprep.subr.bf16.mxu0 0
    %4578 = vmatpush1.bf16.msra.mxu0 0
    %4579 = vmatprep.subr.bf16.mxu0 0
    %4580 = vmatpush1.bf16.msra.mxu0 0
    %4581 = vmatprep.mubr.bf16.mxu0 0
    %4582 = vmatmul.mubr.bf16.gmra.mrb[0].mxu0 %v4544
    %v4583 = vpop.f32.mrb[0].mxu0
    %v4584 = vadd.f32 0.0, %v4583
    %v4585 = vpop.f32.mrb[0].mxu0
    %v4586 = vpop.f32.mrb[0].mxu0
    %v4587 = vpop.f32.mrb[0].mxu0
    %4588 = vdwg.mxu0
    %4589 = vrot.lane.b32.xlu0 %v2741, 40
    %v4590 = vpop.permute.xlu0 %4589
    %v4592 = vsel %vm249, %v4538, 0
    %v4595 = vsel %vm524, %v4590, 0
    %4597 = vmatprep.subr.bf16.mxu0 0
    %4598 = vmatpush1.bf16.msra.mxu0 %v4595
    %4599 = vmatprep.subr.bf16.mxu0 0
    %4600 = vmatpush1.bf16.msra.mxu0 0
    %4601 = vmatprep.subr.bf16.mxu0 0
    %4602 = vmatpush1.bf16.msra.mxu0 0
    %4603 = vmatprep.subr.bf16.mxu0 0
    %4604 = vmatpush1.bf16.msra.mxu0 0
    %4605 = vmatprep.subr.bf16.mxu0 0
    %4606 = vmatpush1.bf16.msra.mxu0 0
    %4607 = vmatprep.subr.bf16.mxu0 0
    %4608 = vmatpush1.bf16.msra.mxu0 0
    %4609 = vmatprep.subr.bf16.mxu0 0
    %4610 = vmatpush1.bf16.msra.mxu0 0
    %4611 = vmatprep.subr.bf16.mxu0 0
    %4612 = vmatpush1.bf16.msra.mxu0 0
    %4613 = vmatprep.subr.bf16.mxu0 0
    %4614 = vmatpush1.bf16.msra.mxu0 0
    %4615 = vmatprep.subr.bf16.mxu0 0
    %4616 = vmatpush1.bf16.msra.mxu0 0
    %4617 = vmatprep.subr.bf16.mxu0 0
    %4618 = vmatpush1.bf16.msra.mxu0 0
    %4619 = vmatprep.subr.bf16.mxu0 0
    %4620 = vmatpush1.bf16.msra.mxu0 0
    %4621 = vmatprep.subr.bf16.mxu0 0
    %4622 = vmatpush1.bf16.msra.mxu0 0
    %4623 = vmatprep.subr.bf16.mxu0 0
    %4624 = vmatpush1.bf16.msra.mxu0 0
    %4625 = vmatprep.subr.bf16.mxu0 0
    %4626 = vmatpush1.bf16.msra.mxu0 0
    %4627 = vmatprep.subr.bf16.mxu0 0
    %4628 = vmatpush1.bf16.msra.mxu0 0
    %4629 = vmatprep.mubr.bf16.mxu0 0
    %4630 = vmatmul.mubr.bf16.gmra.mrb[0].mxu0 %v4592
    %v4631 = vpop.f32.mrb[0].mxu0
    %v4632 = vadd.f32 0.0, %v4631
    %v4633 = vpop.f32.mrb[0].mxu0
    %v4634 = vpop.f32.mrb[0].mxu0
    %v4635 = vpop.f32.mrb[0].mxu0
    %4636 = vdwg.mxu0
    %4637 = vrot.lane.b32.xlu0 %v2742, 40
    %v4638 = vpop.permute.xlu0 %4637
    %v4640 = vsel %vm249, %v4539, 0
    %v4643 = vsel %vm524, %v4638, 0
    %4645 = vmatprep.subr.bf16.mxu0 0
    %4646 = vmatpush1.bf16.msra.mxu0 %v4643
    %4647 = vmatprep.subr.bf16.mxu0 0
    %4648 = vmatpush1.bf16.msra.mxu0 0
    %4649 = vmatprep.subr.bf16.mxu0 0
    %4650 = vmatpush1.bf16.msra.mxu0 0
    %4651 = vmatprep.subr.bf16.mxu0 0
    %4652 = vmatpush1.bf16.msra.mxu0 0
    %4653 = vmatprep.subr.bf16.mxu0 0
    %4654 = vmatpush1.bf16.msra.mxu0 0
    %4655 = vmatprep.subr.bf16.mxu0 0
    %4656 = vmatpush1.bf16.msra.mxu0 0
    %4657 = vmatprep.subr.bf16.mxu0 0
    %4658 = vmatpush1.bf16.msra.mxu0 0
    %4659 = vmatprep.subr.bf16.mxu0 0
    %4660 = vmatpush1.bf16.msra.mxu0 0
    %4661 = vmatprep.subr.bf16.mxu0 0
    %4662 = vmatpush1.bf16.msra.mxu0 0
    %4663 = vmatprep.subr.bf16.mxu0 0
    %4664 = vmatpush1.bf16.msra.mxu0 0
    %4665 = vmatprep.subr.bf16.mxu0 0
    %4666 = vmatpush1.bf16.msra.mxu0 0
    %4667 = vmatprep.subr.bf16.mxu0 0
    %4668 = vmatpush1.bf16.msra.mxu0 0
    %4669 = vmatprep.subr.bf16.mxu0 0
    %4670 = vmatpush1.bf16.msra.mxu0 0
    %4671 = vmatprep.subr.bf16.mxu0 0
    %4672 = vmatpush1.bf16.msra.mxu0 0
    %4673 = vmatprep.subr.bf16.mxu0 0
    %4674 = vmatpush1.bf16.msra.mxu0 0
    %4675 = vmatprep.subr.bf16.mxu0 0
    %4676 = vmatpush1.bf16.msra.mxu0 0
    %4677 = vmatprep.mubr.bf16.mxu0 0
    %4678 = vmatmul.mubr.bf16.gmra.mrb[0].mxu0 %v4640
    %v4679 = vpop.f32.mrb[0].mxu0
    %v4680 = vadd.f32 0.0, %v4679
    %v4681 = vpop.f32.mrb[0].mxu0
    %v4682 = vpop.f32.mrb[0].mxu0
    %v4683 = vpop.f32.mrb[0].mxu0
    %4684 = vdwg.mxu0
    %4685 = vrot.lane.b32.xlu0 %v2743, 40
    %v4686 = vpop.permute.xlu0 %4685
    %v4688 = vsel %vm249, %v4540, 0
    %v4691 = vsel %vm524, %v4686, 0
    %4693 = vmatprep.subr.bf16.mxu0 0
    %4694 = vmatpush1.bf16.msra.mxu0 %v4691
    %4695 = vmatprep.subr.bf16.mxu0 0
    %4696 = vmatpush1.bf16.msra.mxu0 0
    %4697 = vmatprep.subr.bf16.mxu0 0
    %4698 = vmatpush1.bf16.msra.mxu0 0
    %4699 = vmatprep.subr.bf16.mxu0 0
    %4700 = vmatpush1.bf16.msra.mxu0 0
    %4701 = vmatprep.subr.bf16.mxu0 0
    %4702 = vmatpush1.bf16.msra.mxu0 0
    %4703 = vmatprep.subr.bf16.mxu0 0
    %4704 = vmatpush1.bf16.msra.mxu0 0
    %4705 = vmatprep.subr.bf16.mxu0 0
    %4706 = vmatpush1.bf16.msra.mxu0 0
    %4707 = vmatprep.subr.bf16.mxu0 0
    %4708 = vmatpush1.bf16.msra.mxu0 0
    %4709 = vmatprep.subr.bf16.mxu0 0
    %4710 = vmatpush1.bf16.msra.mxu0 0
    %4711 = vmatprep.subr.bf16.mxu0 0
    %4712 = vmatpush1.bf16.msra.mxu0 0
    %4713 = vmatprep.subr.bf16.mxu0 0
    %4714 = vmatpush1.bf16.msra.mxu0 0
    %4715 = vmatprep.subr.bf16.mxu0 0
    %4716 = vmatpush1.bf16.msra.mxu0 0
    %4717 = vmatprep.subr.bf16.mxu0 0
    %4718 = vmatpush1.bf16.msra.mxu0 0
    %4719 = vmatprep.subr.bf16.mxu0 0
    %4720 = vmatpush1.bf16.msra.mxu0 0
    %4721 = vmatprep.subr.bf16.mxu0 0
    %4722 = vmatpush1.bf16.msra.mxu0 0
    %4723 = vmatprep.subr.bf16.mxu0 0
    %4724 = vmatpush1.bf16.msra.mxu0 0
    %4725 = vmatprep.mubr.bf16.mxu0 0
    %4726 = vmatmul.mubr.bf16.gmra.mrb[0].mxu0 %v4688
    %v4727 = vpop.f32.mrb[0].mxu0
    %v4728 = vadd.f32 0.0, %v4727
    %v4729 = vpop.f32.mrb[0].mxu0
    %v4730 = vpop.f32.mrb[0].mxu0
    %v4731 = vpop.f32.mrb[0].mxu0
    %4732 = vdwg.mxu0
    %v4733 = vpack.c.bf16 %v4632, %v4584
    %v4734 = vpack.c.bf16 %v4728, %v4680
    %v4735 = vpack.c.bf16 %v2737, %v2737
    %v4737 = vsel %vm249, %v4733, 0
    %v4740 = vsel %vm249, %v4734, 0
    %v4743 = vsel %vm524, %v4735, 0
    %4745 = vmatprep.subr.bf16.mxu0 0
    %4746 = vmatpush1.bf16.msra.mxu0 %v4743
    %4747 = vmatprep.subr.bf16.mxu0 0
    %4748 = vmatpush1.bf16.msra.mxu0 0
    %4749 = vmatprep.subr.bf16.mxu0 0
    %4750 = vmatpush1.bf16.msra.mxu0 0
    %4751 = vmatprep.subr.bf16.mxu0 0
    %4752 = vmatpush1.bf16.msra.mxu0 0
    %4753 = vmatprep.subr.bf16.mxu0 0
    %4754 = vmatpush1.bf16.msra.mxu0 0
    %4755 = vmatprep.subr.bf16.mxu0 0
    %4756 = vmatpush1.bf16.msra.mxu0 0
    %4757 = vmatprep.subr.bf16.mxu0 0
    %4758 = vmatpush1.bf16.msra.mxu0 0
    %4759 = vmatprep.subr.bf16.mxu0 0
    %4760 = vmatpush1.bf16.msra.mxu0 0
    %4761 = vmatprep.subr.bf16.mxu0 0
    %4762 = vmatpush1.bf16.msra.mxu0 0
    %4763 = vmatprep.subr.bf16.mxu0 0
    %4764 = vmatpush1.bf16.msra.mxu0 0
    %4765 = vmatprep.subr.bf16.mxu0 0
    %4766 = vmatpush1.bf16.msra.mxu0 0
    %4767 = vmatprep.subr.bf16.mxu0 0
    %4768 = vmatpush1.bf16.msra.mxu0 0
    %4769 = vmatprep.subr.bf16.mxu0 0
    %4770 = vmatpush1.bf16.msra.mxu0 0
    %4771 = vmatprep.subr.bf16.mxu0 0
    %4772 = vmatpush1.bf16.msra.mxu0 0
    %4773 = vmatprep.subr.bf16.mxu0 0
    %4774 = vmatpush1.bf16.msra.mxu0 0
    %4775 = vmatprep.subr.bf16.mxu0 0
    %4776 = vmatpush1.bf16.msra.mxu0 0
    %4777 = vmatprep.mubr.bf16.mxu0 0
    %4778 = vmatmul.mubr.bf16.gmra.mrb[0].mxu0 %v4737
    %v4779 = vpop.f32.mrb[0].mxu0
    %v4780 = vadd.f32 0.0, %v4779
    %v4781 = vpop.f32.mrb[0].mxu0
    %v4782 = vpop.f32.mrb[0].mxu0
    %v4783 = vadd.f32 0.0, %v4782
    %v4784 = vpop.f32.mrb[0].mxu0
    %4785 = vmatprep.mubr.bf16.mxu0 0
    %4786 = vmatmul.mubr.bf16.gmra.mrb[0].mxu0 %v4740
    %v4787 = vpop.f32.mrb[0].mxu0
    %v4788 = vadd.f32 0.0, %v4787
    %v4789 = vpop.f32.mrb[0].mxu0
    %v4790 = vpop.f32.mrb[0].mxu0
    %v4791 = vadd.f32 0.0, %v4790
    %v4792 = vpop.f32.mrb[0].mxu0
    %4793 = vdwg.mxu0
    %v4794 = vadd.f32 %v4281, %v4780
    %v4795 = vadd.f32 %v4282, %v4783
    %v4796 = vadd.f32 %v4283, %v4788
    %v4797 = vadd.f32 %v4284, %v4791
    %v4798 = vadd.f32 %v2657, %v4794
    %v4799 = vadd.f32 %v2658, %v4795
    %v4800 = vadd.f32 %v2659, %v4796
    %v4801 = vadd.f32 %v2660, %v4797
    %s4802 = scalar_lea.vmem %s8, 1
    %v4803 = vld [vmem:[%s4802] sm:$0x1]
    %s4804 = scalar_lea.vmem %s9, 1
    %v4805 = vld [vmem:[%s4804] sm:$0x1]
    %v4806 = vsel %vm93, %v4798, 0.0
    %4807 = vadd.xlane.f32.xlu0 %v4806
    %v4808 = vpop.xlane.xlu0 %4807
    %v4809 = vsel %vm93, %v4799, 0.0
    %4810 = vadd.xlane.f32.xlu0 %v4809
    %v4811 = vpop.xlane.xlu0 %4810
    %v4812 = vsel %vm93, %v4800, 0.0
    %4813 = vadd.xlane.f32.xlu0 %v4812
    %v4814 = vpop.xlane.xlu0 %4813
    %v4815 = vsel %vm93, %v4801, 0.0
    %4816 = vadd.xlane.f32.xlu0 %v4815
    %v4817 = vpop.xlane.xlu0 %4816
    %v4818 = vmul.f32 %v4808, %v106
    %v4819 = vmul.f32 %v4811, %v106
    %v4820 = vmul.f32 %v4814, %v106
    %v4821 = vmul.f32 %v4817, %v106
    %v4822 = vsub.f32 %v4798, %v4818
    %v4823 = vsub.f32 %v4799, %v4819
    %v4824 = vsub.f32 %v4800, %v4820
    %v4825 = vsub.f32 %v4801, %v4821
    %v4826 = vmul.f32 %v4822, %v4822
    %v4827 = vmul.f32 %v4823, %v4823
    %v4828 = vmul.f32 %v4824, %v4824
    %v4829 = vmul.f32 %v4825, %v4825
    %v4830 = vsel %vm93, %v4826, 0.0
    %4831 = vadd.xlane.f32.xlu0 %v4830
    %v4832 = vpop.xlane.xlu0 %4831
    %v4833 = vsel %vm93, %v4827, 0.0
    %4834 = vadd.xlane.f32.xlu0 %v4833
    %v4835 = vpop.xlane.xlu0 %4834
    %v4836 = vsel %vm93, %v4828, 0.0
    %4837 = vadd.xlane.f32.xlu0 %v4836
    %v4838 = vpop.xlane.xlu0 %4837
    %v4839 = vsel %vm93, %v4829, 0.0
    %4840 = vadd.xlane.f32.xlu0 %v4839
    %v4841 = vpop.xlane.xlu0 %4840
    %v4842 = vmul.f32 %v4832, %v106
    %v4843 = vmul.f32 %v4835, %v106
    %v4844 = vmul.f32 %v4838, %v106
    %v4845 = vmul.f32 %v4841, %v106
    %v4846 = vadd.f32 %v4842, 1e-12
    %v4847 = vadd.f32 %v4843, 1e-12
    %v4848 = vadd.f32 %v4844, 1e-12
    %v4849 = vadd.f32 %v4845, 1e-12
    %v4850 = vrsqrt.pop %v4846
    %v4851 = vrsqrt.pop %v4847
    %v4852 = vrsqrt.pop %v4848
    %v4853 = vrsqrt.pop %v4849
    %v4854 = vmul.f32 %v4822, %v4850
    %v4855 = vmul.f32 %v4823, %v4851
    %v4856 = vmul.f32 %v4824, %v4852
    %v4857 = vmul.f32 %v4825, %v4853
    %v4859 = vlaneseq
    %v4860 = vshrl.u32 %v4859, 7
    %v4861 = vsub.s32 0, %v4860
    %v4862 = vrot.slane %v4803, %v4861
    %v4864 = vmul.f32 %v4854, %v4862
    %v4865 = vmul.f32 %v4855, %v4862
    %v4866 = vmul.f32 %v4856, %v4862
    %v4867 = vmul.f32 %v4857, %v4862
    %v4869 = vlaneseq
    %v4870 = vshrl.u32 %v4869, 7
    %v4871 = vsub.s32 0, %v4870
    %v4872 = vrot.slane %v4805, %v4871
    %v4874 = vadd.f32 %v4864, %v4872
    %v4875 = vadd.f32 %v4865, %v4872
    %v4876 = vadd.f32 %v4866, %v4872
    %v4877 = vadd.f32 %v4867, %v4872
    %s4878 = scalar_lea.vmem %s10, 32
    %v4879 = vld [vmem:[%s4878] sm:$0xff]
    %v4880 = vld [vmem:[%s4878 + $0x8] sm:$0xff]
    %v4881 = vld [vmem:[%s4878 + $0x10] sm:$0xff]
    %v4882 = vld [vmem:[%s4878 + $0x18] sm:$0xff]
    %s4883 = scalar_lea.vmem %s11, 1
    %v4884 = vld [vmem:[%s4883] sm:$0x1]
    %v4885 = vpack.c.bf16 %v4875, %v4874
    %v4886 = vpack.c.bf16 %v4877, %v4876
    %v4887 = vpack.c.bf16 %v4880, %v4879
    %v4888 = vpack.c.bf16 %v4882, %v4881
    %v4890 = vlaneseq
    %v4891 = vshrl.u32 %v4890, 7
    %v4892 = vsub.s32 0, %v4891
    %v4893 = vrot.slane %v4884, %v4892
    %v4896 = vsel %vm93, %v4885, 0
    %v4899 = vsel %vm93, %v4886, 0
    %4901 = vmatprep.subr.bf16.mxu0 0
    %4902 = vmatpush1.bf16.msra.mxu0 %v4887
    %4903 = vmatprep.subr.bf16.mxu0 0
    %4904 = vmatpush1.bf16.msra.mxu0 %v4888
    %4905 = vmatprep.subr.bf16.mxu0 0
    %4906 = vmatpush1.bf16.msra.mxu0 0
    %4907 = vmatprep.subr.bf16.mxu0 0
    %4908 = vmatpush1.bf16.msra.mxu0 0
    %4909 = vmatprep.subr.bf16.mxu0 0
    %4910 = vmatpush1.bf16.msra.mxu0 0
    %4911 = vmatprep.subr.bf16.mxu0 0
    %4912 = vmatpush1.bf16.msra.mxu0 0
    %4913 = vmatprep.subr.bf16.mxu0 0
    %4914 = vmatpush1.bf16.msra.mxu0 0
    %4915 = vmatprep.subr.bf16.mxu0 0
    %4916 = vmatpush1.bf16.msra.mxu0 0
    %4917 = vmatprep.subr.bf16.mxu0 0
    %4918 = vmatpush1.bf16.msra.mxu0 0
    %4919 = vmatprep.subr.bf16.mxu0 0
    %4920 = vmatpush1.bf16.msra.mxu0 0
    %4921 = vmatprep.subr.bf16.mxu0 0
    %4922 = vmatpush1.bf16.msra.mxu0 0
    %4923 = vmatprep.subr.bf16.mxu0 0
    %4924 = vmatpush1.bf16.msra.mxu0 0
    %4925 = vmatprep.subr.bf16.mxu0 0
    %4926 = vmatpush1.bf16.msra.mxu0 0
    %4927 = vmatprep.subr.bf16.mxu0 0
    %4928 = vmatpush1.bf16.msra.mxu0 0
    %4929 = vmatprep.subr.bf16.mxu0 0
    %4930 = vmatpush1.bf16.msra.mxu0 0
    %4931 = vmatprep.subr.bf16.mxu0 0
    %4932 = vmatpush1.bf16.msra.mxu0 0
    %4933 = vmatprep.mubr.bf16.mxu0 0
    %4934 = vmatmul.mubr.bf16.gmra.mrb[0].mxu0 %v4896
    %v4935 = vpop.f32.mrb[0].mxu0
    %v4936 = vadd.f32 %v4893, %v4935
    %v4937 = vpop.f32.mrb[0].mxu0
    %v4938 = vpop.f32.mrb[0].mxu0
    %v4939 = vadd.f32 %v4893, %v4938
    %v4940 = vpop.f32.mrb[0].mxu0
    %4941 = vmatprep.mubr.bf16.mxu0 0
    %4942 = vmatmul.mubr.bf16.gmra.mrb[0].mxu0 %v4899
    %v4943 = vpop.f32.mrb[0].mxu0
    %v4944 = vadd.f32 %v4893, %v4943
    %v4945 = vpop.f32.mrb[0].mxu0
    %v4946 = vpop.f32.mrb[0].mxu0
    %v4947 = vadd.f32 %v4893, %v4946
    %v4948 = vpop.f32.mrb[0].mxu0
    %4949 = vdwg.mxu0
    %v4950 = vmul.f32 %v4936, 0.5
    %v4951 = vmul.f32 %v4939, 0.5
    %v4952 = vmul.f32 %v4944, 0.5
    %v4953 = vmul.f32 %v4947, 0.5
    %v4954 = vmul.f32 %v4936, 0.044715
    %v4955 = vmul.f32 %v4939, 0.044715
    %v4956 = vmul.f32 %v4944, 0.044715
    %v4957 = vmul.f32 %v4947, 0.044715
    %v4958 = vmul.f32 %v4954, %v4936
    %v4959 = vmul.f32 %v4955, %v4939
    %v4960 = vmul.f32 %v4956, %v4944
    %v4961 = vmul.f32 %v4957, %v4947
    %v4962 = vmul.f32 %v4958, %v4936
    %v4963 = vmul.f32 %v4959, %v4939
    %v4964 = vmul.f32 %v4960, %v4944
    %v4965 = vmul.f32 %v4961, %v4947
    %v4966 = vadd.f32 %v4936, %v4962
    %v4967 = vadd.f32 %v4939, %v4963
    %v4968 = vadd.f32 %v4944, %v4964
    %v4969 = vadd.f32 %v4947, %v4965
    %v4970 = vmul.f32 %v4966, 0.7978846
    %v4971 = vmul.f32 %v4967, 0.7978846
    %v4972 = vmul.f32 %v4968, 0.7978846
    %v4973 = vmul.f32 %v4969, 0.7978846
    %v4974 = vtanh.pop %v4970
    %v4975 = vtanh.pop %v4971
    %v4976 = vtanh.pop %v4972
    %v4977 = vtanh.pop %v4973
    %v4978 = vadd.f32 %v4974, 1.0
    %v4979 = vadd.f32 %v4975, 1.0
    %v4980 = vadd.f32 %v4976, 1.0
    %v4981 = vadd.f32 %v4977, 1.0
    %v4982 = vmul.f32 %v4950, %v4978
    %v4983 = vmul.f32 %v4951, %v4979
    %v4984 = vmul.f32 %v4952, %v4980
    %v4985 = vmul.f32 %v4953, %v4981
    %s4986 = scalar_lea.vmem %s12, 64
    %v4987 = vld [vmem:[%s4986] sm:$0xff]
    %v4988 = vld [vmem:[%s4986 + $0x8] sm:$0xff]
    %v4989 = vld [vmem:[%s4986 + $0x10] sm:$0xff]
    %v4990 = vld [vmem:[%s4986 + $0x18] sm:$0xff]
    %v4991 = vld [vmem:[%s4986 + $0x20] sm:$0xff]
    %v4992 = vld [vmem:[%s4986 + $0x28] sm:$0xff]
    %v4993 = vld [vmem:[%s4986 + $0x30] sm:$0xff]
    %v4994 = vld [vmem:[%s4986 + $0x38] sm:$0xff]
    %s4995 = scalar_lea.vmem %s13, 1
    %v4996 = vld [vmem:[%s4995] sm:$0x1]
    %v4997 = vpack.c.bf16 %v4983, %v4982
    %v4998 = vpack.c.bf16 %v4985, %v4984
    %v4999 = vpack.c.bf16 %v4988, %v4987
    %v5000 = vpack.c.bf16 %v4990, %v4989
    %v5001 = vpack.c.bf16 %v4992, %v4991
    %v5002 = vpack.c.bf16 %v4994, %v4993
    %v5004 = vlaneseq
    %v5005 = vshrl.u32 %v5004, 7
    %v5006 = vsub.s32 0, %v5005
    %v5007 = vrot.slane %v4996, %v5006
    %v5010 = vsel %vm2527, %v4997, 0
    %v5013 = vsel %vm2527, %v4998, 0
    %5015 = vmatprep.subr.bf16.mxu0 0
    %5016 = vmatpush1.bf16.msra.mxu0 %v4999
    %5017 = vmatprep.subr.bf16.mxu0 0
    %5018 = vmatpush1.bf16.msra.mxu0 %v5000
    %5019 = vmatprep.subr.bf16.mxu0 0
    %5020 = vmatpush1.bf16.msra.mxu0 %v5001
    %5021 = vmatprep.subr.bf16.mxu0 0
    %5022 = vmatpush1.bf16.msra.mxu0 %v5002
    %5023 = vmatprep.subr.bf16.mxu0 0
    %5024 = vmatpush1.bf16.msra.mxu0 0
    %5025 = vmatprep.subr.bf16.mxu0 0
    %5026 = vmatpush1.bf16.msra.mxu0 0
    %5027 = vmatprep.subr.bf16.mxu0 0
    %5028 = vmatpush1.bf16.msra.mxu0 0
    %5029 = vmatprep.subr.bf16.mxu0 0
    %5030 = vmatpush1.bf16.msra.mxu0 0
    %5031 = vmatprep.subr.bf16.mxu0 0
    %5032 = vmatpush1.bf16.msra.mxu0 0
    %5033 = vmatprep.subr.bf16.mxu0 0
    %5034 = vmatpush1.bf16.msra.mxu0 0
    %5035 = vmatprep.subr.bf16.mxu0 0
    %5036 = vmatpush1.bf16.msra.mxu0 0
    %5037 = vmatprep.subr.bf16.mxu0 0
    %5038 = vmatpush1.bf16.msra.mxu0 0
    %5039 = vmatprep.subr.bf16.mxu0 0
    %5040 = vmatpush1.bf16.msra.mxu0 0
    %5041 = vmatprep.subr.bf16.mxu0 0
    %5042 = vmatpush1.bf16.msra.mxu0 0
    %5043 = vmatprep.subr.bf16.mxu0 0
    %5044 = vmatpush1.bf16.msra.mxu0 0
    %5045 = vmatprep.subr.bf16.mxu0 0
    %5046 = vmatpush1.bf16.msra.mxu0 0
    %5047 = vmatprep.mubr.bf16.mxu0 0
    %5048 = vmatmul.mubr.bf16.gmra.mrb[0].mxu0 %v5010
    %v5049 = vpop.f32.mrb[0].mxu0
    %v5050 = vadd.f32 %v5007, %v5049
    %v5051 = vpop.f32.mrb[0].mxu0
    %v5052 = vpop.f32.mrb[0].mxu0
    %v5053 = vadd.f32 %v5007, %v5052
    %v5054 = vpop.f32.mrb[0].mxu0
    %5055 = vmatprep.mubr.bf16.mxu0 0
    %5056 = vmatmul.mubr.bf16.gmra.mrb[0].mxu0 %v5013
    %v5057 = vpop.f32.mrb[0].mxu0
    %v5058 = vadd.f32 %v5007, %v5057
    %v5059 = vpop.f32.mrb[0].mxu0
    %v5060 = vpop.f32.mrb[0].mxu0
    %v5061 = vadd.f32 %v5007, %v5060
    %v5062 = vpop.f32.mrb[0].mxu0
    %5063 = vdwg.mxu0
    %v5064 = vadd.f32 %v4874, %v5050
    %v5065 = vadd.f32 %v4875, %v5053
    %v5066 = vadd.f32 %v4876, %v5058
    %v5067 = vadd.f32 %v4877, %v5061
    %s5068 = scalar_lea.vmem %s14, 1
    %v5069 = vld [vmem:[%s5068] sm:$0x1]
    %s5070 = scalar_lea.vmem %s15, 1
    %v5071 = vld [vmem:[%s5070] sm:$0x1]
    %v5072 = vsel %vm93, %v5064, 0.0
    %5073 = vadd.xlane.f32.xlu0 %v5072
    %v5074 = vpop.xlane.xlu0 %5073
    %v5075 = vsel %vm93, %v5065, 0.0
    %5076 = vadd.xlane.f32.xlu0 %v5075
    %v5077 = vpop.xlane.xlu0 %5076
    %v5078 = vsel %vm93, %v5066, 0.0
    %5079 = vadd.xlane.f32.xlu0 %v5078
    %v5080 = vpop.xlane.xlu0 %5079
    %v5081 = vsel %vm93, %v5067, 0.0
    %5082 = vadd.xlane.f32.xlu0 %v5081
    %v5083 = vpop.xlane.xlu0 %5082
    %v5084 = vmul.f32 %v5074, %v106
    %v5085 = vmul.f32 %v5077, %v106
    %v5086 = vmul.f32 %v5080, %v106
    %v5087 = vmul.f32 %v5083, %v106
    %v5088 = vsub.f32 %v5064, %v5084
    %v5089 = vsub.f32 %v5065, %v5085
    %v5090 = vsub.f32 %v5066, %v5086
    %v5091 = vsub.f32 %v5067, %v5087
    %v5092 = vmul.f32 %v5088, %v5088
    %v5093 = vmul.f32 %v5089, %v5089
    %v5094 = vmul.f32 %v5090, %v5090
    %v5095 = vmul.f32 %v5091, %v5091
    %v5096 = vsel %vm93, %v5092, 0.0
    %5097 = vadd.xlane.f32.xlu0 %v5096
    %v5098 = vpop.xlane.xlu0 %5097
    %v5099 = vsel %vm93, %v5093, 0.0
    %5100 = vadd.xlane.f32.xlu0 %v5099
    %v5101 = vpop.xlane.xlu0 %5100
    %v5102 = vsel %vm93, %v5094, 0.0
    %5103 = vadd.xlane.f32.xlu0 %v5102
    %v5104 = vpop.xlane.xlu0 %5103
    %v5105 = vsel %vm93, %v5095, 0.0
    %5106 = vadd.xlane.f32.xlu0 %v5105
    %v5107 = vpop.xlane.xlu0 %5106
    %v5108 = vmul.f32 %v5098, %v106
    %v5109 = vmul.f32 %v5101, %v106
    %v5110 = vmul.f32 %v5104, %v106
    %v5111 = vmul.f32 %v5107, %v106
    %v5112 = vadd.f32 %v5108, 1e-12
    %v5113 = vadd.f32 %v5109, 1e-12
    %v5114 = vadd.f32 %v5110, 1e-12
    %v5115 = vadd.f32 %v5111, 1e-12
    %v5116 = vrsqrt.pop %v5112
    %v5117 = vrsqrt.pop %v5113
    %v5118 = vrsqrt.pop %v5114
    %v5119 = vrsqrt.pop %v5115
    %v5120 = vmul.f32 %v5088, %v5116
    %v5121 = vmul.f32 %v5089, %v5117
    %v5122 = vmul.f32 %v5090, %v5118
    %v5123 = vmul.f32 %v5091, %v5119
    %v5125 = vlaneseq
    %v5126 = vshrl.u32 %v5125, 7
    %v5127 = vsub.s32 0, %v5126
    %v5128 = vrot.slane %v5069, %v5127
    %v5130 = vmul.f32 %v5120, %v5128
    %v5131 = vmul.f32 %v5121, %v5128
    %v5132 = vmul.f32 %v5122, %v5128
    %v5133 = vmul.f32 %v5123, %v5128
    %v5135 = vlaneseq
    %v5136 = vshrl.u32 %v5135, 7
    %v5137 = vsub.s32 0, %v5136
    %v5138 = vrot.slane %v5071, %v5137
    %v5140 = vadd.f32 %v5130, %v5138
    %v5141 = vadd.f32 %v5131, %v5138
    %v5142 = vadd.f32 %v5132, %v5138
    %v5143 = vadd.f32 %v5133, %v5138
    %v5148 = vrot.slane %v5141, 7
    %vm5149 = vcmask 1041409
    %v5150 = vsel %vm5149, %v5148, %v5140
    %v5151 = vrot.slane %v5142, 6
    %vm5152 = vcmask 1042434
    %v5153 = vsel %vm5152, %v5151, %v5150
    %v5154 = vrot.slane %v5143, 5
    %vm5155 = vcmask 1043459
    %v5156 = vsel %vm5155, %v5154, %v5153
    %vm5158 = vcmask 257024
    %5159 = vst.msk [vmem:[#allocation2] sm:$0xf] %vm5158, %v5156
    // Predicated region
    $region74: #{simcse_forward.1} parent=1 // pred_check
      _
    $region75: #{simcse_forward.1} parent=1 // pred_check_branch
      %5161 = sbr.rel (0) target = $region77
    $region76: #{simcse_forward.1} parent=1 // pred_region
      %s5163 = ssub.s32 64, 64
      %5164 = vsyncadd [#allocation3], %s5163
      %s5166 = sshll.u32 [#allocation2], 4
      %s5167 = int_to_ptr.vmem [resolvable:$true] %s5166
      %5169 = dma.vmem_to_hbm [thread:$0]  %s5167, 64, %s18, [#allocation3]
    $region77: #{simcse_forward.1} parent=1 // pred_fallthru
      _
    // Predicated region
    $region78: #{simcse_forward.1} parent=1 // pred_check
      _
    $region79: #{simcse_forward.1} parent=1 // pred_check_branch
      %5171 = sbr.rel (0) target = $region81
    $region80: #{simcse_forward.1} parent=1 // pred_region
      %5172 = dma.done [#allocation3], 64
    $region81: #{simcse_forward.1} parent=1 // pred_fallthru
      _
    %5173 = vsyncpa [#allocation3], 1

</llo_original>
